<compile_context>
chip_gen: v7x
topology: tpu7x:2x2x1
jax: 0.10.0
libtpu: 0.0.40
codegen_flags: <defaults>
</compile_context>

<pallas_src>
import functools

import jax
import jax.numpy as jnp
from jax.experimental import pallas as pl
from jax.experimental.pallas import tpu as pltpu


def _residual_block_kernel(w1_ref, b1_ref, w2_ref, b2_ref, mask_ref, xe_ref,
                           out_ref, col_ref, h1e_ref,
                           *, Cp, Nb, Pq, Pe, EG, Wp):
  """Processes Nb images laid side by side along the lane axis.

  w*_ref  : VMEM (Cp, 9*Cp) bf16  tap-stacked weights, column block t = kh*3+kw
  b*_ref  : VMEM (Cp, 1)    f32   folded biases
  mask_ref: VMEM (1, Nb*Pq) f32   interior mask of each padded frame
  xe_ref  : VMEM (Nb*Cp, Pe) f32  per-image padded frame + EG guard lanes
  out_ref : VMEM (Nb*Cp, Pq) f32  output in padded-frame coords
  col_ref : VMEM (9*Cp, Nb*Pq) bf16  im2col scratch (reused by both convs)
  h1e_ref : VMEM (Cp, Nb*Pe) bf16    conv1 output + guard lanes
  """
  offs = [(t // 3 - 1) * Wp + (t % 3 - 1) for t in range(9)]
  mask = mask_ref[...]                                  # (1, Nb*Pq)

  # ---- conv1 (3x3, pad=1) + folded BN1 + ReLU -----------------------------
  # Build the bf16 im2col once (9 shifted reads per image), then a single
  # MXU matmul with K = 9*Cp so tap accumulation happens inside the MXU.
  for n in range(Nb):
    rows = slice(n * Cp, (n + 1) * Cp)
    for t in range(9):
      s = EG + offs[t]
      col_ref[t * Cp:(t + 1) * Cp, n * Pq:(n + 1) * Pq] = (
          xe_ref[rows, s:s + Pq].astype(jnp.bfloat16))
  acc = jnp.dot(w1_ref[...], col_ref[...], preferred_element_type=jnp.float32)
  # Mask zeroes the padded-frame border (acts as zero padding for conv2) and
  # the Pp..Pq lane-padding region.
  h1 = (jnp.maximum(acc + b1_ref[...], 0.0) * mask).astype(jnp.bfloat16)

  # Store conv1 output with guard lanes so conv2's shifted reads stay
  # in-bounds; only the two aligned 128-lane guard strips are zeroed.
  for n in range(Nb):
    base = n * Pe
    h1e_ref[:, base:base + EG] = jnp.zeros((Cp, EG), jnp.bfloat16)
    h1e_ref[:, base + EG + Pq:base + Pe] = jnp.zeros((Cp, EG), jnp.bfloat16)
    h1e_ref[:, base + EG:base + EG + Pq] = h1[:, n * Pq:(n + 1) * Pq]

  # ---- conv2 (3x3, pad=1) + folded BN2 + residual add + ReLU --------------
  for n in range(Nb):
    for t in range(9):
      s = n * Pe + EG + offs[t]
      col_ref[t * Cp:(t + 1) * Cp, n * Pq:(n + 1) * Pq] = h1e_ref[:, s:s + Pq]
  acc2 = jnp.dot(w2_ref[...], col_ref[...], preferred_element_type=jnp.float32)
  b2 = b2_ref[...]
  for n in range(Nb):
    rows = slice(n * Cp, (n + 1) * Cp)
    out_ref[rows, :] = jnp.maximum(
        acc2[:, n * Pq:(n + 1) * Pq] + b2 + xe_ref[rows, EG:EG + Pq], 0.0)


def residual_block(x, w1, b1, w2, b2):
  """x: (N, C, H, W) f32; w*: (C, C, 3, 3) folded weights; b*: (C,) folded biases."""
  N, C, H, W = x.shape
  Hp, Wp = H + 2, W + 2
  Pp = Hp * Wp
  Pq = ((Pp + 127) // 128) * 128          # lane-dense, 128-aligned frame width
  EG = 128                                # guard lanes (>= Wp+1), keeps stores aligned
  Pe = Pq + 2 * EG
  assert Wp + 1 <= EG, "frame too wide for the fixed guard width; raise EG"

  # Pad channels to a multiple of 16 (bf16 sublane tile alignment).
  Cp = ((C + 15) // 16) * 16
  pc = Cp - C
  if pc:
    x = jnp.pad(x, ((0, 0), (0, pc), (0, 0), (0, 0)))
    w1 = jnp.pad(w1, ((0, pc), (0, pc), (0, 0), (0, 0)))
    w2 = jnp.pad(w2, ((0, pc), (0, pc), (0, 0), (0, 0)))
    b1 = jnp.pad(b1, (0, pc))
    b2 = jnp.pad(b2, (0, pc))

  # Batch block: lay Nb images side by side along lanes per grid step.
  Nb = 1
  for cand in range(N, 0, -1):
    if N % cand == 0 and cand * Pq <= 1024 and cand * Cp <= 256:
      Nb = cand
      break

  # Zero-pad spatially, flatten the padded frame lane-dense, add guard lanes
  # in front and (guard + lane-padding) zeros behind.
  xp = jnp.pad(x, ((0, 0), (0, 0), (1, 1), (1, 1))).reshape(N, Cp, Pp)
  xe = jnp.pad(xp, ((0, 0), (0, 0), (EG, Pe - EG - Pp))).reshape(N * Cp, Pe)

  # Tap-stacked weight matrices (Cp, 9*Cp), column block t = kh*3 + kw, bf16.
  w1t = jnp.transpose(w1, (0, 2, 3, 1)).reshape(Cp, 9 * Cp).astype(jnp.bfloat16)
  w2t = jnp.transpose(w2, (0, 2, 3, 1)).reshape(Cp, 9 * Cp).astype(jnp.bfloat16)
  b1c = b1.reshape(Cp, 1).astype(jnp.float32)
  b2c = b2.reshape(Cp, 1).astype(jnp.float32)

  # Interior mask of the padded frame (1 inside the HxW image, 0 on its border
  # and on the Pp..Pq lane padding), tiled over the Nb images in a block.
  q = jnp.arange(Pq)
  r, c = q // Wp, q % Wp
  mask = ((q < Pp) & (r >= 1) & (r <= H) & (c >= 1) & (c <= W))
  mask = jnp.tile(mask.astype(jnp.float32).reshape(1, Pq), (1, Nb))

  kernel = functools.partial(_residual_block_kernel, Cp=Cp, Nb=Nb, Pq=Pq,
                             Pe=Pe, EG=EG, Wp=Wp)

  def call(single_buffer_invariants):
    def const_spec(shape):
      if single_buffer_invariants:
        return pl.BlockSpec(shape, lambda b: (0,) * len(shape),
                            pipeline_mode=pl.Buffered(1))
      return pl.BlockSpec(shape, lambda b: (0,) * len(shape))

    return pl.pallas_call(
        kernel,
        out_shape=jax.ShapeDtypeStruct((N * Cp, Pq), jnp.float32),
        grid=(N // Nb,),
        in_specs=[
            const_spec((Cp, 9 * Cp)),                       # w1 taps (resident)
            const_spec((Cp, 1)),                            # b1
            const_spec((Cp, 9 * Cp)),                       # w2 taps (resident)
            const_spec((Cp, 1)),                            # b2
            const_spec((1, Nb * Pq)),                       # interior mask
            pl.BlockSpec((Nb * Cp, Pe), lambda b: (b, 0)),  # guarded input
        ],
        out_specs=pl.BlockSpec((Nb * Cp, Pq), lambda b: (b, 0)),
        scratch_shapes=[
            pltpu.VMEM((9 * Cp, Nb * Pq), jnp.bfloat16),    # im2col buffer
            pltpu.VMEM((Cp, Nb * Pe), jnp.bfloat16),        # conv1 out + guards
        ],
        compiler_params=pltpu.CompilerParams(
            dimension_semantics=("parallel",),              # shards across TCs
            vmem_limit_bytes=64 * 1024 * 1024),
    )(w1t, b1c, w2t, b2c, mask, xe)

  try:
    out_pad = call(True)
  except Exception:
    # pl.Buffered(1) single-buffering not supported on this build; fall back
    # to default double-buffered invariant inputs (correctness unchanged).
    out_pad = call(False)

  # Drop padded channels, lane padding and the padded-frame border.
  out = out_pad.reshape(N, Cp, Pq)[:, :C, :Pp].reshape(N, C, Hp, Wp)
  return out[:, :, 1:H + 1, 1:W + 1]


def fold_bn(w, b, gamma, beta, mean, var, eps=1e-5):
  """Fold eval-mode BatchNorm2d into the preceding conv's weight/bias."""
  scale = gamma / jnp.sqrt(var + eps)
  return w * scale[:, None, None, None], (b - mean) * scale + beta


def reference(x, w1f, b1f, w2f, b2f):
  """Pure-JAX reference with the same folded parameters (f32, HIGHEST precision)."""
  dn = ("NCHW", "OIHW", "NCHW")
  y = jax.lax.conv_general_dilated(
      x, w1f, (1, 1), "SAME", dimension_numbers=dn,
      precision=jax.lax.Precision.HIGHEST)
  y = jnp.maximum(y + b1f[None, :, None, None], 0.0)
  y = jax.lax.conv_general_dilated(
      y, w2f, (1, 1), "SAME", dimension_numbers=dn,
      precision=jax.lax.Precision.HIGHEST)
  y = y + b2f[None, :, None, None]
  return jnp.maximum(x + y, 0.0)


if __name__ == "__main__":
  N, C, H, W = 2, 4, 16, 16
  key = jax.random.PRNGKey(0)
  ks = jax.random.split(key, 13)

  x = jax.random.normal(ks[0], (N, C, H, W), jnp.float32)

  # Conv parameters (kaiming-uniform-ish, deterministic).
  fan_in = C * 3 * 3
  bound = 1.0 / (fan_in ** 0.5)
  w1 = jax.random.uniform(ks[1], (C, C, 3, 3), jnp.float32, -bound, bound)
  bc1 = jax.random.uniform(ks[2], (C,), jnp.float32, -bound, bound)
  w2 = jax.random.uniform(ks[3], (C, C, 3, 3), jnp.float32, -bound, bound)
  bc2 = jax.random.uniform(ks[4], (C,), jnp.float32, -bound, bound)

  # BatchNorm parameters (eval-mode running stats), nontrivial but deterministic.
  g1 = jax.random.uniform(ks[5], (C,), jnp.float32, 0.5, 1.5)
  be1 = jax.random.uniform(ks[6], (C,), jnp.float32, -0.2, 0.2)
  m1 = jax.random.uniform(ks[7], (C,), jnp.float32, -0.2, 0.2)
  v1 = jax.random.uniform(ks[8], (C,), jnp.float32, 0.5, 1.5)
  g2 = jax.random.uniform(ks[9], (C,), jnp.float32, 0.5, 1.5)
  be2 = jax.random.uniform(ks[10], (C,), jnp.float32, -0.2, 0.2)
  m2 = jax.random.uniform(ks[11], (C,), jnp.float32, -0.2, 0.2)
  v2 = jax.random.uniform(ks[12], (C,), jnp.float32, 0.5, 1.5)

  w1f, b1f = fold_bn(w1, bc1, g1, be1, m1, v1)
  w2f, b2f = fold_bn(w2, bc2, g2, be2, m2, v2)

  out = residual_block(x, w1f, b1f, w2f, b2f)
  out = jax.block_until_ready(out)

  ref = reference(x, w1f, b1f, w2f, b2f)
  assert out.shape == (N, C, H, W) and out.dtype == jnp.float32
  # Tolerance accommodates bf16 MXU operands (f32 accumulation); any
  # structural bug (wrong tap offset / missing border mask / bias / residual)
  # produces errors >= 1e-1.
  assert jnp.allclose(out, ref, atol=3e-2, rtol=3e-2), (
      float(jnp.max(jnp.abs(out - ref))))

  print("KERNEL_OK")
</pallas_src>

<mosaic_0001>
module attributes {stable_mosaic.version = 11 : i64} {
  func.func @_residual_block_kernel(%arg0: i32, %arg1: memref<16x144xbf16, #tpu.memory_space<vmem>>, %arg2: memref<16x1xf32, #tpu.memory_space<vmem>>, %arg3: memref<16x144xbf16, #tpu.memory_space<vmem>>, %arg4: memref<16x1xf32, #tpu.memory_space<vmem>>, %arg5: memref<1x768xf32, #tpu.memory_space<vmem>>, %arg6: memref<32x640xf32, #tpu.memory_space<vmem>>, %arg7: memref<32x384xf32, #tpu.memory_space<vmem>>, %arg8: memref<144x768xbf16, #tpu.memory_space<vmem>>, %arg9: memref<16x1280xbf16, #tpu.memory_space<vmem>>) attributes {dimension_semantics = [#tpu.dimension_semantics<parallel>], iteration_bounds = array<i64: 1>, scalar_prefetch = 0 : i64, scratch_operands = 2 : i64, tpu.core_type = #tpu.core_type<tc>, window_params = [{pipeline_mode = #tpu.pipeline_mode<synchronous>, transform_indices = @transform_0, window_bounds = array<i64: 16, 144>}, {pipeline_mode = #tpu.pipeline_mode<synchronous>, transform_indices = @transform_1, window_bounds = array<i64: 16, 1>}, {pipeline_mode = #tpu.pipeline_mode<synchronous>, transform_indices = @transform_2, window_bounds = array<i64: 16, 144>}, {pipeline_mode = #tpu.pipeline_mode<synchronous>, transform_indices = @transform_3, window_bounds = array<i64: 16, 1>}, {pipeline_mode = #tpu.pipeline_mode<synchronous>, transform_indices = @transform_4, window_bounds = array<i64: 1, 768>}, {transform_indices = @transform_5, window_bounds = array<i64: 32, 640>}, {transform_indices = @transform_6, window_bounds = array<i64: 32, 384>}]} {
    %c0 = arith.constant 0 : index
    %c0_0 = arith.constant 0 : index
    %0 = vector.load %arg5[%c0, %c0_0] : memref<1x768xf32, #tpu.memory_space<vmem>>, vector<1x768xf32>
    %c0_1 = arith.constant 0 : index
    %c109 = arith.constant 109 : index
    %1 = vector.load %arg6[%c0_1, %c109] : memref<32x640xf32, #tpu.memory_space<vmem>>, vector<16x384xf32>
    %2 = arith.truncf %1 : vector<16x384xf32> to vector<16x384xbf16>
    %c0_2 = arith.constant 0 : index
    %c0_3 = arith.constant 0 : index
    %3 = vector.load %arg8[%c0_2, %c0_3] : memref<144x768xbf16, #tpu.memory_space<vmem>>, vector<16x384xbf16>
    tpu.vector_store %arg8[%c0_2, %c0_3], %2 {strides = array<i32>} : memref<144x768xbf16, #tpu.memory_space<vmem>>, vector<16x384xbf16>,
    %c0_4 = arith.constant 0 : index
    %c110 = arith.constant 110 : index
    %4 = vector.load %arg6[%c0_4, %c110] : memref<32x640xf32, #tpu.memory_space<vmem>>, vector<16x384xf32>
    %5 = arith.truncf %4 : vector<16x384xf32> to vector<16x384xbf16>
    %c16 = arith.constant 16 : index
    %c0_5 = arith.constant 0 : index
    %6 = vector.load %arg8[%c16, %c0_5] : memref<144x768xbf16, #tpu.memory_space<vmem>>, vector<16x384xbf16>
    tpu.vector_store %arg8[%c16, %c0_5], %5 {strides = array<i32>} : memref<144x768xbf16, #tpu.memory_space<vmem>>, vector<16x384xbf16>,
    %c0_6 = arith.constant 0 : index
    %c111 = arith.constant 111 : index
    %7 = vector.load %arg6[%c0_6, %c111] : memref<32x640xf32, #tpu.memory_space<vmem>>, vector<16x384xf32>
    %8 = arith.truncf %7 : vector<16x384xf32> to vector<16x384xbf16>
    %c32 = arith.constant 32 : index
    %c0_7 = arith.constant 0 : index
    %9 = vector.load %arg8[%c32, %c0_7] : memref<144x768xbf16, #tpu.memory_space<vmem>>, vector<16x384xbf16>
    tpu.vector_store %arg8[%c32, %c0_7], %8 {strides = array<i32>} : memref<144x768xbf16, #tpu.memory_space<vmem>>, vector<16x384xbf16>,
    %c0_8 = arith.constant 0 : index
    %c127 = arith.constant 127 : index
    %10 = vector.load %arg6[%c0_8, %c127] : memref<32x640xf32, #tpu.memory_space<vmem>>, vector<16x384xf32>
    %11 = arith.truncf %10 : vector<16x384xf32> to vector<16x384xbf16>
    %c48 = arith.constant 48 : index
    %c0_9 = arith.constant 0 : index
    %12 = vector.load %arg8[%c48, %c0_9] : memref<144x768xbf16, #tpu.memory_space<vmem>>, vector<16x384xbf16>
    tpu.vector_store %arg8[%c48, %c0_9], %11 {strides = array<i32>} : memref<144x768xbf16, #tpu.memory_space<vmem>>, vector<16x384xbf16>,
    %c0_10 = arith.constant 0 : index
    %c128 = arith.constant 128 : index
    %13 = vector.load %arg6[%c0_10, %c128] : memref<32x640xf32, #tpu.memory_space<vmem>>, vector<16x384xf32>
    %14 = arith.truncf %13 : vector<16x384xf32> to vector<16x384xbf16>
    %c64 = arith.constant 64 : index
    %c0_11 = arith.constant 0 : index
    %15 = vector.load %arg8[%c64, %c0_11] : memref<144x768xbf16, #tpu.memory_space<vmem>>, vector<16x384xbf16>
    tpu.vector_store %arg8[%c64, %c0_11], %14 {strides = array<i32>} : memref<144x768xbf16, #tpu.memory_space<vmem>>, vector<16x384xbf16>,
    %c0_12 = arith.constant 0 : index
    %c129 = arith.constant 129 : index
    %16 = vector.load %arg6[%c0_12, %c129] : memref<32x640xf32, #tpu.memory_space<vmem>>, vector<16x384xf32>
    %17 = arith.truncf %16 : vector<16x384xf32> to vector<16x384xbf16>
    %c80 = arith.constant 80 : index
    %c0_13 = arith.constant 0 : index
    %18 = vector.load %arg8[%c80, %c0_13] : memref<144x768xbf16, #tpu.memory_space<vmem>>, vector<16x384xbf16>
    tpu.vector_store %arg8[%c80, %c0_13], %17 {strides = array<i32>} : memref<144x768xbf16, #tpu.memory_space<vmem>>, vector<16x384xbf16>,
    %c0_14 = arith.constant 0 : index
    %c145 = arith.constant 145 : index
    %19 = vector.load %arg6[%c0_14, %c145] : memref<32x640xf32, #tpu.memory_space<vmem>>, vector<16x384xf32>
    %20 = arith.truncf %19 : vector<16x384xf32> to vector<16x384xbf16>
    %c96 = arith.constant 96 : index
    %c0_15 = arith.constant 0 : index
    %21 = vector.load %arg8[%c96, %c0_15] : memref<144x768xbf16, #tpu.memory_space<vmem>>, vector<16x384xbf16>
    tpu.vector_store %arg8[%c96, %c0_15], %20 {strides = array<i32>} : memref<144x768xbf16, #tpu.memory_space<vmem>>, vector<16x384xbf16>,
    %c0_16 = arith.constant 0 : index
    %c146 = arith.constant 146 : index
    %22 = vector.load %arg6[%c0_16, %c146] : memref<32x640xf32, #tpu.memory_space<vmem>>, vector<16x384xf32>
    %23 = arith.truncf %22 : vector<16x384xf32> to vector<16x384xbf16>
    %c112 = arith.constant 112 : index
    %c0_17 = arith.constant 0 : index
    %24 = vector.load %arg8[%c112, %c0_17] : memref<144x768xbf16, #tpu.memory_space<vmem>>, vector<16x384xbf16>
    tpu.vector_store %arg8[%c112, %c0_17], %23 {strides = array<i32>} : memref<144x768xbf16, #tpu.memory_space<vmem>>, vector<16x384xbf16>,
    %c0_18 = arith.constant 0 : index
    %c147 = arith.constant 147 : index
    %25 = vector.load %arg6[%c0_18, %c147] : memref<32x640xf32, #tpu.memory_space<vmem>>, vector<16x384xf32>
    %26 = arith.truncf %25 : vector<16x384xf32> to vector<16x384xbf16>
    %c128_19 = arith.constant 128 : index
    %c0_20 = arith.constant 0 : index
    %27 = vector.load %arg8[%c128_19, %c0_20] : memref<144x768xbf16, #tpu.memory_space<vmem>>, vector<16x384xbf16>
    tpu.vector_store %arg8[%c128_19, %c0_20], %26 {strides = array<i32>} : memref<144x768xbf16, #tpu.memory_space<vmem>>, vector<16x384xbf16>,
    %c16_21 = arith.constant 16 : index
    %c109_22 = arith.constant 109 : index
    %28 = vector.load %arg6[%c16_21, %c109_22] : memref<32x640xf32, #tpu.memory_space<vmem>>, vector<16x384xf32>
    %29 = arith.truncf %28 : vector<16x384xf32> to vector<16x384xbf16>
    %c0_23 = arith.constant 0 : index
    %c384 = arith.constant 384 : index
    %30 = vector.load %arg8[%c0_23, %c384] : memref<144x768xbf16, #tpu.memory_space<vmem>>, vector<16x384xbf16>
    tpu.vector_store %arg8[%c0_23, %c384], %29 {strides = array<i32>} : memref<144x768xbf16, #tpu.memory_space<vmem>>, vector<16x384xbf16>,
    %c16_24 = arith.constant 16 : index
    %c110_25 = arith.constant 110 : index
    %31 = vector.load %arg6[%c16_24, %c110_25] : memref<32x640xf32, #tpu.memory_space<vmem>>, vector<16x384xf32>
    %32 = arith.truncf %31 : vector<16x384xf32> to vector<16x384xbf16>
    %c16_26 = arith.constant 16 : index
    %c384_27 = arith.constant 384 : index
    %33 = vector.load %arg8[%c16_26, %c384_27] : memref<144x768xbf16, #tpu.memory_space<vmem>>, vector<16x384xbf16>
    tpu.vector_store %arg8[%c16_26, %c384_27], %32 {strides = array<i32>} : memref<144x768xbf16, #tpu.memory_space<vmem>>, vector<16x384xbf16>,
    %c16_28 = arith.constant 16 : index
    %c111_29 = arith.constant 111 : index
    %34 = vector.load %arg6[%c16_28, %c111_29] : memref<32x640xf32, #tpu.memory_space<vmem>>, vector<16x384xf32>
    %35 = arith.truncf %34 : vector<16x384xf32> to vector<16x384xbf16>
    %c32_30 = arith.constant 32 : index
    %c384_31 = arith.constant 384 : index
    %36 = vector.load %arg8[%c32_30, %c384_31] : memref<144x768xbf16, #tpu.memory_space<vmem>>, vector<16x384xbf16>
    tpu.vector_store %arg8[%c32_30, %c384_31], %35 {strides = array<i32>} : memref<144x768xbf16, #tpu.memory_space<vmem>>, vector<16x384xbf16>,
    %c16_32 = arith.constant 16 : index
    %c127_33 = arith.constant 127 : index
    %37 = vector.load %arg6[%c16_32, %c127_33] : memref<32x640xf32, #tpu.memory_space<vmem>>, vector<16x384xf32>
    %38 = arith.truncf %37 : vector<16x384xf32> to vector<16x384xbf16>
    %c48_34 = arith.constant 48 : index
    %c384_35 = arith.constant 384 : index
    %39 = vector.load %arg8[%c48_34, %c384_35] : memref<144x768xbf16, #tpu.memory_space<vmem>>, vector<16x384xbf16>
    tpu.vector_store %arg8[%c48_34, %c384_35], %38 {strides = array<i32>} : memref<144x768xbf16, #tpu.memory_space<vmem>>, vector<16x384xbf16>,
    %c16_36 = arith.constant 16 : index
    %c128_37 = arith.constant 128 : index
    %40 = vector.load %arg6[%c16_36, %c128_37] : memref<32x640xf32, #tpu.memory_space<vmem>>, vector<16x384xf32>
    %41 = arith.truncf %40 : vector<16x384xf32> to vector<16x384xbf16>
    %c64_38 = arith.constant 64 : index
    %c384_39 = arith.constant 384 : index
    %42 = vector.load %arg8[%c64_38, %c384_39] : memref<144x768xbf16, #tpu.memory_space<vmem>>, vector<16x384xbf16>
    tpu.vector_store %arg8[%c64_38, %c384_39], %41 {strides = array<i32>} : memref<144x768xbf16, #tpu.memory_space<vmem>>, vector<16x384xbf16>,
    %c16_40 = arith.constant 16 : index
    %c129_41 = arith.constant 129 : index
    %43 = vector.load %arg6[%c16_40, %c129_41] : memref<32x640xf32, #tpu.memory_space<vmem>>, vector<16x384xf32>
    %44 = arith.truncf %43 : vector<16x384xf32> to vector<16x384xbf16>
    %c80_42 = arith.constant 80 : index
    %c384_43 = arith.constant 384 : index
    %45 = vector.load %arg8[%c80_42, %c384_43] : memref<144x768xbf16, #tpu.memory_space<vmem>>, vector<16x384xbf16>
    tpu.vector_store %arg8[%c80_42, %c384_43], %44 {strides = array<i32>} : memref<144x768xbf16, #tpu.memory_space<vmem>>, vector<16x384xbf16>,
    %c16_44 = arith.constant 16 : index
    %c145_45 = arith.constant 145 : index
    %46 = vector.load %arg6[%c16_44, %c145_45] : memref<32x640xf32, #tpu.memory_space<vmem>>, vector<16x384xf32>
    %47 = arith.truncf %46 : vector<16x384xf32> to vector<16x384xbf16>
    %c96_46 = arith.constant 96 : index
    %c384_47 = arith.constant 384 : index
    %48 = vector.load %arg8[%c96_46, %c384_47] : memref<144x768xbf16, #tpu.memory_space<vmem>>, vector<16x384xbf16>
    tpu.vector_store %arg8[%c96_46, %c384_47], %47 {strides = array<i32>} : memref<144x768xbf16, #tpu.memory_space<vmem>>, vector<16x384xbf16>,
    %c16_48 = arith.constant 16 : index
    %c146_49 = arith.constant 146 : index
    %49 = vector.load %arg6[%c16_48, %c146_49] : memref<32x640xf32, #tpu.memory_space<vmem>>, vector<16x384xf32>
    %50 = arith.truncf %49 : vector<16x384xf32> to vector<16x384xbf16>
    %c112_50 = arith.constant 112 : index
    %c384_51 = arith.constant 384 : index
    %51 = vector.load %arg8[%c112_50, %c384_51] : memref<144x768xbf16, #tpu.memory_space<vmem>>, vector<16x384xbf16>
    tpu.vector_store %arg8[%c112_50, %c384_51], %50 {strides = array<i32>} : memref<144x768xbf16, #tpu.memory_space<vmem>>, vector<16x384xbf16>,
    %c16_52 = arith.constant 16 : index
    %c147_53 = arith.constant 147 : index
    %52 = vector.load %arg6[%c16_52, %c147_53] : memref<32x640xf32, #tpu.memory_space<vmem>>, vector<16x384xf32>
    %53 = arith.truncf %52 : vector<16x384xf32> to vector<16x384xbf16>
    %c128_54 = arith.constant 128 : index
    %c384_55 = arith.constant 384 : index
    %54 = vector.load %arg8[%c128_54, %c384_55] : memref<144x768xbf16, #tpu.memory_space<vmem>>, vector<16x384xbf16>
    tpu.vector_store %arg8[%c128_54, %c384_55], %53 {strides = array<i32>} : memref<144x768xbf16, #tpu.memory_space<vmem>>, vector<16x384xbf16>,
    %c0_56 = arith.constant 0 : index
    %c0_57 = arith.constant 0 : index
    %55 = vector.load %arg1[%c0_56, %c0_57] : memref<16x144xbf16, #tpu.memory_space<vmem>>, vector<16x144xbf16>
    %c0_58 = arith.constant 0 : index
    %c0_59 = arith.constant 0 : index
    %56 = vector.load %arg8[%c0_58, %c0_59] : memref<144x768xbf16, #tpu.memory_space<vmem>>, vector<144x768xbf16>
    %cst = arith.constant dense<0.000000e+00> : vector<16x768xf32>
    %57 = tpu.matmul %55, %56, %cst {dimension_numbers = #tpu.dot_dimension_numbers<[1], [0], [0], [1], [0, 0, 1, 1], [], []>} : vector<16x144xbf16>, vector<144x768xbf16>, vector<16x768xf32> -> vector<16x768xf32>
    %c0_60 = arith.constant 0 : index
    %c0_61 = arith.constant 0 : index
    %58 = vector.load %arg2[%c0_60, %c0_61] : memref<16x1xf32, #tpu.memory_space<vmem>>, vector<16x1xf32>
    %59 = vector.broadcast %58 : vector<16x1xf32> to vector<16x768xf32>
    %60 = arith.addf %57, %59 : vector<16x768xf32>
    %cst_62 = arith.constant 0.000000e+00 : f32
    %61 = vector.broadcast %cst_62 : f32 to vector<16x768xf32>
    %62 = arith.maximumf %60, %61 : vector<16x768xf32>
    %63 = vector.broadcast %0 : vector<1x768xf32> to vector<16x768xf32>
    %64 = arith.mulf %62, %63 : vector<16x768xf32>
    %65 = arith.truncf %64 : vector<16x768xf32> to vector<16x768xbf16>
    %cst_63 = arith.constant 0.000000e+00 : bf16
    %66 = vector.broadcast %cst_63 : bf16 to vector<16x128xbf16>
    %c0_64 = arith.constant 0 : index
    %c0_65 = arith.constant 0 : index
    %67 = vector.load %arg9[%c0_64, %c0_65] : memref<16x1280xbf16, #tpu.memory_space<vmem>>, vector<16x128xbf16>
    tpu.vector_store %arg9[%c0_64, %c0_65], %66 {strides = array<i32>} : memref<16x1280xbf16, #tpu.memory_space<vmem>>, vector<16x128xbf16>,
    %cst_66 = arith.constant 0.000000e+00 : bf16
    %68 = vector.broadcast %cst_66 : bf16 to vector<16x128xbf16>
    %c0_67 = arith.constant 0 : index
    %c512 = arith.constant 512 : index
    %69 = vector.load %arg9[%c0_67, %c512] : memref<16x1280xbf16, #tpu.memory_space<vmem>>, vector<16x128xbf16>
    tpu.vector_store %arg9[%c0_67, %c512], %68 {strides = array<i32>} : memref<16x1280xbf16, #tpu.memory_space<vmem>>, vector<16x128xbf16>,
    %70 = vector.extract_strided_slice %65 {offsets = [0, 0], sizes = [16, 384], strides = [1, 1]} : vector<16x768xbf16> to vector<16x384xbf16>
    %c0_68 = arith.constant 0 : index
    %c128_69 = arith.constant 128 : index
    %71 = vector.load %arg9[%c0_68, %c128_69] : memref<16x1280xbf16, #tpu.memory_space<vmem>>, vector<16x384xbf16>
    tpu.vector_store %arg9[%c0_68, %c128_69], %70 {strides = array<i32>} : memref<16x1280xbf16, #tpu.memory_space<vmem>>, vector<16x384xbf16>,
    %cst_70 = arith.constant 0.000000e+00 : bf16
    %72 = vector.broadcast %cst_70 : bf16 to vector<16x128xbf16>
    %c0_71 = arith.constant 0 : index
    %c640 = arith.constant 640 : index
    %73 = vector.load %arg9[%c0_71, %c640] : memref<16x1280xbf16, #tpu.memory_space<vmem>>, vector<16x128xbf16>
    tpu.vector_store %arg9[%c0_71, %c640], %72 {strides = array<i32>} : memref<16x1280xbf16, #tpu.memory_space<vmem>>, vector<16x128xbf16>,
    %cst_72 = arith.constant 0.000000e+00 : bf16
    %74 = vector.broadcast %cst_72 : bf16 to vector<16x128xbf16>
    %c0_73 = arith.constant 0 : index
    %c1152 = arith.constant 1152 : index
    %75 = vector.load %arg9[%c0_73, %c1152] : memref<16x1280xbf16, #tpu.memory_space<vmem>>, vector<16x128xbf16>
    tpu.vector_store %arg9[%c0_73, %c1152], %74 {strides = array<i32>} : memref<16x1280xbf16, #tpu.memory_space<vmem>>, vector<16x128xbf16>,
    %76 = vector.extract_strided_slice %65 {offsets = [0, 384], sizes = [16, 384], strides = [1, 1]} : vector<16x768xbf16> to vector<16x384xbf16>
    %c0_74 = arith.constant 0 : index
    %c768 = arith.constant 768 : index
    %77 = vector.load %arg9[%c0_74, %c768] : memref<16x1280xbf16, #tpu.memory_space<vmem>>, vector<16x384xbf16>
    tpu.vector_store %arg9[%c0_74, %c768], %76 {strides = array<i32>} : memref<16x1280xbf16, #tpu.memory_space<vmem>>, vector<16x384xbf16>,
    %c0_75 = arith.constant 0 : index
    %c109_76 = arith.constant 109 : index
    %78 = vector.load %arg9[%c0_75, %c109_76] : memref<16x1280xbf16, #tpu.memory_space<vmem>>, vector<16x384xbf16>
    %c0_77 = arith.constant 0 : index
    %c0_78 = arith.constant 0 : index
    %79 = vector.load %arg8[%c0_77, %c0_78] : memref<144x768xbf16, #tpu.memory_space<vmem>>, vector<16x384xbf16>
    tpu.vector_store %arg8[%c0_77, %c0_78], %78 {strides = array<i32>} : memref<144x768xbf16, #tpu.memory_space<vmem>>, vector<16x384xbf16>,
    %c0_79 = arith.constant 0 : index
    %c110_80 = arith.constant 110 : index
    %80 = vector.load %arg9[%c0_79, %c110_80] : memref<16x1280xbf16, #tpu.memory_space<vmem>>, vector<16x384xbf16>
    %c16_81 = arith.constant 16 : index
    %c0_82 = arith.constant 0 : index
    %81 = vector.load %arg8[%c16_81, %c0_82] : memref<144x768xbf16, #tpu.memory_space<vmem>>, vector<16x384xbf16>
    tpu.vector_store %arg8[%c16_81, %c0_82], %80 {strides = array<i32>} : memref<144x768xbf16, #tpu.memory_space<vmem>>, vector<16x384xbf16>,
    %c0_83 = arith.constant 0 : index
    %c111_84 = arith.constant 111 : index
    %82 = vector.load %arg9[%c0_83, %c111_84] : memref<16x1280xbf16, #tpu.memory_space<vmem>>, vector<16x384xbf16>
    %c32_85 = arith.constant 32 : index
    %c0_86 = arith.constant 0 : index
    %83 = vector.load %arg8[%c32_85, %c0_86] : memref<144x768xbf16, #tpu.memory_space<vmem>>, vector<16x384xbf16>
    tpu.vector_store %arg8[%c32_85, %c0_86], %82 {strides = array<i32>} : memref<144x768xbf16, #tpu.memory_space<vmem>>, vector<16x384xbf16>,
    %c0_87 = arith.constant 0 : index
    %c127_88 = arith.constant 127 : index
    %84 = vector.load %arg9[%c0_87, %c127_88] : memref<16x1280xbf16, #tpu.memory_space<vmem>>, vector<16x384xbf16>
    %c48_89 = arith.constant 48 : index
    %c0_90 = arith.constant 0 : index
    %85 = vector.load %arg8[%c48_89, %c0_90] : memref<144x768xbf16, #tpu.memory_space<vmem>>, vector<16x384xbf16>
    tpu.vector_store %arg8[%c48_89, %c0_90], %84 {strides = array<i32>} : memref<144x768xbf16, #tpu.memory_space<vmem>>, vector<16x384xbf16>,
    %c0_91 = arith.constant 0 : index
    %c128_92 = arith.constant 128 : index
    %86 = vector.load %arg9[%c0_91, %c128_92] : memref<16x1280xbf16, #tpu.memory_space<vmem>>, vector<16x384xbf16>
    %c64_93 = arith.constant 64 : index
    %c0_94 = arith.constant 0 : index
    %87 = vector.load %arg8[%c64_93, %c0_94] : memref<144x768xbf16, #tpu.memory_space<vmem>>, vector<16x384xbf16>
    tpu.vector_store %arg8[%c64_93, %c0_94], %86 {strides = array<i32>} : memref<144x768xbf16, #tpu.memory_space<vmem>>, vector<16x384xbf16>,
    %c0_95 = arith.constant 0 : index
    %c129_96 = arith.constant 129 : index
    %88 = vector.load %arg9[%c0_95, %c129_96] : memref<16x1280xbf16, #tpu.memory_space<vmem>>, vector<16x384xbf16>
    %c80_97 = arith.constant 80 : index
    %c0_98 = arith.constant 0 : index
    %89 = vector.load %arg8[%c80_97, %c0_98] : memref<144x768xbf16, #tpu.memory_space<vmem>>, vector<16x384xbf16>
    tpu.vector_store %arg8[%c80_97, %c0_98], %88 {strides = array<i32>} : memref<144x768xbf16, #tpu.memory_space<vmem>>, vector<16x384xbf16>,
    %c0_99 = arith.constant 0 : index
    %c145_100 = arith.constant 145 : index
    %90 = vector.load %arg9[%c0_99, %c145_100] : memref<16x1280xbf16, #tpu.memory_space<vmem>>, vector<16x384xbf16>
    %c96_101 = arith.constant 96 : index
    %c0_102 = arith.constant 0 : index
    %91 = vector.load %arg8[%c96_101, %c0_102] : memref<144x768xbf16, #tpu.memory_space<vmem>>, vector<16x384xbf16>
    tpu.vector_store %arg8[%c96_101, %c0_102], %90 {strides = array<i32>} : memref<144x768xbf16, #tpu.memory_space<vmem>>, vector<16x384xbf16>,
    %c0_103 = arith.constant 0 : index
    %c146_104 = arith.constant 146 : index
    %92 = vector.load %arg9[%c0_103, %c146_104] : memref<16x1280xbf16, #tpu.memory_space<vmem>>, vector<16x384xbf16>
    %c112_105 = arith.constant 112 : index
    %c0_106 = arith.constant 0 : index
    %93 = vector.load %arg8[%c112_105, %c0_106] : memref<144x768xbf16, #tpu.memory_space<vmem>>, vector<16x384xbf16>
    tpu.vector_store %arg8[%c112_105, %c0_106], %92 {strides = array<i32>} : memref<144x768xbf16, #tpu.memory_space<vmem>>, vector<16x384xbf16>,
    %c0_107 = arith.constant 0 : index
    %c147_108 = arith.constant 147 : index
    %94 = vector.load %arg9[%c0_107, %c147_108] : memref<16x1280xbf16, #tpu.memory_space<vmem>>, vector<16x384xbf16>
    %c128_109 = arith.constant 128 : index
    %c0_110 = arith.constant 0 : index
    %95 = vector.load %arg8[%c128_109, %c0_110] : memref<144x768xbf16, #tpu.memory_space<vmem>>, vector<16x384xbf16>
    tpu.vector_store %arg8[%c128_109, %c0_110], %94 {strides = array<i32>} : memref<144x768xbf16, #tpu.memory_space<vmem>>, vector<16x384xbf16>,
    %c0_111 = arith.constant 0 : index
    %c749 = arith.constant 749 : index
    %96 = vector.load %arg9[%c0_111, %c749] : memref<16x1280xbf16, #tpu.memory_space<vmem>>, vector<16x384xbf16>
    %c0_112 = arith.constant 0 : index
    %c384_113 = arith.constant 384 : index
    %97 = vector.load %arg8[%c0_112, %c384_113] : memref<144x768xbf16, #tpu.memory_space<vmem>>, vector<16x384xbf16>
    tpu.vector_store %arg8[%c0_112, %c384_113], %96 {strides = array<i32>} : memref<144x768xbf16, #tpu.memory_space<vmem>>, vector<16x384xbf16>,
    %c0_114 = arith.constant 0 : index
    %c750 = arith.constant 750 : index
    %98 = vector.load %arg9[%c0_114, %c750] : memref<16x1280xbf16, #tpu.memory_space<vmem>>, vector<16x384xbf16>
    %c16_115 = arith.constant 16 : index
    %c384_116 = arith.constant 384 : index
    %99 = vector.load %arg8[%c16_115, %c384_116] : memref<144x768xbf16, #tpu.memory_space<vmem>>, vector<16x384xbf16>
    tpu.vector_store %arg8[%c16_115, %c384_116], %98 {strides = array<i32>} : memref<144x768xbf16, #tpu.memory_space<vmem>>, vector<16x384xbf16>,
    %c0_117 = arith.constant 0 : index
    %c751 = arith.constant 751 : index
    %100 = vector.load %arg9[%c0_117, %c751] : memref<16x1280xbf16, #tpu.memory_space<vmem>>, vector<16x384xbf16>
    %c32_118 = arith.constant 32 : index
    %c384_119 = arith.constant 384 : index
    %101 = vector.load %arg8[%c32_118, %c384_119] : memref<144x768xbf16, #tpu.memory_space<vmem>>, vector<16x384xbf16>
    tpu.vector_store %arg8[%c32_118, %c384_119], %100 {strides = array<i32>} : memref<144x768xbf16, #tpu.memory_space<vmem>>, vector<16x384xbf16>,
    %c0_120 = arith.constant 0 : index
    %c767 = arith.constant 767 : index
    %102 = vector.load %arg9[%c0_120, %c767] : memref<16x1280xbf16, #tpu.memory_space<vmem>>, vector<16x384xbf16>
    %c48_121 = arith.constant 48 : index
    %c384_122 = arith.constant 384 : index
    %103 = vector.load %arg8[%c48_121, %c384_122] : memref<144x768xbf16, #tpu.memory_space<vmem>>, vector<16x384xbf16>
    tpu.vector_store %arg8[%c48_121, %c384_122], %102 {strides = array<i32>} : memref<144x768xbf16, #tpu.memory_space<vmem>>, vector<16x384xbf16>,
    %c0_123 = arith.constant 0 : index
    %c768_124 = arith.constant 768 : index
    %104 = vector.load %arg9[%c0_123, %c768_124] : memref<16x1280xbf16, #tpu.memory_space<vmem>>, vector<16x384xbf16>
    %c64_125 = arith.constant 64 : index
    %c384_126 = arith.constant 384 : index
    %105 = vector.load %arg8[%c64_125, %c384_126] : memref<144x768xbf16, #tpu.memory_space<vmem>>, vector<16x384xbf16>
    tpu.vector_store %arg8[%c64_125, %c384_126], %104 {strides = array<i32>} : memref<144x768xbf16, #tpu.memory_space<vmem>>, vector<16x384xbf16>,
    %c0_127 = arith.constant 0 : index
    %c769 = arith.constant 769 : index
    %106 = vector.load %arg9[%c0_127, %c769] : memref<16x1280xbf16, #tpu.memory_space<vmem>>, vector<16x384xbf16>
    %c80_128 = arith.constant 80 : index
    %c384_129 = arith.constant 384 : index
    %107 = vector.load %arg8[%c80_128, %c384_129] : memref<144x768xbf16, #tpu.memory_space<vmem>>, vector<16x384xbf16>
    tpu.vector_store %arg8[%c80_128, %c384_129], %106 {strides = array<i32>} : memref<144x768xbf16, #tpu.memory_space<vmem>>, vector<16x384xbf16>,
    %c0_130 = arith.constant 0 : index
    %c785 = arith.constant 785 : index
    %108 = vector.load %arg9[%c0_130, %c785] : memref<16x1280xbf16, #tpu.memory_space<vmem>>, vector<16x384xbf16>
    %c96_131 = arith.constant 96 : index
    %c384_132 = arith.constant 384 : index
    %109 = vector.load %arg8[%c96_131, %c384_132] : memref<144x768xbf16, #tpu.memory_space<vmem>>, vector<16x384xbf16>
    tpu.vector_store %arg8[%c96_131, %c384_132], %108 {strides = array<i32>} : memref<144x768xbf16, #tpu.memory_space<vmem>>, vector<16x384xbf16>,
    %c0_133 = arith.constant 0 : index
    %c786 = arith.constant 786 : index
    %110 = vector.load %arg9[%c0_133, %c786] : memref<16x1280xbf16, #tpu.memory_space<vmem>>, vector<16x384xbf16>
    %c112_134 = arith.constant 112 : index
    %c384_135 = arith.constant 384 : index
    %111 = vector.load %arg8[%c112_134, %c384_135] : memref<144x768xbf16, #tpu.memory_space<vmem>>, vector<16x384xbf16>
    tpu.vector_store %arg8[%c112_134, %c384_135], %110 {strides = array<i32>} : memref<144x768xbf16, #tpu.memory_space<vmem>>, vector<16x384xbf16>,
    %c0_136 = arith.constant 0 : index
    %c787 = arith.constant 787 : index
    %112 = vector.load %arg9[%c0_136, %c787] : memref<16x1280xbf16, #tpu.memory_space<vmem>>, vector<16x384xbf16>
    %c128_137 = arith.constant 128 : index
    %c384_138 = arith.constant 384 : index
    %113 = vector.load %arg8[%c128_137, %c384_138] : memref<144x768xbf16, #tpu.memory_space<vmem>>, vector<16x384xbf16>
    tpu.vector_store %arg8[%c128_137, %c384_138], %112 {strides = array<i32>} : memref<144x768xbf16, #tpu.memory_space<vmem>>, vector<16x384xbf16>,
    %c0_139 = arith.constant 0 : index
    %c0_140 = arith.constant 0 : index
    %114 = vector.load %arg3[%c0_139, %c0_140] : memref<16x144xbf16, #tpu.memory_space<vmem>>, vector<16x144xbf16>
    %c0_141 = arith.constant 0 : index
    %c0_142 = arith.constant 0 : index
    %115 = vector.load %arg8[%c0_141, %c0_142] : memref<144x768xbf16, #tpu.memory_space<vmem>>, vector<144x768xbf16>
    %cst_143 = arith.constant dense<0.000000e+00> : vector<16x768xf32>
    %116 = tpu.matmul %114, %115, %cst_143 {dimension_numbers = #tpu.dot_dimension_numbers<[1], [0], [0], [1], [0, 0, 1, 1], [], []>} : vector<16x144xbf16>, vector<144x768xbf16>, vector<16x768xf32> -> vector<16x768xf32>
    %c0_144 = arith.constant 0 : index
    %c0_145 = arith.constant 0 : index
    %117 = vector.load %arg4[%c0_144, %c0_145] : memref<16x1xf32, #tpu.memory_space<vmem>>, vector<16x1xf32>
    %118 = vector.extract_strided_slice %116 {offsets = [0, 0], sizes = [16, 384], strides = [1, 1]} : vector<16x768xf32> to vector<16x384xf32>
    %119 = vector.broadcast %117 : vector<16x1xf32> to vector<16x384xf32>
    %120 = arith.addf %118, %119 : vector<16x384xf32>
    %c0_146 = arith.constant 0 : index
    %c128_147 = arith.constant 128 : index
    %121 = vector.load %arg6[%c0_146, %c128_147] : memref<32x640xf32, #tpu.memory_space<vmem>>, vector<16x384xf32>
    %122 = arith.addf %120, %121 : vector<16x384xf32>
    %cst_148 = arith.constant 0.000000e+00 : f32
    %123 = vector.broadcast %cst_148 : f32 to vector<16x384xf32>
    %124 = arith.maximumf %122, %123 : vector<16x384xf32>
    %c0_149 = arith.constant 0 : index
    %c0_150 = arith.constant 0 : index
    %125 = vector.load %arg7[%c0_149, %c0_150] : memref<32x384xf32, #tpu.memory_space<vmem>>, vector<16x384xf32>
    tpu.vector_store %arg7[%c0_149, %c0_150], %124 {strides = array<i32>} : memref<32x384xf32, #tpu.memory_space<vmem>>, vector<16x384xf32>,
    %126 = vector.extract_strided_slice %116 {offsets = [0, 384], sizes = [16, 384], strides = [1, 1]} : vector<16x768xf32> to vector<16x384xf32>
    %127 = vector.broadcast %117 : vector<16x1xf32> to vector<16x384xf32>
    %128 = arith.addf %126, %127 : vector<16x384xf32>
    %c16_151 = arith.constant 16 : index
    %c128_152 = arith.constant 128 : index
    %129 = vector.load %arg6[%c16_151, %c128_152] : memref<32x640xf32, #tpu.memory_space<vmem>>, vector<16x384xf32>
    %130 = arith.addf %128, %129 : vector<16x384xf32>
    %cst_153 = arith.constant 0.000000e+00 : f32
    %131 = vector.broadcast %cst_153 : f32 to vector<16x384xf32>
    %132 = arith.maximumf %130, %131 : vector<16x384xf32>
    %c16_154 = arith.constant 16 : index
    %c0_155 = arith.constant 0 : index
    %133 = vector.load %arg7[%c16_154, %c0_155] : memref<32x384xf32, #tpu.memory_space<vmem>>, vector<16x384xf32>
    tpu.vector_store %arg7[%c16_154, %c0_155], %132 {strides = array<i32>} : memref<32x384xf32, #tpu.memory_space<vmem>>, vector<16x384xf32>,
    return
  }
  func.func @transform_0(%arg0: i32) -> (i32, i32) {
    %c0_i32 = arith.constant 0 : i32
    %c0_i32_0 = arith.constant 0 : i32
    %c0_i32_1 = arith.constant 0 : i32
    return %c0_i32, %c0_i32_0 : i32, i32
  }
  func.func @transform_1(%arg0: i32) -> (i32, i32) {
    %c0_i32 = arith.constant 0 : i32
    %c0_i32_0 = arith.constant 0 : i32
    %c0_i32_1 = arith.constant 0 : i32
    return %c0_i32, %c0_i32_0 : i32, i32
  }
  func.func @transform_2(%arg0: i32) -> (i32, i32) {
    %c0_i32 = arith.constant 0 : i32
    %c0_i32_0 = arith.constant 0 : i32
    %c0_i32_1 = arith.constant 0 : i32
    return %c0_i32, %c0_i32_0 : i32, i32
  }
  func.func @transform_3(%arg0: i32) -> (i32, i32) {
    %c0_i32 = arith.constant 0 : i32
    %c0_i32_0 = arith.constant 0 : i32
    %c0_i32_1 = arith.constant 0 : i32
    return %c0_i32, %c0_i32_0 : i32, i32
  }
  func.func @transform_4(%arg0: i32) -> (i32, i32) {
    %c0_i32 = arith.constant 0 : i32
    %c0_i32_0 = arith.constant 0 : i32
    %c0_i32_1 = arith.constant 0 : i32
    return %c0_i32, %c0_i32_0 : i32, i32
  }
  func.func @transform_5(%arg0: i32) -> (i32, i32) {
    %c0_i32 = arith.constant 0 : i32
    %c0_i32_0 = arith.constant 0 : i32
    return %arg0, %c0_i32 : i32, i32
  }
  func.func @transform_6(%arg0: i32) -> (i32, i32) {
    %c0_i32 = arith.constant 0 : i32
    %c0_i32_0 = arith.constant 0 : i32
    return %arg0, %c0_i32 : i32, i32
  }
}

module attributes {stable_mosaic.version = 11 : i64} {
  func.func @_residual_block_kernel(%arg0: i32, %arg1: memref<16x144xbf16, #tpu.memory_space<vmem>>, %arg2: memref<16x1xf32, #tpu.memory_space<vmem>>, %arg3: memref<16x144xbf16, #tpu.memory_space<vmem>>, %arg4: memref<16x1xf32, #tpu.memory_space<vmem>>, %arg5: memref<1x768xf32, #tpu.memory_space<vmem>>, %arg6: memref<32x640xf32, #tpu.memory_space<vmem>>, %arg7: memref<32x384xf32, #tpu.memory_space<vmem>>, %arg8: memref<144x768xbf16, #tpu.memory_space<vmem>>, %arg9: memref<16x1280xbf16, #tpu.memory_space<vmem>>) attributes {dimension_semantics = [#tpu.dimension_semantics<parallel>], iteration_bounds = array<i64: 1>, scalar_prefetch = 0 : i64, scratch_operands = 2 : i64, tpu.core_type = #tpu.core_type<tc>, window_params = [{pipeline_mode = #tpu.pipeline_mode<synchronous>, transform_indices = @transform_0, window_bounds = array<i64: 16, 144>}, {pipeline_mode = #tpu.pipeline_mode<synchronous>, transform_indices = @transform_1, window_bounds = array<i64: 16, 1>}, {pipeline_mode = #tpu.pipeline_mode<synchronous>, transform_indices = @transform_2, window_bounds = array<i64: 16, 144>}, {pipeline_mode = #tpu.pipeline_mode<synchronous>, transform_indices = @transform_3, window_bounds = array<i64: 16, 1>}, {pipeline_mode = #tpu.pipeline_mode<synchronous>, transform_indices = @transform_4, window_bounds = array<i64: 1, 768>}, {transform_indices = @transform_5, window_bounds = array<i64: 32, 640>}, {transform_indices = @transform_6, window_bounds = array<i64: 32, 384>}]} {
    %c0 = arith.constant 0 : index
    %c0_0 = arith.constant 0 : index
    %0 = vector.load %arg5[%c0, %c0_0] : memref<1x768xf32, #tpu.memory_space<vmem>>, vector<1x768xf32>
    %c0_1 = arith.constant 0 : index
    %c109 = arith.constant 109 : index
    %1 = vector.load %arg6[%c0_1, %c109] : memref<32x640xf32, #tpu.memory_space<vmem>>, vector<16x384xf32>
    %2 = arith.truncf %1 : vector<16x384xf32> to vector<16x384xbf16>
    %c0_2 = arith.constant 0 : index
    %c0_3 = arith.constant 0 : index
    %3 = vector.load %arg8[%c0_2, %c0_3] : memref<144x768xbf16, #tpu.memory_space<vmem>>, vector<16x384xbf16>
    tpu.vector_store %arg8[%c0_2, %c0_3], %2 {strides = array<i32>} : memref<144x768xbf16, #tpu.memory_space<vmem>>, vector<16x384xbf16>,
    %c0_4 = arith.constant 0 : index
    %c110 = arith.constant 110 : index
    %4 = vector.load %arg6[%c0_4, %c110] : memref<32x640xf32, #tpu.memory_space<vmem>>, vector<16x384xf32>
    %5 = arith.truncf %4 : vector<16x384xf32> to vector<16x384xbf16>
    %c16 = arith.constant 16 : index
    %c0_5 = arith.constant 0 : index
    %6 = vector.load %arg8[%c16, %c0_5] : memref<144x768xbf16, #tpu.memory_space<vmem>>, vector<16x384xbf16>
    tpu.vector_store %arg8[%c16, %c0_5], %5 {strides = array<i32>} : memref<144x768xbf16, #tpu.memory_space<vmem>>, vector<16x384xbf16>,
    %c0_6 = arith.constant 0 : index
    %c111 = arith.constant 111 : index
    %7 = vector.load %arg6[%c0_6, %c111] : memref<32x640xf32, #tpu.memory_space<vmem>>, vector<16x384xf32>
    %8 = arith.truncf %7 : vector<16x384xf32> to vector<16x384xbf16>
    %c32 = arith.constant 32 : index
    %c0_7 = arith.constant 0 : index
    %9 = vector.load %arg8[%c32, %c0_7] : memref<144x768xbf16, #tpu.memory_space<vmem>>, vector<16x384xbf16>
    tpu.vector_store %arg8[%c32, %c0_7], %8 {strides = array<i32>} : memref<144x768xbf16, #tpu.memory_space<vmem>>, vector<16x384xbf16>,
    %c0_8 = arith.constant 0 : index
    %c127 = arith.constant 127 : index
    %10 = vector.load %arg6[%c0_8, %c127] : memref<32x640xf32, #tpu.memory_space<vmem>>, vector<16x384xf32>
    %11 = arith.truncf %10 : vector<16x384xf32> to vector<16x384xbf16>
    %c48 = arith.constant 48 : index
    %c0_9 = arith.constant 0 : index
    %12 = vector.load %arg8[%c48, %c0_9] : memref<144x768xbf16, #tpu.memory_space<vmem>>, vector<16x384xbf16>
    tpu.vector_store %arg8[%c48, %c0_9], %11 {strides = array<i32>} : memref<144x768xbf16, #tpu.memory_space<vmem>>, vector<16x384xbf16>,
    %c0_10 = arith.constant 0 : index
    %c128 = arith.constant 128 : index
    %13 = vector.load %arg6[%c0_10, %c128] : memref<32x640xf32, #tpu.memory_space<vmem>>, vector<16x384xf32>
    %14 = arith.truncf %13 : vector<16x384xf32> to vector<16x384xbf16>
    %c64 = arith.constant 64 : index
    %c0_11 = arith.constant 0 : index
    %15 = vector.load %arg8[%c64, %c0_11] : memref<144x768xbf16, #tpu.memory_space<vmem>>, vector<16x384xbf16>
    tpu.vector_store %arg8[%c64, %c0_11], %14 {strides = array<i32>} : memref<144x768xbf16, #tpu.memory_space<vmem>>, vector<16x384xbf16>,
    %c0_12 = arith.constant 0 : index
    %c129 = arith.constant 129 : index
    %16 = vector.load %arg6[%c0_12, %c129] : memref<32x640xf32, #tpu.memory_space<vmem>>, vector<16x384xf32>
    %17 = arith.truncf %16 : vector<16x384xf32> to vector<16x384xbf16>
    %c80 = arith.constant 80 : index
    %c0_13 = arith.constant 0 : index
    %18 = vector.load %arg8[%c80, %c0_13] : memref<144x768xbf16, #tpu.memory_space<vmem>>, vector<16x384xbf16>
    tpu.vector_store %arg8[%c80, %c0_13], %17 {strides = array<i32>} : memref<144x768xbf16, #tpu.memory_space<vmem>>, vector<16x384xbf16>,
    %c0_14 = arith.constant 0 : index
    %c145 = arith.constant 145 : index
    %19 = vector.load %arg6[%c0_14, %c145] : memref<32x640xf32, #tpu.memory_space<vmem>>, vector<16x384xf32>
    %20 = arith.truncf %19 : vector<16x384xf32> to vector<16x384xbf16>
    %c96 = arith.constant 96 : index
    %c0_15 = arith.constant 0 : index
    %21 = vector.load %arg8[%c96, %c0_15] : memref<144x768xbf16, #tpu.memory_space<vmem>>, vector<16x384xbf16>
    tpu.vector_store %arg8[%c96, %c0_15], %20 {strides = array<i32>} : memref<144x768xbf16, #tpu.memory_space<vmem>>, vector<16x384xbf16>,
    %c0_16 = arith.constant 0 : index
    %c146 = arith.constant 146 : index
    %22 = vector.load %arg6[%c0_16, %c146] : memref<32x640xf32, #tpu.memory_space<vmem>>, vector<16x384xf32>
    %23 = arith.truncf %22 : vector<16x384xf32> to vector<16x384xbf16>
    %c112 = arith.constant 112 : index
    %c0_17 = arith.constant 0 : index
    %24 = vector.load %arg8[%c112, %c0_17] : memref<144x768xbf16, #tpu.memory_space<vmem>>, vector<16x384xbf16>
    tpu.vector_store %arg8[%c112, %c0_17], %23 {strides = array<i32>} : memref<144x768xbf16, #tpu.memory_space<vmem>>, vector<16x384xbf16>,
    %c0_18 = arith.constant 0 : index
    %c147 = arith.constant 147 : index
    %25 = vector.load %arg6[%c0_18, %c147] : memref<32x640xf32, #tpu.memory_space<vmem>>, vector<16x384xf32>
    %26 = arith.truncf %25 : vector<16x384xf32> to vector<16x384xbf16>
    %c128_19 = arith.constant 128 : index
    %c0_20 = arith.constant 0 : index
    %27 = vector.load %arg8[%c128_19, %c0_20] : memref<144x768xbf16, #tpu.memory_space<vmem>>, vector<16x384xbf16>
    tpu.vector_store %arg8[%c128_19, %c0_20], %26 {strides = array<i32>} : memref<144x768xbf16, #tpu.memory_space<vmem>>, vector<16x384xbf16>,
    %c16_21 = arith.constant 16 : index
    %c109_22 = arith.constant 109 : index
    %28 = vector.load %arg6[%c16_21, %c109_22] : memref<32x640xf32, #tpu.memory_space<vmem>>, vector<16x384xf32>
    %29 = arith.truncf %28 : vector<16x384xf32> to vector<16x384xbf16>
    %c0_23 = arith.constant 0 : index
    %c384 = arith.constant 384 : index
    %30 = vector.load %arg8[%c0_23, %c384] : memref<144x768xbf16, #tpu.memory_space<vmem>>, vector<16x384xbf16>
    tpu.vector_store %arg8[%c0_23, %c384], %29 {strides = array<i32>} : memref<144x768xbf16, #tpu.memory_space<vmem>>, vector<16x384xbf16>,
    %c16_24 = arith.constant 16 : index
    %c110_25 = arith.constant 110 : index
    %31 = vector.load %arg6[%c16_24, %c110_25] : memref<32x640xf32, #tpu.memory_space<vmem>>, vector<16x384xf32>
    %32 = arith.truncf %31 : vector<16x384xf32> to vector<16x384xbf16>
    %c16_26 = arith.constant 16 : index
    %c384_27 = arith.constant 384 : index
    %33 = vector.load %arg8[%c16_26, %c384_27] : memref<144x768xbf16, #tpu.memory_space<vmem>>, vector<16x384xbf16>
    tpu.vector_store %arg8[%c16_26, %c384_27], %32 {strides = array<i32>} : memref<144x768xbf16, #tpu.memory_space<vmem>>, vector<16x384xbf16>,
    %c16_28 = arith.constant 16 : index
    %c111_29 = arith.constant 111 : index
    %34 = vector.load %arg6[%c16_28, %c111_29] : memref<32x640xf32, #tpu.memory_space<vmem>>, vector<16x384xf32>
    %35 = arith.truncf %34 : vector<16x384xf32> to vector<16x384xbf16>
    %c32_30 = arith.constant 32 : index
    %c384_31 = arith.constant 384 : index
    %36 = vector.load %arg8[%c32_30, %c384_31] : memref<144x768xbf16, #tpu.memory_space<vmem>>, vector<16x384xbf16>
    tpu.vector_store %arg8[%c32_30, %c384_31], %35 {strides = array<i32>} : memref<144x768xbf16, #tpu.memory_space<vmem>>, vector<16x384xbf16>,
    %c16_32 = arith.constant 16 : index
    %c127_33 = arith.constant 127 : index
    %37 = vector.load %arg6[%c16_32, %c127_33] : memref<32x640xf32, #tpu.memory_space<vmem>>, vector<16x384xf32>
    %38 = arith.truncf %37 : vector<16x384xf32> to vector<16x384xbf16>
    %c48_34 = arith.constant 48 : index
    %c384_35 = arith.constant 384 : index
    %39 = vector.load %arg8[%c48_34, %c384_35] : memref<144x768xbf16, #tpu.memory_space<vmem>>, vector<16x384xbf16>
    tpu.vector_store %arg8[%c48_34, %c384_35], %38 {strides = array<i32>} : memref<144x768xbf16, #tpu.memory_space<vmem>>, vector<16x384xbf16>,
    %c16_36 = arith.constant 16 : index
    %c128_37 = arith.constant 128 : index
    %40 = vector.load %arg6[%c16_36, %c128_37] : memref<32x640xf32, #tpu.memory_space<vmem>>, vector<16x384xf32>
    %41 = arith.truncf %40 : vector<16x384xf32> to vector<16x384xbf16>
    %c64_38 = arith.constant 64 : index
    %c384_39 = arith.constant 384 : index
    %42 = vector.load %arg8[%c64_38, %c384_39] : memref<144x768xbf16, #tpu.memory_space<vmem>>, vector<16x384xbf16>
    tpu.vector_store %arg8[%c64_38, %c384_39], %41 {strides = array<i32>} : memref<144x768xbf16, #tpu.memory_space<vmem>>, vector<16x384xbf16>,
    %c16_40 = arith.constant 16 : index
    %c129_41 = arith.constant 129 : index
    %43 = vector.load %arg6[%c16_40, %c129_41] : memref<32x640xf32, #tpu.memory_space<vmem>>, vector<16x384xf32>
    %44 = arith.truncf %43 : vector<16x384xf32> to vector<16x384xbf16>
    %c80_42 = arith.constant 80 : index
    %c384_43 = arith.constant 384 : index
    %45 = vector.load %arg8[%c80_42, %c384_43] : memref<144x768xbf16, #tpu.memory_space<vmem>>, vector<16x384xbf16>
    tpu.vector_store %arg8[%c80_42, %c384_43], %44 {strides = array<i32>} : memref<144x768xbf16, #tpu.memory_space<vmem>>, vector<16x384xbf16>,
    %c16_44 = arith.constant 16 : index
    %c145_45 = arith.constant 145 : index
    %46 = vector.load %arg6[%c16_44, %c145_45] : memref<32x640xf32, #tpu.memory_space<vmem>>, vector<16x384xf32>
    %47 = arith.truncf %46 : vector<16x384xf32> to vector<16x384xbf16>
    %c96_46 = arith.constant 96 : index
    %c384_47 = arith.constant 384 : index
    %48 = vector.load %arg8[%c96_46, %c384_47] : memref<144x768xbf16, #tpu.memory_space<vmem>>, vector<16x384xbf16>
    tpu.vector_store %arg8[%c96_46, %c384_47], %47 {strides = array<i32>} : memref<144x768xbf16, #tpu.memory_space<vmem>>, vector<16x384xbf16>,
    %c16_48 = arith.constant 16 : index
    %c146_49 = arith.constant 146 : index
    %49 = vector.load %arg6[%c16_48, %c146_49] : memref<32x640xf32, #tpu.memory_space<vmem>>, vector<16x384xf32>
    %50 = arith.truncf %49 : vector<16x384xf32> to vector<16x384xbf16>
    %c112_50 = arith.constant 112 : index
    %c384_51 = arith.constant 384 : index
    %51 = vector.load %arg8[%c112_50, %c384_51] : memref<144x768xbf16, #tpu.memory_space<vmem>>, vector<16x384xbf16>
    tpu.vector_store %arg8[%c112_50, %c384_51], %50 {strides = array<i32>} : memref<144x768xbf16, #tpu.memory_space<vmem>>, vector<16x384xbf16>,
    %c16_52 = arith.constant 16 : index
    %c147_53 = arith.constant 147 : index
    %52 = vector.load %arg6[%c16_52, %c147_53] : memref<32x640xf32, #tpu.memory_space<vmem>>, vector<16x384xf32>
    %53 = arith.truncf %52 : vector<16x384xf32> to vector<16x384xbf16>
    %c128_54 = arith.constant 128 : index
    %c384_55 = arith.constant 384 : index
    %54 = vector.load %arg8[%c128_54, %c384_55] : memref<144x768xbf16, #tpu.memory_space<vmem>>, vector<16x384xbf16>
    tpu.vector_store %arg8[%c128_54, %c384_55], %53 {strides = array<i32>} : memref<144x768xbf16, #tpu.memory_space<vmem>>, vector<16x384xbf16>,
    %c0_56 = arith.constant 0 : index
    %c0_57 = arith.constant 0 : index
    %55 = vector.load %arg1[%c0_56, %c0_57] : memref<16x144xbf16, #tpu.memory_space<vmem>>, vector<16x144xbf16>
    %c0_58 = arith.constant 0 : index
    %c0_59 = arith.constant 0 : index
    %56 = vector.load %arg8[%c0_58, %c0_59] : memref<144x768xbf16, #tpu.memory_space<vmem>>, vector<144x768xbf16>
    %cst = arith.constant dense<0.000000e+00> : vector<16x768xf32>
    %57 = tpu.matmul %55, %56, %cst {dimension_numbers = #tpu.dot_dimension_numbers<[1], [0], [0], [1], [0, 0, 1, 1], [], []>} : vector<16x144xbf16>, vector<144x768xbf16>, vector<16x768xf32> -> vector<16x768xf32>
    %c0_60 = arith.constant 0 : index
    %c0_61 = arith.constant 0 : index
    %58 = vector.load %arg2[%c0_60, %c0_61] : memref<16x1xf32, #tpu.memory_space<vmem>>, vector<16x1xf32>
    %59 = vector.broadcast %58 : vector<16x1xf32> to vector<16x768xf32>
    %60 = arith.addf %57, %59 : vector<16x768xf32>
    %cst_62 = arith.constant 0.000000e+00 : f32
    %61 = vector.broadcast %cst_62 : f32 to vector<16x768xf32>
    %62 = arith.maximumf %60, %61 : vector<16x768xf32>
    %63 = vector.broadcast %0 : vector<1x768xf32> to vector<16x768xf32>
    %64 = arith.mulf %62, %63 : vector<16x768xf32>
    %65 = arith.truncf %64 : vector<16x768xf32> to vector<16x768xbf16>
    %cst_63 = arith.constant 0.000000e+00 : bf16
    %66 = vector.broadcast %cst_63 : bf16 to vector<16x128xbf16>
    %c0_64 = arith.constant 0 : index
    %c0_65 = arith.constant 0 : index
    %67 = vector.load %arg9[%c0_64, %c0_65] : memref<16x1280xbf16, #tpu.memory_space<vmem>>, vector<16x128xbf16>
    tpu.vector_store %arg9[%c0_64, %c0_65], %66 {strides = array<i32>} : memref<16x1280xbf16, #tpu.memory_space<vmem>>, vector<16x128xbf16>,
    %cst_66 = arith.constant 0.000000e+00 : bf16
    %68 = vector.broadcast %cst_66 : bf16 to vector<16x128xbf16>
    %c0_67 = arith.constant 0 : index
    %c512 = arith.constant 512 : index
    %69 = vector.load %arg9[%c0_67, %c512] : memref<16x1280xbf16, #tpu.memory_space<vmem>>, vector<16x128xbf16>
    tpu.vector_store %arg9[%c0_67, %c512], %68 {strides = array<i32>} : memref<16x1280xbf16, #tpu.memory_space<vmem>>, vector<16x128xbf16>,
    %70 = vector.extract_strided_slice %65 {offsets = [0, 0], sizes = [16, 384], strides = [1, 1]} : vector<16x768xbf16> to vector<16x384xbf16>
    %c0_68 = arith.constant 0 : index
    %c128_69 = arith.constant 128 : index
    %71 = vector.load %arg9[%c0_68, %c128_69] : memref<16x1280xbf16, #tpu.memory_space<vmem>>, vector<16x384xbf16>
    tpu.vector_store %arg9[%c0_68, %c128_69], %70 {strides = array<i32>} : memref<16x1280xbf16, #tpu.memory_space<vmem>>, vector<16x384xbf16>,
    %cst_70 = arith.constant 0.000000e+00 : bf16
    %72 = vector.broadcast %cst_70 : bf16 to vector<16x128xbf16>
    %c0_71 = arith.constant 0 : index
    %c640 = arith.constant 640 : index
    %73 = vector.load %arg9[%c0_71, %c640] : memref<16x1280xbf16, #tpu.memory_space<vmem>>, vector<16x128xbf16>
    tpu.vector_store %arg9[%c0_71, %c640], %72 {strides = array<i32>} : memref<16x1280xbf16, #tpu.memory_space<vmem>>, vector<16x128xbf16>,
    %cst_72 = arith.constant 0.000000e+00 : bf16
    %74 = vector.broadcast %cst_72 : bf16 to vector<16x128xbf16>
    %c0_73 = arith.constant 0 : index
    %c1152 = arith.constant 1152 : index
    %75 = vector.load %arg9[%c0_73, %c1152] : memref<16x1280xbf16, #tpu.memory_space<vmem>>, vector<16x128xbf16>
    tpu.vector_store %arg9[%c0_73, %c1152], %74 {strides = array<i32>} : memref<16x1280xbf16, #tpu.memory_space<vmem>>, vector<16x128xbf16>,
    %76 = vector.extract_strided_slice %65 {offsets = [0, 384], sizes = [16, 384], strides = [1, 1]} : vector<16x768xbf16> to vector<16x384xbf16>
    %c0_74 = arith.constant 0 : index
    %c768 = arith.constant 768 : index
    %77 = vector.load %arg9[%c0_74, %c768] : memref<16x1280xbf16, #tpu.memory_space<vmem>>, vector<16x384xbf16>
    tpu.vector_store %arg9[%c0_74, %c768], %76 {strides = array<i32>} : memref<16x1280xbf16, #tpu.memory_space<vmem>>, vector<16x384xbf16>,
    %c0_75 = arith.constant 0 : index
    %c109_76 = arith.constant 109 : index
    %78 = vector.load %arg9[%c0_75, %c109_76] : memref<16x1280xbf16, #tpu.memory_space<vmem>>, vector<16x384xbf16>
    %c0_77 = arith.constant 0 : index
    %c0_78 = arith.constant 0 : index
    %79 = vector.load %arg8[%c0_77, %c0_78] : memref<144x768xbf16, #tpu.memory_space<vmem>>, vector<16x384xbf16>
    tpu.vector_store %arg8[%c0_77, %c0_78], %78 {strides = array<i32>} : memref<144x768xbf16, #tpu.memory_space<vmem>>, vector<16x384xbf16>,
    %c0_79 = arith.constant 0 : index
    %c110_80 = arith.constant 110 : index
    %80 = vector.load %arg9[%c0_79, %c110_80] : memref<16x1280xbf16, #tpu.memory_space<vmem>>, vector<16x384xbf16>
    %c16_81 = arith.constant 16 : index
    %c0_82 = arith.constant 0 : index
    %81 = vector.load %arg8[%c16_81, %c0_82] : memref<144x768xbf16, #tpu.memory_space<vmem>>, vector<16x384xbf16>
    tpu.vector_store %arg8[%c16_81, %c0_82], %80 {strides = array<i32>} : memref<144x768xbf16, #tpu.memory_space<vmem>>, vector<16x384xbf16>,
    %c0_83 = arith.constant 0 : index
    %c111_84 = arith.constant 111 : index
    %82 = vector.load %arg9[%c0_83, %c111_84] : memref<16x1280xbf16, #tpu.memory_space<vmem>>, vector<16x384xbf16>
    %c32_85 = arith.constant 32 : index
    %c0_86 = arith.constant 0 : index
    %83 = vector.load %arg8[%c32_85, %c0_86] : memref<144x768xbf16, #tpu.memory_space<vmem>>, vector<16x384xbf16>
    tpu.vector_store %arg8[%c32_85, %c0_86], %82 {strides = array<i32>} : memref<144x768xbf16, #tpu.memory_space<vmem>>, vector<16x384xbf16>,
    %c0_87 = arith.constant 0 : index
    %c127_88 = arith.constant 127 : index
    %84 = vector.load %arg9[%c0_87, %c127_88] : memref<16x1280xbf16, #tpu.memory_space<vmem>>, vector<16x384xbf16>
    %c48_89 = arith.constant 48 : index
    %c0_90 = arith.constant 0 : index
    %85 = vector.load %arg8[%c48_89, %c0_90] : memref<144x768xbf16, #tpu.memory_space<vmem>>, vector<16x384xbf16>
    tpu.vector_store %arg8[%c48_89, %c0_90], %84 {strides = array<i32>} : memref<144x768xbf16, #tpu.memory_space<vmem>>, vector<16x384xbf16>,
    %c0_91 = arith.constant 0 : index
    %c128_92 = arith.constant 128 : index
    %86 = vector.load %arg9[%c0_91, %c128_92] : memref<16x1280xbf16, #tpu.memory_space<vmem>>, vector<16x384xbf16>
    %c64_93 = arith.constant 64 : index
    %c0_94 = arith.constant 0 : index
    %87 = vector.load %arg8[%c64_93, %c0_94] : memref<144x768xbf16, #tpu.memory_space<vmem>>, vector<16x384xbf16>
    tpu.vector_store %arg8[%c64_93, %c0_94], %86 {strides = array<i32>} : memref<144x768xbf16, #tpu.memory_space<vmem>>, vector<16x384xbf16>,
    %c0_95 = arith.constant 0 : index
    %c129_96 = arith.constant 129 : index
    %88 = vector.load %arg9[%c0_95, %c129_96] : memref<16x1280xbf16, #tpu.memory_space<vmem>>, vector<16x384xbf16>
    %c80_97 = arith.constant 80 : index
    %c0_98 = arith.constant 0 : index
    %89 = vector.load %arg8[%c80_97, %c0_98] : memref<144x768xbf16, #tpu.memory_space<vmem>>, vector<16x384xbf16>
    tpu.vector_store %arg8[%c80_97, %c0_98], %88 {strides = array<i32>} : memref<144x768xbf16, #tpu.memory_space<vmem>>, vector<16x384xbf16>,
    %c0_99 = arith.constant 0 : index
    %c145_100 = arith.constant 145 : index
    %90 = vector.load %arg9[%c0_99, %c145_100] : memref<16x1280xbf16, #tpu.memory_space<vmem>>, vector<16x384xbf16>
    %c96_101 = arith.constant 96 : index
    %c0_102 = arith.constant 0 : index
    %91 = vector.load %arg8[%c96_101, %c0_102] : memref<144x768xbf16, #tpu.memory_space<vmem>>, vector<16x384xbf16>
    tpu.vector_store %arg8[%c96_101, %c0_102], %90 {strides = array<i32>} : memref<144x768xbf16, #tpu.memory_space<vmem>>, vector<16x384xbf16>,
    %c0_103 = arith.constant 0 : index
    %c146_104 = arith.constant 146 : index
    %92 = vector.load %arg9[%c0_103, %c146_104] : memref<16x1280xbf16, #tpu.memory_space<vmem>>, vector<16x384xbf16>
    %c112_105 = arith.constant 112 : index
    %c0_106 = arith.constant 0 : index
    %93 = vector.load %arg8[%c112_105, %c0_106] : memref<144x768xbf16, #tpu.memory_space<vmem>>, vector<16x384xbf16>
    tpu.vector_store %arg8[%c112_105, %c0_106], %92 {strides = array<i32>} : memref<144x768xbf16, #tpu.memory_space<vmem>>, vector<16x384xbf16>,
    %c0_107 = arith.constant 0 : index
    %c147_108 = arith.constant 147 : index
    %94 = vector.load %arg9[%c0_107, %c147_108] : memref<16x1280xbf16, #tpu.memory_space<vmem>>, vector<16x384xbf16>
    %c128_109 = arith.constant 128 : index
    %c0_110 = arith.constant 0 : index
    %95 = vector.load %arg8[%c128_109, %c0_110] : memref<144x768xbf16, #tpu.memory_space<vmem>>, vector<16x384xbf16>
    tpu.vector_store %arg8[%c128_109, %c0_110], %94 {strides = array<i32>} : memref<144x768xbf16, #tpu.memory_space<vmem>>, vector<16x384xbf16>,
    %c0_111 = arith.constant 0 : index
    %c749 = arith.constant 749 : index
    %96 = vector.load %arg9[%c0_111, %c749] : memref<16x1280xbf16, #tpu.memory_space<vmem>>, vector<16x384xbf16>
    %c0_112 = arith.constant 0 : index
    %c384_113 = arith.constant 384 : index
    %97 = vector.load %arg8[%c0_112, %c384_113] : memref<144x768xbf16, #tpu.memory_space<vmem>>, vector<16x384xbf16>
    tpu.vector_store %arg8[%c0_112, %c384_113], %96 {strides = array<i32>} : memref<144x768xbf16, #tpu.memory_space<vmem>>, vector<16x384xbf16>,
    %c0_114 = arith.constant 0 : index
    %c750 = arith.constant 750 : index
    %98 = vector.load %arg9[%c0_114, %c750] : memref<16x1280xbf16, #tpu.memory_space<vmem>>, vector<16x384xbf16>
    %c16_115 = arith.constant 16 : index
    %c384_116 = arith.constant 384 : index
    %99 = vector.load %arg8[%c16_115, %c384_116] : memref<144x768xbf16, #tpu.memory_space<vmem>>, vector<16x384xbf16>
    tpu.vector_store %arg8[%c16_115, %c384_116], %98 {strides = array<i32>} : memref<144x768xbf16, #tpu.memory_space<vmem>>, vector<16x384xbf16>,
    %c0_117 = arith.constant 0 : index
    %c751 = arith.constant 751 : index
    %100 = vector.load %arg9[%c0_117, %c751] : memref<16x1280xbf16, #tpu.memory_space<vmem>>, vector<16x384xbf16>
    %c32_118 = arith.constant 32 : index
    %c384_119 = arith.constant 384 : index
    %101 = vector.load %arg8[%c32_118, %c384_119] : memref<144x768xbf16, #tpu.memory_space<vmem>>, vector<16x384xbf16>
    tpu.vector_store %arg8[%c32_118, %c384_119], %100 {strides = array<i32>} : memref<144x768xbf16, #tpu.memory_space<vmem>>, vector<16x384xbf16>,
    %c0_120 = arith.constant 0 : index
    %c767 = arith.constant 767 : index
    %102 = vector.load %arg9[%c0_120, %c767] : memref<16x1280xbf16, #tpu.memory_space<vmem>>, vector<16x384xbf16>
    %c48_121 = arith.constant 48 : index
    %c384_122 = arith.constant 384 : index
    %103 = vector.load %arg8[%c48_121, %c384_122] : memref<144x768xbf16, #tpu.memory_space<vmem>>, vector<16x384xbf16>
    tpu.vector_store %arg8[%c48_121, %c384_122], %102 {strides = array<i32>} : memref<144x768xbf16, #tpu.memory_space<vmem>>, vector<16x384xbf16>,
    %c0_123 = arith.constant 0 : index
    %c768_124 = arith.constant 768 : index
    %104 = vector.load %arg9[%c0_123, %c768_124] : memref<16x1280xbf16, #tpu.memory_space<vmem>>, vector<16x384xbf16>
    %c64_125 = arith.constant 64 : index
    %c384_126 = arith.constant 384 : index
    %105 = vector.load %arg8[%c64_125, %c384_126] : memref<144x768xbf16, #tpu.memory_space<vmem>>, vector<16x384xbf16>
    tpu.vector_store %arg8[%c64_125, %c384_126], %104 {strides = array<i32>} : memref<144x768xbf16, #tpu.memory_space<vmem>>, vector<16x384xbf16>,
    %c0_127 = arith.constant 0 : index
    %c769 = arith.constant 769 : index
    %106 = vector.load %arg9[%c0_127, %c769] : memref<16x1280xbf16, #tpu.memory_space<vmem>>, vector<16x384xbf16>
    %c80_128 = arith.constant 80 : index
    %c384_129 = arith.constant 384 : index
    %107 = vector.load %arg8[%c80_128, %c384_129] : memref<144x768xbf16, #tpu.memory_space<vmem>>, vector<16x384xbf16>
    tpu.vector_store %arg8[%c80_128, %c384_129], %106 {strides = array<i32>} : memref<144x768xbf16, #tpu.memory_space<vmem>>, vector<16x384xbf16>,
    %c0_130 = arith.constant 0 : index
    %c785 = arith.constant 785 : index
    %108 = vector.load %arg9[%c0_130, %c785] : memref<16x1280xbf16, #tpu.memory_space<vmem>>, vector<16x384xbf16>
    %c96_131 = arith.constant 96 : index
    %c384_132 = arith.constant 384 : index
    %109 = vector.load %arg8[%c96_131, %c384_132] : memref<144x768xbf16, #tpu.memory_space<vmem>>, vector<16x384xbf16>
    tpu.vector_store %arg8[%c96_131, %c384_132], %108 {strides = array<i32>} : memref<144x768xbf16, #tpu.memory_space<vmem>>, vector<16x384xbf16>,
    %c0_133 = arith.constant 0 : index
    %c786 = arith.constant 786 : index
    %110 = vector.load %arg9[%c0_133, %c786] : memref<16x1280xbf16, #tpu.memory_space<vmem>>, vector<16x384xbf16>
    %c112_134 = arith.constant 112 : index
    %c384_135 = arith.constant 384 : index
    %111 = vector.load %arg8[%c112_134, %c384_135] : memref<144x768xbf16, #tpu.memory_space<vmem>>, vector<16x384xbf16>
    tpu.vector_store %arg8[%c112_134, %c384_135], %110 {strides = array<i32>} : memref<144x768xbf16, #tpu.memory_space<vmem>>, vector<16x384xbf16>,
    %c0_136 = arith.constant 0 : index
    %c787 = arith.constant 787 : index
    %112 = vector.load %arg9[%c0_136, %c787] : memref<16x1280xbf16, #tpu.memory_space<vmem>>, vector<16x384xbf16>
    %c128_137 = arith.constant 128 : index
    %c384_138 = arith.constant 384 : index
    %113 = vector.load %arg8[%c128_137, %c384_138] : memref<144x768xbf16, #tpu.memory_space<vmem>>, vector<16x384xbf16>
    tpu.vector_store %arg8[%c128_137, %c384_138], %112 {strides = array<i32>} : memref<144x768xbf16, #tpu.memory_space<vmem>>, vector<16x384xbf16>,
    %c0_139 = arith.constant 0 : index
    %c0_140 = arith.constant 0 : index
    %114 = vector.load %arg3[%c0_139, %c0_140] : memref<16x144xbf16, #tpu.memory_space<vmem>>, vector<16x144xbf16>
    %c0_141 = arith.constant 0 : index
    %c0_142 = arith.constant 0 : index
    %115 = vector.load %arg8[%c0_141, %c0_142] : memref<144x768xbf16, #tpu.memory_space<vmem>>, vector<144x768xbf16>
    %cst_143 = arith.constant dense<0.000000e+00> : vector<16x768xf32>
    %116 = tpu.matmul %114, %115, %cst_143 {dimension_numbers = #tpu.dot_dimension_numbers<[1], [0], [0], [1], [0, 0, 1, 1], [], []>} : vector<16x144xbf16>, vector<144x768xbf16>, vector<16x768xf32> -> vector<16x768xf32>
    %c0_144 = arith.constant 0 : index
    %c0_145 = arith.constant 0 : index
    %117 = vector.load %arg4[%c0_144, %c0_145] : memref<16x1xf32, #tpu.memory_space<vmem>>, vector<16x1xf32>
    %118 = vector.extract_strided_slice %116 {offsets = [0, 0], sizes = [16, 384], strides = [1, 1]} : vector<16x768xf32> to vector<16x384xf32>
    %119 = vector.broadcast %117 : vector<16x1xf32> to vector<16x384xf32>
    %120 = arith.addf %118, %119 : vector<16x384xf32>
    %c0_146 = arith.constant 0 : index
    %c128_147 = arith.constant 128 : index
    %121 = vector.load %arg6[%c0_146, %c128_147] : memref<32x640xf32, #tpu.memory_space<vmem>>, vector<16x384xf32>
    %122 = arith.addf %120, %121 : vector<16x384xf32>
    %cst_148 = arith.constant 0.000000e+00 : f32
    %123 = vector.broadcast %cst_148 : f32 to vector<16x384xf32>
    %124 = arith.maximumf %122, %123 : vector<16x384xf32>
    %c0_149 = arith.constant 0 : index
    %c0_150 = arith.constant 0 : index
    %125 = vector.load %arg7[%c0_149, %c0_150] : memref<32x384xf32, #tpu.memory_space<vmem>>, vector<16x384xf32>
    tpu.vector_store %arg7[%c0_149, %c0_150], %124 {strides = array<i32>} : memref<32x384xf32, #tpu.memory_space<vmem>>, vector<16x384xf32>,
    %126 = vector.extract_strided_slice %116 {offsets = [0, 384], sizes = [16, 384], strides = [1, 1]} : vector<16x768xf32> to vector<16x384xf32>
    %127 = vector.broadcast %117 : vector<16x1xf32> to vector<16x384xf32>
    %128 = arith.addf %126, %127 : vector<16x384xf32>
    %c16_151 = arith.constant 16 : index
    %c128_152 = arith.constant 128 : index
    %129 = vector.load %arg6[%c16_151, %c128_152] : memref<32x640xf32, #tpu.memory_space<vmem>>, vector<16x384xf32>
    %130 = arith.addf %128, %129 : vector<16x384xf32>
    %cst_153 = arith.constant 0.000000e+00 : f32
    %131 = vector.broadcast %cst_153 : f32 to vector<16x384xf32>
    %132 = arith.maximumf %130, %131 : vector<16x384xf32>
    %c16_154 = arith.constant 16 : index
    %c0_155 = arith.constant 0 : index
    %133 = vector.load %arg7[%c16_154, %c0_155] : memref<32x384xf32, #tpu.memory_space<vmem>>, vector<16x384xf32>
    tpu.vector_store %arg7[%c16_154, %c0_155], %132 {strides = array<i32>} : memref<32x384xf32, #tpu.memory_space<vmem>>, vector<16x384xf32>,
    return
  }
  func.func @transform_0(%arg0: i32) -> (i32, i32) {
    %c0_i32 = arith.constant 0 : i32
    %c0_i32_0 = arith.constant 0 : i32
    %c0_i32_1 = arith.constant 0 : i32
    return %c0_i32, %c0_i32_0 : i32, i32
  }
  func.func @transform_1(%arg0: i32) -> (i32, i32) {
    %c0_i32 = arith.constant 0 : i32
    %c0_i32_0 = arith.constant 0 : i32
    %c0_i32_1 = arith.constant 0 : i32
    return %c0_i32, %c0_i32_0 : i32, i32
  }
  func.func @transform_2(%arg0: i32) -> (i32, i32) {
    %c0_i32 = arith.constant 0 : i32
    %c0_i32_0 = arith.constant 0 : i32
    %c0_i32_1 = arith.constant 0 : i32
    return %c0_i32, %c0_i32_0 : i32, i32
  }
  func.func @transform_3(%arg0: i32) -> (i32, i32) {
    %c0_i32 = arith.constant 0 : i32
    %c0_i32_0 = arith.constant 0 : i32
    %c0_i32_1 = arith.constant 0 : i32
    return %c0_i32, %c0_i32_0 : i32, i32
  }
  func.func @transform_4(%arg0: i32) -> (i32, i32) {
    %c0_i32 = arith.constant 0 : i32
    %c0_i32_0 = arith.constant 0 : i32
    %c0_i32_1 = arith.constant 0 : i32
    return %c0_i32, %c0_i32_0 : i32, i32
  }
  func.func @transform_5(%arg0: i32) -> (i32, i32) {
    %c0_i32 = arith.constant 0 : i32
    %c0_i32_0 = arith.constant 0 : i32
    return %arg0, %c0_i32 : i32, i32
  }
  func.func @transform_6(%arg0: i32) -> (i32, i32) {
    %c0_i32 = arith.constant 0 : i32
    %c0_i32_0 = arith.constant 0 : i32
    return %arg0, %c0_i32 : i32, i32
  }
}

</mosaic_0001>

<llo_original>
// kernel: tpu_custom_call.1
$region0: #{tpu_custom_call.1}
  #allocation0 [shape = 'u32[]', space=smem, size = 0x4, offset = 0x4, fixed_abs, tag = 'smem constant byte address 0x4 - core index']
  #allocation1 [shape = 'u32[144,128]{1,0:T(1,128)}', space=vmem, size = 0x12000, scoped, tag = 'internal scratch']
  #allocation2 [shape = 'bf16[144,768]{1,0:T(16,128)(2,1)}', space=vmem, size = 0x36000, scoped, tag = 'scratch operand']
  #allocation3 [shape = 'bf16[16,1280]{1,0:T(16,128)(2,1)}', space=vmem, size = 0xa000, scoped, tag = 'scratch operand']
  %s0 = inlined_call_operand.hbm [shape: bf16[16,144], index: 0, kind: input, shape index: {}]
  %s1 = inlined_call_operand.hbm [shape: f32[16,1], index: 1, kind: input, shape index: {}]
  %s2 = inlined_call_operand.hbm [shape: bf16[16,144], index: 2, kind: input, shape index: {}]
  %s3 = inlined_call_operand.hbm [shape: f32[16,1], index: 3, kind: input, shape index: {}]
  %s4 = inlined_call_operand.hbm [shape: f32[1,768], index: 4, kind: input, shape index: {}]
  %s5 = inlined_call_operand.hbm [shape: f32[32,640], index: 5, kind: input, shape index: {}]
  %s6 = inlined_call_operand.hbm [shape: f32[32,384], index: 6, kind: output, shape index: {}]
  %s7 = sld [smem:[#allocation0]]
  $region58: #{tpu_custom_call.1} parent=0
    _
  %s9 = ssub.s32 1, %s7
  %s10 = scalar_select 0, %s9, %s7
  $region1: #{tpu_custom_call.1} parent=0
    #allocation4 [shape = 'u8[8192]{0}', space=vmem, size = 0x2000, scoped, tag = 'input window, operand 0, single buffered']
    #allocation5 [shape = 's32[1]{0}', space=sflag, size = 0x4, scoped, tag = 'scoped memory for tpu_custom_call.1']
    #allocation6 [shape = 's32[1]{0}', space=sflag, size = 0x4, scoped, tag = 'scoped memory for tpu_custom_call.1']
    #allocation7 [shape = 'u8[8192]{0}', space=vmem, size = 0x2000, scoped, tag = 'input window, operand 1, single buffered']
    #allocation8 [shape = 's32[1]{0}', space=sflag, size = 0x4, scoped, tag = 'scoped memory for tpu_custom_call.1']
    #allocation9 [shape = 'u8[8192]{0}', space=vmem, size = 0x2000, scoped, tag = 'input window, operand 2, single buffered']
    #allocation10 [shape = 'u8[8192]{0}', space=vmem, size = 0x2000, scoped, tag = 'input window, operand 3, single buffered']
    #allocation11 [shape = 's32[1]{0}', space=sflag, size = 0x4, scoped, tag = 'scoped memory for tpu_custom_call.1']
    #allocation12 [shape = 'u8[3072]{0}', space=vmem, size = 0xc00, scoped, tag = 'input window, operand 4, single buffered']
    #allocation13 [shape = 'u8[81920]{0}', space=vmem, size = 0x14000, scoped, tag = 'input window, operand 5, single buffered']
    #allocation14 [shape = 's32[1]{0}', space=sflag, size = 0x4, scoped, tag = 'scoped memory for tpu_custom_call.1']
    #allocation15 [shape = 'u8[49152]{0}', space=vmem, size = 0xc000, scoped, tag = 'output window, operand 0, single buffered']
    %11 = vsyncpa [#allocation5], 0
    %12 = vsyncpa [#allocation8], 0
    %13 = vsyncpa [#allocation11], 0
    %14 = vsyncpa [#allocation14], 0
    %15 = vsyncpa [#allocation6], 0
    // Predicated region
    $region2: #{tpu_custom_call.1} parent=1 // pred_check
      _
    $region3: #{tpu_custom_call.1} parent=1 // pred_check_branch
      %17 = sbr.rel (0) target = $region5
    $region4: #{tpu_custom_call.1} parent=1 // pred_region
      %s19 = ssub.s32 256, 256
      %20 = vsyncadd [#allocation5], %s19
      %s21 = sshll.u32 [#allocation4], 4
      %s22 = int_to_ptr.vmem [resolvable:$true] %s21
      %27 = dma.hbm_to_vmem [thread:$0]  %s0, 256, %s22, [#allocation5], 128, 128, 8
    $region5: #{tpu_custom_call.1} parent=1 // pred_fallthru
      _
    // Predicated region
    $region6: #{tpu_custom_call.1} parent=1 // pred_check
      _
    $region7: #{tpu_custom_call.1} parent=1 // pred_check_branch
      %29 = sbr.rel (0) target = $region9
    $region8: #{tpu_custom_call.1} parent=1 // pred_region
      %s31 = ssub.s32 256, 256
      %32 = vsyncadd [#allocation8], %s31
      %s33 = sshll.u32 [#allocation7], 4
      %s34 = int_to_ptr.vmem [resolvable:$true] %s33
      %39 = dma.hbm_to_vmem [thread:$0]  %s1, 256, %s34, [#allocation8], 128, 128, 8
    $region9: #{tpu_custom_call.1} parent=1 // pred_fallthru
      _
    // Predicated region
    $region10: #{tpu_custom_call.1} parent=1 // pred_check
      _
    $region11: #{tpu_custom_call.1} parent=1 // pred_check_branch
      %41 = sbr.rel (0) target = $region13
    $region12: #{tpu_custom_call.1} parent=1 // pred_region
      %s43 = ssub.s32 256, 256
      %44 = vsyncadd [#allocation8], %s43
      %s45 = sshll.u32 [#allocation9], 4
      %s46 = int_to_ptr.vmem [resolvable:$true] %s45
      %51 = dma.hbm_to_vmem [thread:$0]  %s2, 256, %s46, [#allocation8], 128, 128, 8
    $region13: #{tpu_custom_call.1} parent=1 // pred_fallthru
      _
    // Predicated region
    $region14: #{tpu_custom_call.1} parent=1 // pred_check
      _
    $region15: #{tpu_custom_call.1} parent=1 // pred_check_branch
      %53 = sbr.rel (0) target = $region17
    $region16: #{tpu_custom_call.1} parent=1 // pred_region
      %s55 = ssub.s32 256, 256
      %56 = vsyncadd [#allocation11], %s55
      %s57 = sshll.u32 [#allocation10], 4
      %s58 = int_to_ptr.vmem [resolvable:$true] %s57
      %63 = dma.hbm_to_vmem [thread:$0]  %s3, 256, %s58, [#allocation11], 128, 128, 8
    $region17: #{tpu_custom_call.1} parent=1 // pred_fallthru
      _
    // Predicated region
    $region18: #{tpu_custom_call.1} parent=1 // pred_check
      _
    $region19: #{tpu_custom_call.1} parent=1 // pred_check_branch
      %65 = sbr.rel (0) target = $region21
    $region20: #{tpu_custom_call.1} parent=1 // pred_region
      %s67 = ssub.s32 96, 96
      %68 = vsyncadd [#allocation11], %s67
      %s70 = sshll.u32 [#allocation12], 4
      %s71 = int_to_ptr.vmem [resolvable:$true] %s70
      %73 = dma.hbm_to_vmem [thread:$0]  %s4, 96, %s71, [#allocation11]
    $region21: #{tpu_custom_call.1} parent=1 // pred_fallthru
      _
    // Predicated region
    $region22: #{tpu_custom_call.1} parent=1 // pred_check
      _
    $region23: #{tpu_custom_call.1} parent=1 // pred_check_branch
      %75 = sbr.rel (0) target = $region25
    $region24: #{tpu_custom_call.1} parent=1 // pred_region
      %s77 = ssub.s32 2560, 2560
      %78 = vsyncadd [#allocation14], %s77
      %s79 = sshll.u32 [#allocation13], 4
      %s80 = int_to_ptr.vmem [resolvable:$true] %s79
      %85 = dma.hbm_to_vmem [thread:$0]  %s5, 2560, %s80, [#allocation14], 640, 640, 40
    $region25: #{tpu_custom_call.1} parent=1 // pred_fallthru
      _
    // Predicated region
    $region26: #{tpu_custom_call.1} parent=1 // pred_check
      _
    $region27: #{tpu_custom_call.1} parent=1 // pred_check_branch
      %87 = sbr.rel (0) target = $region29
    $region28: #{tpu_custom_call.1} parent=1 // pred_region
      %88 = dma.done [#allocation5], 256
    $region29: #{tpu_custom_call.1} parent=1 // pred_fallthru
      _
    // Predicated region
    $region30: #{tpu_custom_call.1} parent=1 // pred_check
      _
    $region31: #{tpu_custom_call.1} parent=1 // pred_check_branch
      %90 = sbr.rel (0) target = $region33
    $region32: #{tpu_custom_call.1} parent=1 // pred_region
      %91 = dma.done [#allocation8], 256
    $region33: #{tpu_custom_call.1} parent=1 // pred_fallthru
      _
    // Predicated region
    $region34: #{tpu_custom_call.1} parent=1 // pred_check
      _
    $region35: #{tpu_custom_call.1} parent=1 // pred_check_branch
      %93 = sbr.rel (0) target = $region37
    $region36: #{tpu_custom_call.1} parent=1 // pred_region
      %94 = dma.done [#allocation8], 256
    $region37: #{tpu_custom_call.1} parent=1 // pred_fallthru
      _
    // Predicated region
    $region38: #{tpu_custom_call.1} parent=1 // pred_check
      _
    $region39: #{tpu_custom_call.1} parent=1 // pred_check_branch
      %96 = sbr.rel (0) target = $region41
    $region40: #{tpu_custom_call.1} parent=1 // pred_region
      %97 = dma.done [#allocation11], 256
    $region41: #{tpu_custom_call.1} parent=1 // pred_fallthru
      _
    // Predicated region
    $region42: #{tpu_custom_call.1} parent=1 // pred_check
      _
    $region43: #{tpu_custom_call.1} parent=1 // pred_check_branch
      %99 = sbr.rel (0) target = $region45
    $region44: #{tpu_custom_call.1} parent=1 // pred_region
      %100 = dma.done [#allocation11], 96
    $region45: #{tpu_custom_call.1} parent=1 // pred_fallthru
      _
    // Predicated region
    $region46: #{tpu_custom_call.1} parent=1 // pred_check
      _
    $region47: #{tpu_custom_call.1} parent=1 // pred_check_branch
      %102 = sbr.rel (0) target = $region49
    $region48: #{tpu_custom_call.1} parent=1 // pred_region
      %103 = dma.done [#allocation14], 2560
    $region49: #{tpu_custom_call.1} parent=1 // pred_fallthru
      _
    %v105 = vld [vmem:[#allocation12] sm:$0x3f]
    %v106 = vld [vmem:[#allocation13] sm:$0xff]
    %v107 = vld [vmem:[#allocation13 + $0x8] sm:$0xff]
    %v108 = vld [vmem:[#allocation13 + $0x10] sm:$0xff]
    %v109 = vld [vmem:[#allocation13 + $0x18] sm:$0xff]
    %v110 = vld [vmem:[#allocation13 + $0x28] sm:$0xff]
    %v111 = vld [vmem:[#allocation13 + $0x30] sm:$0xff]
    %v112 = vld [vmem:[#allocation13 + $0x38] sm:$0xff]
    %v113 = vld [vmem:[#allocation13 + $0x40] sm:$0xff]
    %v114 = vpack.c.bf16 %v110, %v106
    %v115 = vpack.c.bf16 %v111, %v107
    %v116 = vpack.c.bf16 %v112, %v108
    %v117 = vpack.c.bf16 %v113, %v109
    %122 = vrot.lane.b32.xlu0 %v114, 19
    %v123 = vpop.permute.xlu0 %122
    %124 = vrot.lane.b32.xlu0 %v115, 19
    %v125 = vpop.permute.xlu0 %124
    %126 = vrot.lane.b32.xlu0 %v116, 19
    %v127 = vpop.permute.xlu0 %126
    %128 = vrot.lane.b32.xlu0 %v117, 19
    %v129 = vpop.permute.xlu0 %128
    %vm130 = vcmask 154624
    %v131 = vsel %vm130, %v123, %v125
    %v132 = vsel %vm130, %v125, %v127
    %v133 = vsel %vm130, %v127, %v129
    %137 = vst [vmem:[#allocation2] sm:$0xff] %v131
    %138 = vst [vmem:[#allocation2 + $0x8] sm:$0xff] %v132
    %139 = vst [vmem:[#allocation2 + $0x10] sm:$0xff] %v133
    %v140 = vld [vmem:[#allocation13] sm:$0xff]
    %v141 = vld [vmem:[#allocation13 + $0x8] sm:$0xff]
    %v142 = vld [vmem:[#allocation13 + $0x10] sm:$0xff]
    %v143 = vld [vmem:[#allocation13 + $0x18] sm:$0xff]
    %v144 = vld [vmem:[#allocation13 + $0x28] sm:$0xff]
    %v145 = vld [vmem:[#allocation13 + $0x30] sm:$0xff]
    %v146 = vld [vmem:[#allocation13 + $0x38] sm:$0xff]
    %v147 = vld [vmem:[#allocation13 + $0x40] sm:$0xff]
    %v148 = vpack.c.bf16 %v144, %v140
    %v149 = vpack.c.bf16 %v145, %v141
    %v150 = vpack.c.bf16 %v146, %v142
    %v151 = vpack.c.bf16 %v147, %v143
    %156 = vrot.lane.b32.xlu0 %v148, 18
    %v157 = vpop.permute.xlu0 %156
    %158 = vrot.lane.b32.xlu0 %v149, 18
    %v159 = vpop.permute.xlu0 %158
    %160 = vrot.lane.b32.xlu0 %v150, 18
    %v161 = vpop.permute.xlu0 %160
    %162 = vrot.lane.b32.xlu0 %v151, 18
    %v163 = vpop.permute.xlu0 %162
    %vm164 = vcmask 146432
    %v165 = vsel %vm164, %v157, %v159
    %v166 = vsel %vm164, %v159, %v161
    %v167 = vsel %vm164, %v161, %v163
    %171 = vst [vmem:[#allocation2 + $0x30] sm:$0xff] %v165
    %172 = vst [vmem:[#allocation2 + $0x38] sm:$0xff] %v166
    %173 = vst [vmem:[#allocation2 + $0x40] sm:$0xff] %v167
    %v174 = vld [vmem:[#allocation13] sm:$0xff]
    %v175 = vld [vmem:[#allocation13 + $0x8] sm:$0xff]
    %v176 = vld [vmem:[#allocation13 + $0x10] sm:$0xff]
    %v177 = vld [vmem:[#allocation13 + $0x18] sm:$0xff]
    %v178 = vld [vmem:[#allocation13 + $0x28] sm:$0xff]
    %v179 = vld [vmem:[#allocation13 + $0x30] sm:$0xff]
    %v180 = vld [vmem:[#allocation13 + $0x38] sm:$0xff]
    %v181 = vld [vmem:[#allocation13 + $0x40] sm:$0xff]
    %v182 = vpack.c.bf16 %v178, %v174
    %v183 = vpack.c.bf16 %v179, %v175
    %v184 = vpack.c.bf16 %v180, %v176
    %v185 = vpack.c.bf16 %v181, %v177
    %190 = vrot.lane.b32.xlu0 %v182, 17
    %v191 = vpop.permute.xlu0 %190
    %192 = vrot.lane.b32.xlu0 %v183, 17
    %v193 = vpop.permute.xlu0 %192
    %194 = vrot.lane.b32.xlu0 %v184, 17
    %v195 = vpop.permute.xlu0 %194
    %196 = vrot.lane.b32.xlu0 %v185, 17
    %v197 = vpop.permute.xlu0 %196
    %vm198 = vcmask 138240
    %v199 = vsel %vm198, %v191, %v193
    %v200 = vsel %vm198, %v193, %v195
    %v201 = vsel %vm198, %v195, %v197
    %205 = vst [vmem:[#allocation2 + $0x60] sm:$0xff] %v199
    %206 = vst [vmem:[#allocation2 + $0x68] sm:$0xff] %v200
    %207 = vst [vmem:[#allocation2 + $0x70] sm:$0xff] %v201
    %v208 = vld [vmem:[#allocation13] sm:$0xff]
    %v209 = vld [vmem:[#allocation13 + $0x8] sm:$0xff]
    %v210 = vld [vmem:[#allocation13 + $0x10] sm:$0xff]
    %v211 = vld [vmem:[#allocation13 + $0x18] sm:$0xff]
    %v212 = vld [vmem:[#allocation13 + $0x28] sm:$0xff]
    %v213 = vld [vmem:[#allocation13 + $0x30] sm:$0xff]
    %v214 = vld [vmem:[#allocation13 + $0x38] sm:$0xff]
    %v215 = vld [vmem:[#allocation13 + $0x40] sm:$0xff]
    %v216 = vpack.c.bf16 %v212, %v208
    %v217 = vpack.c.bf16 %v213, %v209
    %v218 = vpack.c.bf16 %v214, %v210
    %v219 = vpack.c.bf16 %v215, %v211
    %224 = vrot.lane.b32.xlu0 %v216, 1
    %v225 = vpop.permute.xlu0 %224
    %226 = vrot.lane.b32.xlu0 %v217, 1
    %v227 = vpop.permute.xlu0 %226
    %228 = vrot.lane.b32.xlu0 %v218, 1
    %v229 = vpop.permute.xlu0 %228
    %230 = vrot.lane.b32.xlu0 %v219, 1
    %v231 = vpop.permute.xlu0 %230
    %vm232 = vcmask 7168
    %v233 = vsel %vm232, %v225, %v227
    %v234 = vsel %vm232, %v227, %v229
    %v235 = vsel %vm232, %v229, %v231
    %239 = vst [vmem:[#allocation2 + $0x90] sm:$0xff] %v233
    %240 = vst [vmem:[#allocation2 + $0x98] sm:$0xff] %v234
    %241 = vst [vmem:[#allocation2 + $0xa0] sm:$0xff] %v235
    %v242 = vld [vmem:[#allocation13 + $0x8] sm:$0xff]
    %v243 = vld [vmem:[#allocation13 + $0x10] sm:$0xff]
    %v244 = vld [vmem:[#allocation13 + $0x18] sm:$0xff]
    %v245 = vld [vmem:[#allocation13 + $0x30] sm:$0xff]
    %v246 = vld [vmem:[#allocation13 + $0x38] sm:$0xff]
    %v247 = vld [vmem:[#allocation13 + $0x40] sm:$0xff]
    %v248 = vpack.c.bf16 %v245, %v242
    %v249 = vpack.c.bf16 %v246, %v243
    %v250 = vpack.c.bf16 %v247, %v244
    %251 = vst [vmem:[#allocation2 + $0xc0] sm:$0xff] %v248
    %252 = vst [vmem:[#allocation2 + $0xc8] sm:$0xff] %v249
    %253 = vst [vmem:[#allocation2 + $0xd0] sm:$0xff] %v250
    %v254 = vld [vmem:[#allocation13 + $0x8] sm:$0xff]
    %v255 = vld [vmem:[#allocation13 + $0x10] sm:$0xff]
    %v256 = vld [vmem:[#allocation13 + $0x18] sm:$0xff]
    %v257 = vld [vmem:[#allocation13 + $0x20] sm:$0xff]
    %v258 = vld [vmem:[#allocation13 + $0x30] sm:$0xff]
    %v259 = vld [vmem:[#allocation13 + $0x38] sm:$0xff]
    %v260 = vld [vmem:[#allocation13 + $0x40] sm:$0xff]
    %v261 = vld [vmem:[#allocation13 + $0x48] sm:$0xff]
    %v262 = vpack.c.bf16 %v258, %v254
    %v263 = vpack.c.bf16 %v259, %v255
    %v264 = vpack.c.bf16 %v260, %v256
    %v265 = vpack.c.bf16 %v261, %v257
    %270 = vrot.lane.b32.xlu0 %v262, 127
    %v271 = vpop.permute.xlu0 %270
    %272 = vrot.lane.b32.xlu0 %v263, 127
    %v273 = vpop.permute.xlu0 %272
    %274 = vrot.lane.b32.xlu0 %v264, 127
    %v275 = vpop.permute.xlu0 %274
    %276 = vrot.lane.b32.xlu0 %v265, 127
    %v277 = vpop.permute.xlu0 %276
    %vm278 = vcmask 1039360
    %v279 = vsel %vm278, %v271, %v273
    %v280 = vsel %vm278, %v273, %v275
    %v281 = vsel %vm278, %v275, %v277
    %285 = vst [vmem:[#allocation2 + $0xf0] sm:$0xff] %v279
    %286 = vst [vmem:[#allocation2 + $0xf8] sm:$0xff] %v280
    %287 = vst [vmem:[#allocation2 + $0x100] sm:$0xff] %v281
    %v288 = vld [vmem:[#allocation13 + $0x8] sm:$0xff]
    %v289 = vld [vmem:[#allocation13 + $0x10] sm:$0xff]
    %v290 = vld [vmem:[#allocation13 + $0x18] sm:$0xff]
    %v291 = vld [vmem:[#allocation13 + $0x20] sm:$0xff]
    %v292 = vld [vmem:[#allocation13 + $0x30] sm:$0xff]
    %v293 = vld [vmem:[#allocation13 + $0x38] sm:$0xff]
    %v294 = vld [vmem:[#allocation13 + $0x40] sm:$0xff]
    %v295 = vld [vmem:[#allocation13 + $0x48] sm:$0xff]
    %v296 = vpack.c.bf16 %v292, %v288
    %v297 = vpack.c.bf16 %v293, %v289
    %v298 = vpack.c.bf16 %v294, %v290
    %v299 = vpack.c.bf16 %v295, %v291
    %304 = vrot.lane.b32.xlu0 %v296, 111
    %v305 = vpop.permute.xlu0 %304
    %306 = vrot.lane.b32.xlu0 %v297, 111
    %v307 = vpop.permute.xlu0 %306
    %308 = vrot.lane.b32.xlu0 %v298, 111
    %v309 = vpop.permute.xlu0 %308
    %310 = vrot.lane.b32.xlu0 %v299, 111
    %v311 = vpop.permute.xlu0 %310
    %vm312 = vcmask 908288
    %v313 = vsel %vm312, %v305, %v307
    %v314 = vsel %vm312, %v307, %v309
    %v315 = vsel %vm312, %v309, %v311
    %319 = vst [vmem:[#allocation2 + $0x120] sm:$0xff] %v313
    %320 = vst [vmem:[#allocation2 + $0x128] sm:$0xff] %v314
    %321 = vst [vmem:[#allocation2 + $0x130] sm:$0xff] %v315
    %v322 = vld [vmem:[#allocation13 + $0x8] sm:$0xff]
    %v323 = vld [vmem:[#allocation13 + $0x10] sm:$0xff]
    %v324 = vld [vmem:[#allocation13 + $0x18] sm:$0xff]
    %v325 = vld [vmem:[#allocation13 + $0x20] sm:$0xff]
    %v326 = vld [vmem:[#allocation13 + $0x30] sm:$0xff]
    %v327 = vld [vmem:[#allocation13 + $0x38] sm:$0xff]
    %v328 = vld [vmem:[#allocation13 + $0x40] sm:$0xff]
    %v329 = vld [vmem:[#allocation13 + $0x48] sm:$0xff]
    %v330 = vpack.c.bf16 %v326, %v322
    %v331 = vpack.c.bf16 %v327, %v323
    %v332 = vpack.c.bf16 %v328, %v324
    %v333 = vpack.c.bf16 %v329, %v325
    %338 = vrot.lane.b32.xlu0 %v330, 110
    %v339 = vpop.permute.xlu0 %338
    %340 = vrot.lane.b32.xlu0 %v331, 110
    %v341 = vpop.permute.xlu0 %340
    %342 = vrot.lane.b32.xlu0 %v332, 110
    %v343 = vpop.permute.xlu0 %342
    %344 = vrot.lane.b32.xlu0 %v333, 110
    %v345 = vpop.permute.xlu0 %344
    %vm346 = vcmask 900096
    %v347 = vsel %vm346, %v339, %v341
    %v348 = vsel %vm346, %v341, %v343
    %v349 = vsel %vm346, %v343, %v345
    %353 = vst [vmem:[#allocation2 + $0x150] sm:$0xff] %v347
    %354 = vst [vmem:[#allocation2 + $0x158] sm:$0xff] %v348
    %355 = vst [vmem:[#allocation2 + $0x160] sm:$0xff] %v349
    %v356 = vld [vmem:[#allocation13 + $0x8] sm:$0xff]
    %v357 = vld [vmem:[#allocation13 + $0x10] sm:$0xff]
    %v358 = vld [vmem:[#allocation13 + $0x18] sm:$0xff]
    %v359 = vld [vmem:[#allocation13 + $0x20] sm:$0xff]
    %v360 = vld [vmem:[#allocation13 + $0x30] sm:$0xff]
    %v361 = vld [vmem:[#allocation13 + $0x38] sm:$0xff]
    %v362 = vld [vmem:[#allocation13 + $0x40] sm:$0xff]
    %v363 = vld [vmem:[#allocation13 + $0x48] sm:$0xff]
    %v364 = vpack.c.bf16 %v360, %v356
    %v365 = vpack.c.bf16 %v361, %v357
    %v366 = vpack.c.bf16 %v362, %v358
    %v367 = vpack.c.bf16 %v363, %v359
    %372 = vrot.lane.b32.xlu0 %v364, 109
    %v373 = vpop.permute.xlu0 %372
    %374 = vrot.lane.b32.xlu0 %v365, 109
    %v375 = vpop.permute.xlu0 %374
    %376 = vrot.lane.b32.xlu0 %v366, 109
    %v377 = vpop.permute.xlu0 %376
    %378 = vrot.lane.b32.xlu0 %v367, 109
    %v379 = vpop.permute.xlu0 %378
    %vm380 = vcmask 891904
    %v381 = vsel %vm380, %v373, %v375
    %v382 = vsel %vm380, %v375, %v377
    %v383 = vsel %vm380, %v377, %v379
    %387 = vst [vmem:[#allocation2 + $0x180] sm:$0xff] %v381
    %388 = vst [vmem:[#allocation2 + $0x188] sm:$0xff] %v382
    %389 = vst [vmem:[#allocation2 + $0x190] sm:$0xff] %v383
    %v390 = vld [vmem:[#allocation13 + $0x50] sm:$0xff]
    %v391 = vld [vmem:[#allocation13 + $0x58] sm:$0xff]
    %v392 = vld [vmem:[#allocation13 + $0x60] sm:$0xff]
    %v393 = vld [vmem:[#allocation13 + $0x68] sm:$0xff]
    %v394 = vld [vmem:[#allocation13 + $0x78] sm:$0xff]
    %v395 = vld [vmem:[#allocation13 + $0x80] sm:$0xff]
    %v396 = vld [vmem:[#allocation13 + $0x88] sm:$0xff]
    %v397 = vld [vmem:[#allocation13 + $0x90] sm:$0xff]
    %v398 = vpack.c.bf16 %v394, %v390
    %v399 = vpack.c.bf16 %v395, %v391
    %v400 = vpack.c.bf16 %v396, %v392
    %v401 = vpack.c.bf16 %v397, %v393
    %406 = vrot.lane.b32.xlu0 %v398, 19
    %v407 = vpop.permute.xlu0 %406
    %408 = vrot.lane.b32.xlu0 %v399, 19
    %v409 = vpop.permute.xlu0 %408
    %410 = vrot.lane.b32.xlu0 %v400, 19
    %v411 = vpop.permute.xlu0 %410
    %412 = vrot.lane.b32.xlu0 %v401, 19
    %v413 = vpop.permute.xlu0 %412
    %v414 = vsel %vm130, %v407, %v409
    %v415 = vsel %vm130, %v409, %v411
    %v416 = vsel %vm130, %v411, %v413
    %420 = vst [vmem:[#allocation2 + $0x18] sm:$0xff] %v414
    %421 = vst [vmem:[#allocation2 + $0x20] sm:$0xff] %v415
    %422 = vst [vmem:[#allocation2 + $0x28] sm:$0xff] %v416
    %v423 = vld [vmem:[#allocation13 + $0x50] sm:$0xff]
    %v424 = vld [vmem:[#allocation13 + $0x58] sm:$0xff]
    %v425 = vld [vmem:[#allocation13 + $0x60] sm:$0xff]
    %v426 = vld [vmem:[#allocation13 + $0x68] sm:$0xff]
    %v427 = vld [vmem:[#allocation13 + $0x78] sm:$0xff]
    %v428 = vld [vmem:[#allocation13 + $0x80] sm:$0xff]
    %v429 = vld [vmem:[#allocation13 + $0x88] sm:$0xff]
    %v430 = vld [vmem:[#allocation13 + $0x90] sm:$0xff]
    %v431 = vpack.c.bf16 %v427, %v423
    %v432 = vpack.c.bf16 %v428, %v424
    %v433 = vpack.c.bf16 %v429, %v425
    %v434 = vpack.c.bf16 %v430, %v426
    %439 = vrot.lane.b32.xlu0 %v431, 18
    %v440 = vpop.permute.xlu0 %439
    %441 = vrot.lane.b32.xlu0 %v432, 18
    %v442 = vpop.permute.xlu0 %441
    %443 = vrot.lane.b32.xlu0 %v433, 18
    %v444 = vpop.permute.xlu0 %443
    %445 = vrot.lane.b32.xlu0 %v434, 18
    %v446 = vpop.permute.xlu0 %445
    %v447 = vsel %vm164, %v440, %v442
    %v448 = vsel %vm164, %v442, %v444
    %v449 = vsel %vm164, %v444, %v446
    %453 = vst [vmem:[#allocation2 + $0x48] sm:$0xff] %v447
    %454 = vst [vmem:[#allocation2 + $0x50] sm:$0xff] %v448
    %455 = vst [vmem:[#allocation2 + $0x58] sm:$0xff] %v449
    %v456 = vld [vmem:[#allocation13 + $0x50] sm:$0xff]
    %v457 = vld [vmem:[#allocation13 + $0x58] sm:$0xff]
    %v458 = vld [vmem:[#allocation13 + $0x60] sm:$0xff]
    %v459 = vld [vmem:[#allocation13 + $0x68] sm:$0xff]
    %v460 = vld [vmem:[#allocation13 + $0x78] sm:$0xff]
    %v461 = vld [vmem:[#allocation13 + $0x80] sm:$0xff]
    %v462 = vld [vmem:[#allocation13 + $0x88] sm:$0xff]
    %v463 = vld [vmem:[#allocation13 + $0x90] sm:$0xff]
    %v464 = vpack.c.bf16 %v460, %v456
    %v465 = vpack.c.bf16 %v461, %v457
    %v466 = vpack.c.bf16 %v462, %v458
    %v467 = vpack.c.bf16 %v463, %v459
    %472 = vrot.lane.b32.xlu0 %v464, 17
    %v473 = vpop.permute.xlu0 %472
    %474 = vrot.lane.b32.xlu0 %v465, 17
    %v475 = vpop.permute.xlu0 %474
    %476 = vrot.lane.b32.xlu0 %v466, 17
    %v477 = vpop.permute.xlu0 %476
    %478 = vrot.lane.b32.xlu0 %v467, 17
    %v479 = vpop.permute.xlu0 %478
    %v480 = vsel %vm198, %v473, %v475
    %v481 = vsel %vm198, %v475, %v477
    %v482 = vsel %vm198, %v477, %v479
    %486 = vst [vmem:[#allocation2 + $0x78] sm:$0xff] %v480
    %487 = vst [vmem:[#allocation2 + $0x80] sm:$0xff] %v481
    %488 = vst [vmem:[#allocation2 + $0x88] sm:$0xff] %v482
    %v489 = vld [vmem:[#allocation13 + $0x50] sm:$0xff]
    %v490 = vld [vmem:[#allocation13 + $0x58] sm:$0xff]
    %v491 = vld [vmem:[#allocation13 + $0x60] sm:$0xff]
    %v492 = vld [vmem:[#allocation13 + $0x68] sm:$0xff]
    %v493 = vld [vmem:[#allocation13 + $0x78] sm:$0xff]
    %v494 = vld [vmem:[#allocation13 + $0x80] sm:$0xff]
    %v495 = vld [vmem:[#allocation13 + $0x88] sm:$0xff]
    %v496 = vld [vmem:[#allocation13 + $0x90] sm:$0xff]
    %v497 = vpack.c.bf16 %v493, %v489
    %v498 = vpack.c.bf16 %v494, %v490
    %v499 = vpack.c.bf16 %v495, %v491
    %v500 = vpack.c.bf16 %v496, %v492
    %505 = vrot.lane.b32.xlu0 %v497, 1
    %v506 = vpop.permute.xlu0 %505
    %507 = vrot.lane.b32.xlu0 %v498, 1
    %v508 = vpop.permute.xlu0 %507
    %509 = vrot.lane.b32.xlu0 %v499, 1
    %v510 = vpop.permute.xlu0 %509
    %511 = vrot.lane.b32.xlu0 %v500, 1
    %v512 = vpop.permute.xlu0 %511
    %v513 = vsel %vm232, %v506, %v508
    %v514 = vsel %vm232, %v508, %v510
    %v515 = vsel %vm232, %v510, %v512
    %519 = vst [vmem:[#allocation2 + $0xa8] sm:$0xff] %v513
    %520 = vst [vmem:[#allocation2 + $0xb0] sm:$0xff] %v514
    %521 = vst [vmem:[#allocation2 + $0xb8] sm:$0xff] %v515
    %v522 = vld [vmem:[#allocation13 + $0x58] sm:$0xff]
    %v523 = vld [vmem:[#allocation13 + $0x60] sm:$0xff]
    %v524 = vld [vmem:[#allocation13 + $0x68] sm:$0xff]
    %v525 = vld [vmem:[#allocation13 + $0x80] sm:$0xff]
    %v526 = vld [vmem:[#allocation13 + $0x88] sm:$0xff]
    %v527 = vld [vmem:[#allocation13 + $0x90] sm:$0xff]
    %v528 = vpack.c.bf16 %v525, %v522
    %v529 = vpack.c.bf16 %v526, %v523
    %v530 = vpack.c.bf16 %v527, %v524
    %531 = vst [vmem:[#allocation2 + $0xd8] sm:$0xff] %v528
    %532 = vst [vmem:[#allocation2 + $0xe0] sm:$0xff] %v529
    %533 = vst [vmem:[#allocation2 + $0xe8] sm:$0xff] %v530
    %v534 = vld [vmem:[#allocation13 + $0x58] sm:$0xff]
    %v535 = vld [vmem:[#allocation13 + $0x60] sm:$0xff]
    %v536 = vld [vmem:[#allocation13 + $0x68] sm:$0xff]
    %v537 = vld [vmem:[#allocation13 + $0x70] sm:$0xff]
    %v538 = vld [vmem:[#allocation13 + $0x80] sm:$0xff]
    %v539 = vld [vmem:[#allocation13 + $0x88] sm:$0xff]
    %v540 = vld [vmem:[#allocation13 + $0x90] sm:$0xff]
    %v541 = vld [vmem:[#allocation13 + $0x98] sm:$0xff]
    %v542 = vpack.c.bf16 %v538, %v534
    %v543 = vpack.c.bf16 %v539, %v535
    %v544 = vpack.c.bf16 %v540, %v536
    %v545 = vpack.c.bf16 %v541, %v537
    %550 = vrot.lane.b32.xlu0 %v542, 127
    %v551 = vpop.permute.xlu0 %550
    %552 = vrot.lane.b32.xlu0 %v543, 127
    %v553 = vpop.permute.xlu0 %552
    %554 = vrot.lane.b32.xlu0 %v544, 127
    %v555 = vpop.permute.xlu0 %554
    %556 = vrot.lane.b32.xlu0 %v545, 127
    %v557 = vpop.permute.xlu0 %556
    %v558 = vsel %vm278, %v551, %v553
    %v559 = vsel %vm278, %v553, %v555
    %v560 = vsel %vm278, %v555, %v557
    %564 = vst [vmem:[#allocation2 + $0x108] sm:$0xff] %v558
    %565 = vst [vmem:[#allocation2 + $0x110] sm:$0xff] %v559
    %566 = vst [vmem:[#allocation2 + $0x118] sm:$0xff] %v560
    %v567 = vld [vmem:[#allocation13 + $0x58] sm:$0xff]
    %v568 = vld [vmem:[#allocation13 + $0x60] sm:$0xff]
    %v569 = vld [vmem:[#allocation13 + $0x68] sm:$0xff]
    %v570 = vld [vmem:[#allocation13 + $0x70] sm:$0xff]
    %v571 = vld [vmem:[#allocation13 + $0x80] sm:$0xff]
    %v572 = vld [vmem:[#allocation13 + $0x88] sm:$0xff]
    %v573 = vld [vmem:[#allocation13 + $0x90] sm:$0xff]
    %v574 = vld [vmem:[#allocation13 + $0x98] sm:$0xff]
    %v575 = vpack.c.bf16 %v571, %v567
    %v576 = vpack.c.bf16 %v572, %v568
    %v577 = vpack.c.bf16 %v573, %v569
    %v578 = vpack.c.bf16 %v574, %v570
    %583 = vrot.lane.b32.xlu0 %v575, 111
    %v584 = vpop.permute.xlu0 %583
    %585 = vrot.lane.b32.xlu0 %v576, 111
    %v586 = vpop.permute.xlu0 %585
    %587 = vrot.lane.b32.xlu0 %v577, 111
    %v588 = vpop.permute.xlu0 %587
    %589 = vrot.lane.b32.xlu0 %v578, 111
    %v590 = vpop.permute.xlu0 %589
    %v591 = vsel %vm312, %v584, %v586
    %v592 = vsel %vm312, %v586, %v588
    %v593 = vsel %vm312, %v588, %v590
    %597 = vst [vmem:[#allocation2 + $0x138] sm:$0xff] %v591
    %598 = vst [vmem:[#allocation2 + $0x140] sm:$0xff] %v592
    %599 = vst [vmem:[#allocation2 + $0x148] sm:$0xff] %v593
    %v600 = vld [vmem:[#allocation13 + $0x58] sm:$0xff]
    %v601 = vld [vmem:[#allocation13 + $0x60] sm:$0xff]
    %v602 = vld [vmem:[#allocation13 + $0x68] sm:$0xff]
    %v603 = vld [vmem:[#allocation13 + $0x70] sm:$0xff]
    %v604 = vld [vmem:[#allocation13 + $0x80] sm:$0xff]
    %v605 = vld [vmem:[#allocation13 + $0x88] sm:$0xff]
    %v606 = vld [vmem:[#allocation13 + $0x90] sm:$0xff]
    %v607 = vld [vmem:[#allocation13 + $0x98] sm:$0xff]
    %v608 = vpack.c.bf16 %v604, %v600
    %v609 = vpack.c.bf16 %v605, %v601
    %v610 = vpack.c.bf16 %v606, %v602
    %v611 = vpack.c.bf16 %v607, %v603
    %616 = vrot.lane.b32.xlu0 %v608, 110
    %v617 = vpop.permute.xlu0 %616
    %618 = vrot.lane.b32.xlu0 %v609, 110
    %v619 = vpop.permute.xlu0 %618
    %620 = vrot.lane.b32.xlu0 %v610, 110
    %v621 = vpop.permute.xlu0 %620
    %622 = vrot.lane.b32.xlu0 %v611, 110
    %v623 = vpop.permute.xlu0 %622
    %v624 = vsel %vm346, %v617, %v619
    %v625 = vsel %vm346, %v619, %v621
    %v626 = vsel %vm346, %v621, %v623
    %630 = vst [vmem:[#allocation2 + $0x168] sm:$0xff] %v624
    %631 = vst [vmem:[#allocation2 + $0x170] sm:$0xff] %v625
    %632 = vst [vmem:[#allocation2 + $0x178] sm:$0xff] %v626
    %v633 = vld [vmem:[#allocation13 + $0x58] sm:$0xff]
    %v634 = vld [vmem:[#allocation13 + $0x60] sm:$0xff]
    %v635 = vld [vmem:[#allocation13 + $0x68] sm:$0xff]
    %v636 = vld [vmem:[#allocation13 + $0x70] sm:$0xff]
    %v637 = vld [vmem:[#allocation13 + $0x80] sm:$0xff]
    %v638 = vld [vmem:[#allocation13 + $0x88] sm:$0xff]
    %v639 = vld [vmem:[#allocation13 + $0x90] sm:$0xff]
    %v640 = vld [vmem:[#allocation13 + $0x98] sm:$0xff]
    %v641 = vpack.c.bf16 %v637, %v633
    %v642 = vpack.c.bf16 %v638, %v634
    %v643 = vpack.c.bf16 %v639, %v635
    %v644 = vpack.c.bf16 %v640, %v636
    %649 = vrot.lane.b32.xlu0 %v641, 109
    %v650 = vpop.permute.xlu0 %649
    %651 = vrot.lane.b32.xlu0 %v642, 109
    %v652 = vpop.permute.xlu0 %651
    %653 = vrot.lane.b32.xlu0 %v643, 109
    %v654 = vpop.permute.xlu0 %653
    %655 = vrot.lane.b32.xlu0 %v644, 109
    %v656 = vpop.permute.xlu0 %655
    %v657 = vsel %vm380, %v650, %v652
    %v658 = vsel %vm380, %v652, %v654
    %v659 = vsel %vm380, %v654, %v656
    %663 = vst [vmem:[#allocation2 + $0x198] sm:$0xff] %v657
    %664 = vst [vmem:[#allocation2 + $0x1a0] sm:$0xff] %v658
    %665 = vst [vmem:[#allocation2 + $0x1a8] sm:$0xff] %v659
    %v666 = vld [vmem:[#allocation4] sm:$0xff]
    %v667 = vld [vmem:[#allocation4 + $0x8] sm:$0xff]
    %v668 = vld [vmem:[#allocation2] sm:$0xff]
    %v669 = vld [vmem:[#allocation2 + $0x8] sm:$0xff]
    %v670 = vld [vmem:[#allocation2 + $0x10] sm:$0xff]
    %v671 = vld [vmem:[#allocation2 + $0x18] sm:$0xff]
    %v672 = vld [vmem:[#allocation2 + $0x20] sm:$0xff]
    %v673 = vld [vmem:[#allocation2 + $0x28] sm:$0xff]
    %v674 = vld [vmem:[#allocation2 + $0x30] sm:$0xff]
    %v675 = vld [vmem:[#allocation2 + $0x38] sm:$0xff]
    %v676 = vld [vmem:[#allocation2 + $0x40] sm:$0xff]
    %v677 = vld [vmem:[#allocation2 + $0x48] sm:$0xff]
    %v678 = vld [vmem:[#allocation2 + $0x50] sm:$0xff]
    %v679 = vld [vmem:[#allocation2 + $0x58] sm:$0xff]
    %v680 = vld [vmem:[#allocation2 + $0x60] sm:$0xff]
    %v681 = vld [vmem:[#allocation2 + $0x68] sm:$0xff]
    %v682 = vld [vmem:[#allocation2 + $0x70] sm:$0xff]
    %v683 = vld [vmem:[#allocation2 + $0x78] sm:$0xff]
    %v684 = vld [vmem:[#allocation2 + $0x80] sm:$0xff]
    %v685 = vld [vmem:[#allocation2 + $0x88] sm:$0xff]
    %v686 = vld [vmem:[#allocation2 + $0x90] sm:$0xff]
    %v687 = vld [vmem:[#allocation2 + $0x98] sm:$0xff]
    %v688 = vld [vmem:[#allocation2 + $0xa0] sm:$0xff]
    %v689 = vld [vmem:[#allocation2 + $0xa8] sm:$0xff]
    %v690 = vld [vmem:[#allocation2 + $0xb0] sm:$0xff]
    %v691 = vld [vmem:[#allocation2 + $0xb8] sm:$0xff]
    %v692 = vld [vmem:[#allocation2 + $0xc0] sm:$0xff]
    %v693 = vld [vmem:[#allocation2 + $0xc8] sm:$0xff]
    %v694 = vld [vmem:[#allocation2 + $0xd0] sm:$0xff]
    %v695 = vld [vmem:[#allocation2 + $0xd8] sm:$0xff]
    %v696 = vld [vmem:[#allocation2 + $0xe0] sm:$0xff]
    %v697 = vld [vmem:[#allocation2 + $0xe8] sm:$0xff]
    %v698 = vld [vmem:[#allocation2 + $0xf0] sm:$0xff]
    %v699 = vld [vmem:[#allocation2 + $0xf8] sm:$0xff]
    %v700 = vld [vmem:[#allocation2 + $0x100] sm:$0xff]
    %v701 = vld [vmem:[#allocation2 + $0x108] sm:$0xff]
    %v702 = vld [vmem:[#allocation2 + $0x110] sm:$0xff]
    %v703 = vld [vmem:[#allocation2 + $0x118] sm:$0xff]
    %v704 = vld [vmem:[#allocation2 + $0x120] sm:$0xff]
    %v705 = vld [vmem:[#allocation2 + $0x128] sm:$0xff]
    %v706 = vld [vmem:[#allocation2 + $0x130] sm:$0xff]
    %v707 = vld [vmem:[#allocation2 + $0x138] sm:$0xff]
    %v708 = vld [vmem:[#allocation2 + $0x140] sm:$0xff]
    %v709 = vld [vmem:[#allocation2 + $0x148] sm:$0xff]
    %v710 = vld [vmem:[#allocation2 + $0x150] sm:$0xff]
    %v711 = vld [vmem:[#allocation2 + $0x158] sm:$0xff]
    %v712 = vld [vmem:[#allocation2 + $0x160] sm:$0xff]
    %v713 = vld [vmem:[#allocation2 + $0x168] sm:$0xff]
    %v714 = vld [vmem:[#allocation2 + $0x170] sm:$0xff]
    %v715 = vld [vmem:[#allocation2 + $0x178] sm:$0xff]
    %v716 = vld [vmem:[#allocation2 + $0x180] sm:$0xff]
    %v717 = vld [vmem:[#allocation2 + $0x188] sm:$0xff]
    %v718 = vld [vmem:[#allocation2 + $0x190] sm:$0xff]
    %v719 = vld [vmem:[#allocation2 + $0x198] sm:$0xff]
    %v720 = vld [vmem:[#allocation2 + $0x1a0] sm:$0xff]
    %v721 = vld [vmem:[#allocation2 + $0x1a8] sm:$0xff]
    %v722 = vld [vmem:[#allocation7] sm:$0xff]
    %v723 = vld [vmem:[#allocation7 + $0x8] sm:$0xff]
    %725 = vset.pattern.permute.xlu0 0
    %726 = vperm.xlu0 %725, %v722
    %v727 = vpop.permute.xlu0 %726
    %730 = vset.pattern.permute.xlu0 0
    %731 = vperm.xlu0 %730, %v723
    %v732 = vpop.permute.xlu0 %731
    %v736 = vunpack.c.l.b16 %v666
    %v737 = vunpack.c.h.b16 %v666
    %v738 = vunpack.c.l.b16 %v667
    %v739 = vunpack.c.h.b16 %v667
    %v740 = vpack.c.b16 %v738, %v736
    %v741 = vpack.c.b16 %v739, %v737
    %vm743 = vcmask 130048
    %v745 = vsel %vm743, %v741, 0
    %747 = vmatprep.subr.bf16.mxu0 %v669
    %748 = vmatpush1.bf16.msra.mxu0 %v668
    %749 = vmatprep.subr.bf16.mxu0 %v675
    %750 = vmatpush1.bf16.msra.mxu0 %v674
    %751 = vmatprep.subr.bf16.mxu0 %v681
    %752 = vmatpush1.bf16.msra.mxu0 %v680
    %753 = vmatprep.subr.bf16.mxu0 %v687
    %754 = vmatpush1.bf16.msra.mxu0 %v686
    %755 = vmatprep.subr.bf16.mxu0 %v693
    %756 = vmatpush1.bf16.msra.mxu0 %v692
    %757 = vmatprep.subr.bf16.mxu0 %v699
    %758 = vmatpush1.bf16.msra.mxu0 %v698
    %759 = vmatprep.subr.bf16.mxu0 %v705
    %760 = vmatpush1.bf16.msra.mxu0 %v704
    %761 = vmatprep.subr.bf16.mxu0 %v711
    %762 = vmatpush1.bf16.msra.mxu0 %v710
    %763 = vmatprep.subr.bf16.mxu0 %v717
    %764 = vmatpush1.bf16.msra.mxu0 %v716
    %765 = vmatprep.subr.bf16.mxu0 0
    %766 = vmatpush1.bf16.msra.mxu0 0
    %767 = vmatprep.subr.bf16.mxu0 0
    %768 = vmatpush1.bf16.msra.mxu0 0
    %769 = vmatprep.subr.bf16.mxu0 0
    %770 = vmatpush1.bf16.msra.mxu0 0
    %771 = vmatprep.subr.bf16.mxu0 0
    %772 = vmatpush1.bf16.msra.mxu0 0
    %773 = vmatprep.subr.bf16.mxu0 0
    %774 = vmatpush1.bf16.msra.mxu0 0
    %775 = vmatprep.subr.bf16.mxu0 0
    %776 = vmatpush1.bf16.msra.mxu0 0
    %777 = vmatprep.subr.bf16.mxu0 0
    %778 = vmatpush1.bf16.msra.mxu0 0
    %779 = vmatprep.mubr.bf16.mxu0 %v745
    %780 = vmatmul.mubr.bf16.gmra.mrb[0].mxu0 %v740
    %v781 = vpop.f32.mrb[0].mxu0
    %v782 = vadd.f32 %v727, %v781
    %v783 = vpop.f32.mrb[0].mxu0
    %v784 = vadd.f32 %v727, %v783
    %v785 = vpop.f32.mrb[0].mxu0
    %v786 = vadd.f32 %v732, %v785
    %v787 = vpop.f32.mrb[0].mxu0
    %v788 = vadd.f32 %v732, %v787
    %789 = vdwg.mxu0
    %790 = vmatprep.subr.bf16.mxu0 %v671
    %791 = vmatpush1.bf16.msra.mxu0 %v670
    %792 = vmatprep.subr.bf16.mxu0 %v677
    %793 = vmatpush1.bf16.msra.mxu0 %v676
    %794 = vmatprep.subr.bf16.mxu0 %v683
    %795 = vmatpush1.bf16.msra.mxu0 %v682
    %796 = vmatprep.subr.bf16.mxu0 %v689
    %797 = vmatpush1.bf16.msra.mxu0 %v688
    %798 = vmatprep.subr.bf16.mxu0 %v695
    %799 = vmatpush1.bf16.msra.mxu0 %v694
    %800 = vmatprep.subr.bf16.mxu0 %v701
    %801 = vmatpush1.bf16.msra.mxu0 %v700
    %802 = vmatprep.subr.bf16.mxu0 %v707
    %803 = vmatpush1.bf16.msra.mxu0 %v706
    %804 = vmatprep.subr.bf16.mxu0 %v713
    %805 = vmatpush1.bf16.msra.mxu0 %v712
    %806 = vmatprep.subr.bf16.mxu0 %v719
    %807 = vmatpush1.bf16.msra.mxu0 %v718
    %808 = vmatprep.subr.bf16.mxu0 0
    %809 = vmatpush1.bf16.msra.mxu0 0
    %810 = vmatprep.subr.bf16.mxu0 0
    %811 = vmatpush1.bf16.msra.mxu0 0
    %812 = vmatprep.subr.bf16.mxu0 0
    %813 = vmatpush1.bf16.msra.mxu0 0
    %814 = vmatprep.subr.bf16.mxu0 0
    %815 = vmatpush1.bf16.msra.mxu0 0
    %816 = vmatprep.subr.bf16.mxu0 0
    %817 = vmatpush1.bf16.msra.mxu0 0
    %818 = vmatprep.subr.bf16.mxu0 0
    %819 = vmatpush1.bf16.msra.mxu0 0
    %820 = vmatprep.subr.bf16.mxu0 0
    %821 = vmatpush1.bf16.msra.mxu0 0
    %822 = vmatprep.mubr.bf16.mxu0 %v745
    %823 = vmatmul.mubr.bf16.gmra.mrb[0].mxu0 %v740
    %v824 = vpop.f32.mrb[0].mxu0
    %v825 = vadd.f32 %v727, %v824
    %v826 = vpop.f32.mrb[0].mxu0
    %v827 = vadd.f32 %v727, %v826
    %v828 = vpop.f32.mrb[0].mxu0
    %v829 = vadd.f32 %v732, %v828
    %v830 = vpop.f32.mrb[0].mxu0
    %v831 = vadd.f32 %v732, %v830
    %832 = vdwg.mxu0
    %833 = vmatprep.subr.bf16.mxu0 %v673
    %834 = vmatpush1.bf16.msra.mxu0 %v672
    %835 = vmatprep.subr.bf16.mxu0 %v679
    %836 = vmatpush1.bf16.msra.mxu0 %v678
    %837 = vmatprep.subr.bf16.mxu0 %v685
    %838 = vmatpush1.bf16.msra.mxu0 %v684
    %839 = vmatprep.subr.bf16.mxu0 %v691
    %840 = vmatpush1.bf16.msra.mxu0 %v690
    %841 = vmatprep.subr.bf16.mxu0 %v697
    %842 = vmatpush1.bf16.msra.mxu0 %v696
    %843 = vmatprep.subr.bf16.mxu0 %v703
    %844 = vmatpush1.bf16.msra.mxu0 %v702
    %845 = vmatprep.subr.bf16.mxu0 %v709
    %846 = vmatpush1.bf16.msra.mxu0 %v708
    %847 = vmatprep.subr.bf16.mxu0 %v715
    %848 = vmatpush1.bf16.msra.mxu0 %v714
    %849 = vmatprep.subr.bf16.mxu0 %v721
    %850 = vmatpush1.bf16.msra.mxu0 %v720
    %851 = vmatprep.subr.bf16.mxu0 0
    %852 = vmatpush1.bf16.msra.mxu0 0
    %853 = vmatprep.subr.bf16.mxu0 0
    %854 = vmatpush1.bf16.msra.mxu0 0
    %855 = vmatprep.subr.bf16.mxu0 0
    %856 = vmatpush1.bf16.msra.mxu0 0
    %857 = vmatprep.subr.bf16.mxu0 0
    %858 = vmatpush1.bf16.msra.mxu0 0
    %859 = vmatprep.subr.bf16.mxu0 0
    %860 = vmatpush1.bf16.msra.mxu0 0
    %861 = vmatprep.subr.bf16.mxu0 0
    %862 = vmatpush1.bf16.msra.mxu0 0
    %863 = vmatprep.subr.bf16.mxu0 0
    %864 = vmatpush1.bf16.msra.mxu0 0
    %865 = vmatprep.mubr.bf16.mxu0 %v745
    %866 = vmatmul.mubr.bf16.gmra.mrb[0].mxu0 %v740
    %v867 = vpop.f32.mrb[0].mxu0
    %v868 = vadd.f32 %v727, %v867
    %v869 = vpop.f32.mrb[0].mxu0
    %v870 = vadd.f32 %v727, %v869
    %v871 = vpop.f32.mrb[0].mxu0
    %v872 = vadd.f32 %v732, %v871
    %v873 = vpop.f32.mrb[0].mxu0
    %v874 = vadd.f32 %v732, %v873
    %875 = vdwg.mxu0
    %v876 = vmax.f32 %v782, 0.0
    %v877 = vmax.f32 %v784, 0.0
    %v878 = vmax.f32 %v825, 0.0
    %v879 = vmax.f32 %v827, 0.0
    %v880 = vmax.f32 %v868, 0.0
    %v881 = vmax.f32 %v870, 0.0
    %v882 = vmax.f32 %v786, 0.0
    %v883 = vmax.f32 %v788, 0.0
    %v884 = vmax.f32 %v829, 0.0
    %v885 = vmax.f32 %v831, 0.0
    %v886 = vmax.f32 %v872, 0.0
    %v887 = vmax.f32 %v874, 0.0
    %v889 = vlaneseq
    %v890 = vshrl.u32 %v889, 7
    %v891 = vsub.s32 0, %v890
    %v892 = vrot.slane %v105, %v891
    %v893 = vlaneseq
    %v894 = vshrl.u32 %v893, 7
    %v895 = vsub.s32 1, %v894
    %v896 = vrot.slane %v105, %v895
    %v897 = vlaneseq
    %v898 = vshrl.u32 %v897, 7
    %v899 = vsub.s32 2, %v898
    %v900 = vrot.slane %v105, %v899
    %v901 = vlaneseq
    %v902 = vshrl.u32 %v901, 7
    %v903 = vsub.s32 3, %v902
    %v904 = vrot.slane %v105, %v903
    %v905 = vlaneseq
    %v906 = vshrl.u32 %v905, 7
    %v907 = vsub.s32 4, %v906
    %v908 = vrot.slane %v105, %v907
    %v909 = vlaneseq
    %v910 = vshrl.u32 %v909, 7
    %v911 = vsub.s32 5, %v910
    %v912 = vrot.slane %v105, %v911
    %v919 = vmul.f32 %v876, %v892
    %v920 = vmul.f32 %v877, %v896
    %v921 = vmul.f32 %v878, %v900
    %v922 = vmul.f32 %v879, %v904
    %v923 = vmul.f32 %v880, %v908
    %v924 = vmul.f32 %v881, %v912
    %v925 = vmul.f32 %v882, %v892
    %v926 = vmul.f32 %v883, %v896
    %v927 = vmul.f32 %v884, %v900
    %v928 = vmul.f32 %v885, %v904
    %v929 = vmul.f32 %v886, %v908
    %v930 = vmul.f32 %v887, %v912
    %v931 = vpack.c.bf16 %v925, %v919
    %v932 = vpack.c.bf16 %v926, %v920
    %v933 = vpack.c.bf16 %v927, %v921
    %v934 = vpack.c.bf16 %v928, %v922
    %v935 = vpack.c.bf16 %v929, %v923
    %v936 = vpack.c.bf16 %v930, %v924
    %937 = vst [vmem:[#allocation3] sm:$0xff] 0
    %938 = vst [vmem:[#allocation3 + $0x20] sm:$0xff] 0
    %939 = vst [vmem:[#allocation3 + $0x8] sm:$0xff] %v931
    %940 = vst [vmem:[#allocation3 + $0x10] sm:$0xff] %v932
    %941 = vst [vmem:[#allocation3 + $0x18] sm:$0xff] %v933
    %942 = vst [vmem:[#allocation3 + $0x28] sm:$0xff] 0
    %943 = vst [vmem:[#allocation3 + $0x48] sm:$0xff] 0
    %944 = vst [vmem:[#allocation3 + $0x30] sm:$0xff] %v934
    %945 = vst [vmem:[#allocation3 + $0x38] sm:$0xff] %v935
    %946 = vst [vmem:[#allocation3 + $0x40] sm:$0xff] %v936
    %v947 = vld [vmem:[#allocation3] sm:$0xff]
    %v948 = vld [vmem:[#allocation3 + $0x8] sm:$0xff]
    %v949 = vld [vmem:[#allocation3 + $0x10] sm:$0xff]
    %v950 = vld [vmem:[#allocation3 + $0x18] sm:$0xff]
    %955 = vrot.lane.b32.xlu0 %v947, 19
    %v956 = vpop.permute.xlu0 %955
    %957 = vrot.lane.b32.xlu0 %v948, 19
    %v958 = vpop.permute.xlu0 %957
    %959 = vrot.lane.b32.xlu0 %v949, 19
    %v960 = vpop.permute.xlu0 %959
    %961 = vrot.lane.b32.xlu0 %v950, 19
    %v962 = vpop.permute.xlu0 %961
    %v963 = vsel %vm130, %v956, %v958
    %v964 = vsel %vm130, %v958, %v960
    %v965 = vsel %vm130, %v960, %v962
    %969 = vst [vmem:[#allocation2] sm:$0xff] %v963
    %970 = vst [vmem:[#allocation2 + $0x8] sm:$0xff] %v964
    %971 = vst [vmem:[#allocation2 + $0x10] sm:$0xff] %v965
    %v972 = vld [vmem:[#allocation3] sm:$0xff]
    %v973 = vld [vmem:[#allocation3 + $0x8] sm:$0xff]
    %v974 = vld [vmem:[#allocation3 + $0x10] sm:$0xff]
    %v975 = vld [vmem:[#allocation3 + $0x18] sm:$0xff]
    %980 = vrot.lane.b32.xlu0 %v972, 18
    %v981 = vpop.permute.xlu0 %980
    %982 = vrot.lane.b32.xlu0 %v973, 18
    %v983 = vpop.permute.xlu0 %982
    %984 = vrot.lane.b32.xlu0 %v974, 18
    %v985 = vpop.permute.xlu0 %984
    %986 = vrot.lane.b32.xlu0 %v975, 18
    %v987 = vpop.permute.xlu0 %986
    %v988 = vsel %vm164, %v981, %v983
    %v989 = vsel %vm164, %v983, %v985
    %v990 = vsel %vm164, %v985, %v987
    %994 = vst [vmem:[#allocation2 + $0x30] sm:$0xff] %v988
    %995 = vst [vmem:[#allocation2 + $0x38] sm:$0xff] %v989
    %996 = vst [vmem:[#allocation2 + $0x40] sm:$0xff] %v990
    %v997 = vld [vmem:[#allocation3] sm:$0xff]
    %v998 = vld [vmem:[#allocation3 + $0x8] sm:$0xff]
    %v999 = vld [vmem:[#allocation3 + $0x10] sm:$0xff]
    %v1000 = vld [vmem:[#allocation3 + $0x18] sm:$0xff]
    %1005 = vrot.lane.b32.xlu0 %v997, 17
    %v1006 = vpop.permute.xlu0 %1005
    %1007 = vrot.lane.b32.xlu0 %v998, 17
    %v1008 = vpop.permute.xlu0 %1007
    %1009 = vrot.lane.b32.xlu0 %v999, 17
    %v1010 = vpop.permute.xlu0 %1009
    %1011 = vrot.lane.b32.xlu0 %v1000, 17
    %v1012 = vpop.permute.xlu0 %1011
    %v1013 = vsel %vm198, %v1006, %v1008
    %v1014 = vsel %vm198, %v1008, %v1010
    %v1015 = vsel %vm198, %v1010, %v1012
    %1019 = vst [vmem:[#allocation2 + $0x60] sm:$0xff] %v1013
    %1020 = vst [vmem:[#allocation2 + $0x68] sm:$0xff] %v1014
    %1021 = vst [vmem:[#allocation2 + $0x70] sm:$0xff] %v1015
    %v1022 = vld [vmem:[#allocation3] sm:$0xff]
    %v1023 = vld [vmem:[#allocation3 + $0x8] sm:$0xff]
    %v1024 = vld [vmem:[#allocation3 + $0x10] sm:$0xff]
    %v1025 = vld [vmem:[#allocation3 + $0x18] sm:$0xff]
    %1030 = vrot.lane.b32.xlu0 %v1022, 1
    %v1031 = vpop.permute.xlu0 %1030
    %1032 = vrot.lane.b32.xlu0 %v1023, 1
    %v1033 = vpop.permute.xlu0 %1032
    %1034 = vrot.lane.b32.xlu0 %v1024, 1
    %v1035 = vpop.permute.xlu0 %1034
    %1036 = vrot.lane.b32.xlu0 %v1025, 1
    %v1037 = vpop.permute.xlu0 %1036
    %v1038 = vsel %vm232, %v1031, %v1033
    %v1039 = vsel %vm232, %v1033, %v1035
    %v1040 = vsel %vm232, %v1035, %v1037
    %1044 = vst [vmem:[#allocation2 + $0x90] sm:$0xff] %v1038
    %1045 = vst [vmem:[#allocation2 + $0x98] sm:$0xff] %v1039
    %1046 = vst [vmem:[#allocation2 + $0xa0] sm:$0xff] %v1040
    %v1047 = vld [vmem:[#allocation3 + $0x8] sm:$0xff]
    %v1048 = vld [vmem:[#allocation3 + $0x10] sm:$0xff]
    %v1049 = vld [vmem:[#allocation3 + $0x18] sm:$0xff]
    %1050 = vst [vmem:[#allocation2 + $0xc0] sm:$0xff] %v1047
    %1051 = vst [vmem:[#allocation2 + $0xc8] sm:$0xff] %v1048
    %1052 = vst [vmem:[#allocation2 + $0xd0] sm:$0xff] %v1049
    %v1053 = vld [vmem:[#allocation3 + $0x8] sm:$0xff]
    %v1054 = vld [vmem:[#allocation3 + $0x10] sm:$0xff]
    %v1055 = vld [vmem:[#allocation3 + $0x18] sm:$0xff]
    %v1056 = vld [vmem:[#allocation3 + $0x20] sm:$0xff]
    %1061 = vrot.lane.b32.xlu0 %v1053, 127
    %v1062 = vpop.permute.xlu0 %1061
    %1063 = vrot.lane.b32.xlu0 %v1054, 127
    %v1064 = vpop.permute.xlu0 %1063
    %1065 = vrot.lane.b32.xlu0 %v1055, 127
    %v1066 = vpop.permute.xlu0 %1065
    %1067 = vrot.lane.b32.xlu0 %v1056, 127
    %v1068 = vpop.permute.xlu0 %1067
    %v1069 = vsel %vm278, %v1062, %v1064
    %v1070 = vsel %vm278, %v1064, %v1066
    %v1071 = vsel %vm278, %v1066, %v1068
    %1075 = vst [vmem:[#allocation2 + $0xf0] sm:$0xff] %v1069
    %1076 = vst [vmem:[#allocation2 + $0xf8] sm:$0xff] %v1070
    %1077 = vst [vmem:[#allocation2 + $0x100] sm:$0xff] %v1071
    %v1078 = vld [vmem:[#allocation3 + $0x8] sm:$0xff]
    %v1079 = vld [vmem:[#allocation3 + $0x10] sm:$0xff]
    %v1080 = vld [vmem:[#allocation3 + $0x18] sm:$0xff]
    %v1081 = vld [vmem:[#allocation3 + $0x20] sm:$0xff]
    %1086 = vrot.lane.b32.xlu0 %v1078, 111
    %v1087 = vpop.permute.xlu0 %1086
    %1088 = vrot.lane.b32.xlu0 %v1079, 111
    %v1089 = vpop.permute.xlu0 %1088
    %1090 = vrot.lane.b32.xlu0 %v1080, 111
    %v1091 = vpop.permute.xlu0 %1090
    %1092 = vrot.lane.b32.xlu0 %v1081, 111
    %v1093 = vpop.permute.xlu0 %1092
    %v1094 = vsel %vm312, %v1087, %v1089
    %v1095 = vsel %vm312, %v1089, %v1091
    %v1096 = vsel %vm312, %v1091, %v1093
    %1100 = vst [vmem:[#allocation2 + $0x120] sm:$0xff] %v1094
    %1101 = vst [vmem:[#allocation2 + $0x128] sm:$0xff] %v1095
    %1102 = vst [vmem:[#allocation2 + $0x130] sm:$0xff] %v1096
    %v1103 = vld [vmem:[#allocation3 + $0x8] sm:$0xff]
    %v1104 = vld [vmem:[#allocation3 + $0x10] sm:$0xff]
    %v1105 = vld [vmem:[#allocation3 + $0x18] sm:$0xff]
    %v1106 = vld [vmem:[#allocation3 + $0x20] sm:$0xff]
    %1111 = vrot.lane.b32.xlu0 %v1103, 110
    %v1112 = vpop.permute.xlu0 %1111
    %1113 = vrot.lane.b32.xlu0 %v1104, 110
    %v1114 = vpop.permute.xlu0 %1113
    %1115 = vrot.lane.b32.xlu0 %v1105, 110
    %v1116 = vpop.permute.xlu0 %1115
    %1117 = vrot.lane.b32.xlu0 %v1106, 110
    %v1118 = vpop.permute.xlu0 %1117
    %v1119 = vsel %vm346, %v1112, %v1114
    %v1120 = vsel %vm346, %v1114, %v1116
    %v1121 = vsel %vm346, %v1116, %v1118
    %1125 = vst [vmem:[#allocation2 + $0x150] sm:$0xff] %v1119
    %1126 = vst [vmem:[#allocation2 + $0x158] sm:$0xff] %v1120
    %1127 = vst [vmem:[#allocation2 + $0x160] sm:$0xff] %v1121
    %v1128 = vld [vmem:[#allocation3 + $0x8] sm:$0xff]
    %v1129 = vld [vmem:[#allocation3 + $0x10] sm:$0xff]
    %v1130 = vld [vmem:[#allocation3 + $0x18] sm:$0xff]
    %v1131 = vld [vmem:[#allocation3 + $0x20] sm:$0xff]
    %1136 = vrot.lane.b32.xlu0 %v1128, 109
    %v1137 = vpop.permute.xlu0 %1136
    %1138 = vrot.lane.b32.xlu0 %v1129, 109
    %v1139 = vpop.permute.xlu0 %1138
    %1140 = vrot.lane.b32.xlu0 %v1130, 109
    %v1141 = vpop.permute.xlu0 %1140
    %1142 = vrot.lane.b32.xlu0 %v1131, 109
    %v1143 = vpop.permute.xlu0 %1142
    %v1144 = vsel %vm380, %v1137, %v1139
    %v1145 = vsel %vm380, %v1139, %v1141
    %v1146 = vsel %vm380, %v1141, %v1143
    %1150 = vst [vmem:[#allocation2 + $0x180] sm:$0xff] %v1144
    %1151 = vst [vmem:[#allocation2 + $0x188] sm:$0xff] %v1145
    %1152 = vst [vmem:[#allocation2 + $0x190] sm:$0xff] %v1146
    %v1153 = vld [vmem:[#allocation3 + $0x28] sm:$0xff]
    %v1154 = vld [vmem:[#allocation3 + $0x30] sm:$0xff]
    %v1155 = vld [vmem:[#allocation3 + $0x38] sm:$0xff]
    %v1156 = vld [vmem:[#allocation3 + $0x40] sm:$0xff]
    %1161 = vrot.lane.b32.xlu0 %v1153, 19
    %v1162 = vpop.permute.xlu0 %1161
    %1163 = vrot.lane.b32.xlu0 %v1154, 19
    %v1164 = vpop.permute.xlu0 %1163
    %1165 = vrot.lane.b32.xlu0 %v1155, 19
    %v1166 = vpop.permute.xlu0 %1165
    %1167 = vrot.lane.b32.xlu0 %v1156, 19
    %v1168 = vpop.permute.xlu0 %1167
    %v1169 = vsel %vm130, %v1162, %v1164
    %v1170 = vsel %vm130, %v1164, %v1166
    %v1171 = vsel %vm130, %v1166, %v1168
    %1175 = vst [vmem:[#allocation2 + $0x18] sm:$0xff] %v1169
    %1176 = vst [vmem:[#allocation2 + $0x20] sm:$0xff] %v1170
    %1177 = vst [vmem:[#allocation2 + $0x28] sm:$0xff] %v1171
    %v1178 = vld [vmem:[#allocation3 + $0x28] sm:$0xff]
    %v1179 = vld [vmem:[#allocation3 + $0x30] sm:$0xff]
    %v1180 = vld [vmem:[#allocation3 + $0x38] sm:$0xff]
    %v1181 = vld [vmem:[#allocation3 + $0x40] sm:$0xff]
    %1186 = vrot.lane.b32.xlu0 %v1178, 18
    %v1187 = vpop.permute.xlu0 %1186
    %1188 = vrot.lane.b32.xlu0 %v1179, 18
    %v1189 = vpop.permute.xlu0 %1188
    %1190 = vrot.lane.b32.xlu0 %v1180, 18
    %v1191 = vpop.permute.xlu0 %1190
    %1192 = vrot.lane.b32.xlu0 %v1181, 18
    %v1193 = vpop.permute.xlu0 %1192
    %v1194 = vsel %vm164, %v1187, %v1189
    %v1195 = vsel %vm164, %v1189, %v1191
    %v1196 = vsel %vm164, %v1191, %v1193
    %1200 = vst [vmem:[#allocation2 + $0x48] sm:$0xff] %v1194
    %1201 = vst [vmem:[#allocation2 + $0x50] sm:$0xff] %v1195
    %1202 = vst [vmem:[#allocation2 + $0x58] sm:$0xff] %v1196
    %v1203 = vld [vmem:[#allocation3 + $0x28] sm:$0xff]
    %v1204 = vld [vmem:[#allocation3 + $0x30] sm:$0xff]
    %v1205 = vld [vmem:[#allocation3 + $0x38] sm:$0xff]
    %v1206 = vld [vmem:[#allocation3 + $0x40] sm:$0xff]
    %1211 = vrot.lane.b32.xlu0 %v1203, 17
    %v1212 = vpop.permute.xlu0 %1211
    %1213 = vrot.lane.b32.xlu0 %v1204, 17
    %v1214 = vpop.permute.xlu0 %1213
    %1215 = vrot.lane.b32.xlu0 %v1205, 17
    %v1216 = vpop.permute.xlu0 %1215
    %1217 = vrot.lane.b32.xlu0 %v1206, 17
    %v1218 = vpop.permute.xlu0 %1217
    %v1219 = vsel %vm198, %v1212, %v1214
    %v1220 = vsel %vm198, %v1214, %v1216
    %v1221 = vsel %vm198, %v1216, %v1218
    %1225 = vst [vmem:[#allocation2 + $0x78] sm:$0xff] %v1219
    %1226 = vst [vmem:[#allocation2 + $0x80] sm:$0xff] %v1220
    %1227 = vst [vmem:[#allocation2 + $0x88] sm:$0xff] %v1221
    %v1228 = vld [vmem:[#allocation3 + $0x28] sm:$0xff]
    %v1229 = vld [vmem:[#allocation3 + $0x30] sm:$0xff]
    %v1230 = vld [vmem:[#allocation3 + $0x38] sm:$0xff]
    %v1231 = vld [vmem:[#allocation3 + $0x40] sm:$0xff]
    %1236 = vrot.lane.b32.xlu0 %v1228, 1
    %v1237 = vpop.permute.xlu0 %1236
    %1238 = vrot.lane.b32.xlu0 %v1229, 1
    %v1239 = vpop.permute.xlu0 %1238
    %1240 = vrot.lane.b32.xlu0 %v1230, 1
    %v1241 = vpop.permute.xlu0 %1240
    %1242 = vrot.lane.b32.xlu0 %v1231, 1
    %v1243 = vpop.permute.xlu0 %1242
    %v1244 = vsel %vm232, %v1237, %v1239
    %v1245 = vsel %vm232, %v1239, %v1241
    %v1246 = vsel %vm232, %v1241, %v1243
    %1250 = vst [vmem:[#allocation2 + $0xa8] sm:$0xff] %v1244
    %1251 = vst [vmem:[#allocation2 + $0xb0] sm:$0xff] %v1245
    %1252 = vst [vmem:[#allocation2 + $0xb8] sm:$0xff] %v1246
    %v1253 = vld [vmem:[#allocation3 + $0x30] sm:$0xff]
    %v1254 = vld [vmem:[#allocation3 + $0x38] sm:$0xff]
    %v1255 = vld [vmem:[#allocation3 + $0x40] sm:$0xff]
    %1256 = vst [vmem:[#allocation2 + $0xd8] sm:$0xff] %v1253
    %1257 = vst [vmem:[#allocation2 + $0xe0] sm:$0xff] %v1254
    %1258 = vst [vmem:[#allocation2 + $0xe8] sm:$0xff] %v1255
    %v1259 = vld [vmem:[#allocation3 + $0x30] sm:$0xff]
    %v1260 = vld [vmem:[#allocation3 + $0x38] sm:$0xff]
    %v1261 = vld [vmem:[#allocation3 + $0x40] sm:$0xff]
    %v1262 = vld [vmem:[#allocation3 + $0x48] sm:$0xff]
    %1267 = vrot.lane.b32.xlu0 %v1259, 127
    %v1268 = vpop.permute.xlu0 %1267
    %1269 = vrot.lane.b32.xlu0 %v1260, 127
    %v1270 = vpop.permute.xlu0 %1269
    %1271 = vrot.lane.b32.xlu0 %v1261, 127
    %v1272 = vpop.permute.xlu0 %1271
    %1273 = vrot.lane.b32.xlu0 %v1262, 127
    %v1274 = vpop.permute.xlu0 %1273
    %v1275 = vsel %vm278, %v1268, %v1270
    %v1276 = vsel %vm278, %v1270, %v1272
    %v1277 = vsel %vm278, %v1272, %v1274
    %1281 = vst [vmem:[#allocation2 + $0x108] sm:$0xff] %v1275
    %1282 = vst [vmem:[#allocation2 + $0x110] sm:$0xff] %v1276
    %1283 = vst [vmem:[#allocation2 + $0x118] sm:$0xff] %v1277
    %v1284 = vld [vmem:[#allocation3 + $0x30] sm:$0xff]
    %v1285 = vld [vmem:[#allocation3 + $0x38] sm:$0xff]
    %v1286 = vld [vmem:[#allocation3 + $0x40] sm:$0xff]
    %v1287 = vld [vmem:[#allocation3 + $0x48] sm:$0xff]
    %1292 = vrot.lane.b32.xlu0 %v1284, 111
    %v1293 = vpop.permute.xlu0 %1292
    %1294 = vrot.lane.b32.xlu0 %v1285, 111
    %v1295 = vpop.permute.xlu0 %1294
    %1296 = vrot.lane.b32.xlu0 %v1286, 111
    %v1297 = vpop.permute.xlu0 %1296
    %1298 = vrot.lane.b32.xlu0 %v1287, 111
    %v1299 = vpop.permute.xlu0 %1298
    %v1300 = vsel %vm312, %v1293, %v1295
    %v1301 = vsel %vm312, %v1295, %v1297
    %v1302 = vsel %vm312, %v1297, %v1299
    %1306 = vst [vmem:[#allocation2 + $0x138] sm:$0xff] %v1300
    %1307 = vst [vmem:[#allocation2 + $0x140] sm:$0xff] %v1301
    %1308 = vst [vmem:[#allocation2 + $0x148] sm:$0xff] %v1302
    %v1309 = vld [vmem:[#allocation3 + $0x30] sm:$0xff]
    %v1310 = vld [vmem:[#allocation3 + $0x38] sm:$0xff]
    %v1311 = vld [vmem:[#allocation3 + $0x40] sm:$0xff]
    %v1312 = vld [vmem:[#allocation3 + $0x48] sm:$0xff]
    %1317 = vrot.lane.b32.xlu0 %v1309, 110
    %v1318 = vpop.permute.xlu0 %1317
    %1319 = vrot.lane.b32.xlu0 %v1310, 110
    %v1320 = vpop.permute.xlu0 %1319
    %1321 = vrot.lane.b32.xlu0 %v1311, 110
    %v1322 = vpop.permute.xlu0 %1321
    %1323 = vrot.lane.b32.xlu0 %v1312, 110
    %v1324 = vpop.permute.xlu0 %1323
    %v1325 = vsel %vm346, %v1318, %v1320
    %v1326 = vsel %vm346, %v1320, %v1322
    %v1327 = vsel %vm346, %v1322, %v1324
    %1331 = vst [vmem:[#allocation2 + $0x168] sm:$0xff] %v1325
    %1332 = vst [vmem:[#allocation2 + $0x170] sm:$0xff] %v1326
    %1333 = vst [vmem:[#allocation2 + $0x178] sm:$0xff] %v1327
    %v1334 = vld [vmem:[#allocation3 + $0x30] sm:$0xff]
    %v1335 = vld [vmem:[#allocation3 + $0x38] sm:$0xff]
    %v1336 = vld [vmem:[#allocation3 + $0x40] sm:$0xff]
    %v1337 = vld [vmem:[#allocation3 + $0x48] sm:$0xff]
    %1342 = vrot.lane.b32.xlu0 %v1334, 109
    %v1343 = vpop.permute.xlu0 %1342
    %1344 = vrot.lane.b32.xlu0 %v1335, 109
    %v1345 = vpop.permute.xlu0 %1344
    %1346 = vrot.lane.b32.xlu0 %v1336, 109
    %v1347 = vpop.permute.xlu0 %1346
    %1348 = vrot.lane.b32.xlu0 %v1337, 109
    %v1349 = vpop.permute.xlu0 %1348
    %v1350 = vsel %vm380, %v1343, %v1345
    %v1351 = vsel %vm380, %v1345, %v1347
    %v1352 = vsel %vm380, %v1347, %v1349
    %1356 = vst [vmem:[#allocation2 + $0x198] sm:$0xff] %v1350
    %1357 = vst [vmem:[#allocation2 + $0x1a0] sm:$0xff] %v1351
    %1358 = vst [vmem:[#allocation2 + $0x1a8] sm:$0xff] %v1352
    %v1359 = vld [vmem:[#allocation9] sm:$0xff]
    %v1360 = vld [vmem:[#allocation9 + $0x8] sm:$0xff]
    %v1361 = vld [vmem:[#allocation2] sm:$0xff]
    %v1362 = vld [vmem:[#allocation2 + $0x8] sm:$0xff]
    %v1363 = vld [vmem:[#allocation2 + $0x10] sm:$0xff]
    %v1364 = vld [vmem:[#allocation2 + $0x18] sm:$0xff]
    %v1365 = vld [vmem:[#allocation2 + $0x20] sm:$0xff]
    %v1366 = vld [vmem:[#allocation2 + $0x28] sm:$0xff]
    %v1367 = vld [vmem:[#allocation2 + $0x30] sm:$0xff]
    %v1368 = vld [vmem:[#allocation2 + $0x38] sm:$0xff]
    %v1369 = vld [vmem:[#allocation2 + $0x40] sm:$0xff]
    %v1370 = vld [vmem:[#allocation2 + $0x48] sm:$0xff]
    %v1371 = vld [vmem:[#allocation2 + $0x50] sm:$0xff]
    %v1372 = vld [vmem:[#allocation2 + $0x58] sm:$0xff]
    %v1373 = vld [vmem:[#allocation2 + $0x60] sm:$0xff]
    %v1374 = vld [vmem:[#allocation2 + $0x68] sm:$0xff]
    %v1375 = vld [vmem:[#allocation2 + $0x70] sm:$0xff]
    %v1376 = vld [vmem:[#allocation2 + $0x78] sm:$0xff]
    %v1377 = vld [vmem:[#allocation2 + $0x80] sm:$0xff]
    %v1378 = vld [vmem:[#allocation2 + $0x88] sm:$0xff]
    %v1379 = vld [vmem:[#allocation2 + $0x90] sm:$0xff]
    %v1380 = vld [vmem:[#allocation2 + $0x98] sm:$0xff]
    %v1381 = vld [vmem:[#allocation2 + $0xa0] sm:$0xff]
    %v1382 = vld [vmem:[#allocation2 + $0xa8] sm:$0xff]
    %v1383 = vld [vmem:[#allocation2 + $0xb0] sm:$0xff]
    %v1384 = vld [vmem:[#allocation2 + $0xb8] sm:$0xff]
    %v1385 = vld [vmem:[#allocation2 + $0xc0] sm:$0xff]
    %v1386 = vld [vmem:[#allocation2 + $0xc8] sm:$0xff]
    %v1387 = vld [vmem:[#allocation2 + $0xd0] sm:$0xff]
    %v1388 = vld [vmem:[#allocation2 + $0xd8] sm:$0xff]
    %v1389 = vld [vmem:[#allocation2 + $0xe0] sm:$0xff]
    %v1390 = vld [vmem:[#allocation2 + $0xe8] sm:$0xff]
    %v1391 = vld [vmem:[#allocation2 + $0xf0] sm:$0xff]
    %v1392 = vld [vmem:[#allocation2 + $0xf8] sm:$0xff]
    %v1393 = vld [vmem:[#allocation2 + $0x100] sm:$0xff]
    %v1394 = vld [vmem:[#allocation2 + $0x108] sm:$0xff]
    %v1395 = vld [vmem:[#allocation2 + $0x110] sm:$0xff]
    %v1396 = vld [vmem:[#allocation2 + $0x118] sm:$0xff]
    %v1397 = vld [vmem:[#allocation2 + $0x120] sm:$0xff]
    %v1398 = vld [vmem:[#allocation2 + $0x128] sm:$0xff]
    %v1399 = vld [vmem:[#allocation2 + $0x130] sm:$0xff]
    %v1400 = vld [vmem:[#allocation2 + $0x138] sm:$0xff]
    %v1401 = vld [vmem:[#allocation2 + $0x140] sm:$0xff]
    %v1402 = vld [vmem:[#allocation2 + $0x148] sm:$0xff]
    %v1403 = vld [vmem:[#allocation2 + $0x150] sm:$0xff]
    %v1404 = vld [vmem:[#allocation2 + $0x158] sm:$0xff]
    %v1405 = vld [vmem:[#allocation2 + $0x160] sm:$0xff]
    %v1406 = vld [vmem:[#allocation2 + $0x168] sm:$0xff]
    %v1407 = vld [vmem:[#allocation2 + $0x170] sm:$0xff]
    %v1408 = vld [vmem:[#allocation2 + $0x178] sm:$0xff]
    %v1409 = vld [vmem:[#allocation2 + $0x180] sm:$0xff]
    %v1410 = vld [vmem:[#allocation2 + $0x188] sm:$0xff]
    %v1411 = vld [vmem:[#allocation2 + $0x190] sm:$0xff]
    %v1412 = vld [vmem:[#allocation2 + $0x198] sm:$0xff]
    %v1413 = vld [vmem:[#allocation2 + $0x1a0] sm:$0xff]
    %v1414 = vld [vmem:[#allocation2 + $0x1a8] sm:$0xff]
    %v1417 = vunpack.c.l.b16 %v1359
    %v1418 = vunpack.c.h.b16 %v1359
    %v1419 = vunpack.c.l.b16 %v1360
    %v1420 = vunpack.c.h.b16 %v1360
    %v1421 = vpack.c.b16 %v1419, %v1417
    %v1422 = vpack.c.b16 %v1420, %v1418
    %v1425 = vsel %vm743, %v1422, 0
    %1427 = vmatprep.subr.bf16.mxu0 %v1362
    %1428 = vmatpush1.bf16.msra.mxu0 %v1361
    %1429 = vmatprep.subr.bf16.mxu0 %v1368
    %1430 = vmatpush1.bf16.msra.mxu0 %v1367
    %1431 = vmatprep.subr.bf16.mxu0 %v1374
    %1432 = vmatpush1.bf16.msra.mxu0 %v1373
    %1433 = vmatprep.subr.bf16.mxu0 %v1380
    %1434 = vmatpush1.bf16.msra.mxu0 %v1379
    %1435 = vmatprep.subr.bf16.mxu0 %v1386
    %1436 = vmatpush1.bf16.msra.mxu0 %v1385
    %1437 = vmatprep.subr.bf16.mxu0 %v1392
    %1438 = vmatpush1.bf16.msra.mxu0 %v1391
    %1439 = vmatprep.subr.bf16.mxu0 %v1398
    %1440 = vmatpush1.bf16.msra.mxu0 %v1397
    %1441 = vmatprep.subr.bf16.mxu0 %v1404
    %1442 = vmatpush1.bf16.msra.mxu0 %v1403
    %1443 = vmatprep.subr.bf16.mxu0 %v1410
    %1444 = vmatpush1.bf16.msra.mxu0 %v1409
    %1445 = vmatprep.subr.bf16.mxu0 0
    %1446 = vmatpush1.bf16.msra.mxu0 0
    %1447 = vmatprep.subr.bf16.mxu0 0
    %1448 = vmatpush1.bf16.msra.mxu0 0
    %1449 = vmatprep.subr.bf16.mxu0 0
    %1450 = vmatpush1.bf16.msra.mxu0 0
    %1451 = vmatprep.subr.bf16.mxu0 0
    %1452 = vmatpush1.bf16.msra.mxu0 0
    %1453 = vmatprep.subr.bf16.mxu0 0
    %1454 = vmatpush1.bf16.msra.mxu0 0
    %1455 = vmatprep.subr.bf16.mxu0 0
    %1456 = vmatpush1.bf16.msra.mxu0 0
    %1457 = vmatprep.subr.bf16.mxu0 0
    %1458 = vmatpush1.bf16.msra.mxu0 0
    %1459 = vmatprep.mubr.bf16.mxu0 %v1425
    %1460 = vmatmul.mubr.bf16.gmra.mrb[0].mxu0 %v1421
    %v1461 = vpop.f32.mrb[0].mxu0
    %v1462 = vadd.f32 0.0, %v1461
    %v1463 = vpop.f32.mrb[0].mxu0
    %v1464 = vadd.f32 0.0, %v1463
    %v1465 = vpop.f32.mrb[0].mxu0
    %v1466 = vadd.f32 0.0, %v1465
    %v1467 = vpop.f32.mrb[0].mxu0
    %v1468 = vadd.f32 0.0, %v1467
    %1469 = vdwg.mxu0
    %1470 = vmatprep.subr.bf16.mxu0 %v1364
    %1471 = vmatpush1.bf16.msra.mxu0 %v1363
    %1472 = vmatprep.subr.bf16.mxu0 %v1370
    %1473 = vmatpush1.bf16.msra.mxu0 %v1369
    %1474 = vmatprep.subr.bf16.mxu0 %v1376
    %1475 = vmatpush1.bf16.msra.mxu0 %v1375
    %1476 = vmatprep.subr.bf16.mxu0 %v1382
    %1477 = vmatpush1.bf16.msra.mxu0 %v1381
    %1478 = vmatprep.subr.bf16.mxu0 %v1388
    %1479 = vmatpush1.bf16.msra.mxu0 %v1387
    %1480 = vmatprep.subr.bf16.mxu0 %v1394
    %1481 = vmatpush1.bf16.msra.mxu0 %v1393
    %1482 = vmatprep.subr.bf16.mxu0 %v1400
    %1483 = vmatpush1.bf16.msra.mxu0 %v1399
    %1484 = vmatprep.subr.bf16.mxu0 %v1406
    %1485 = vmatpush1.bf16.msra.mxu0 %v1405
    %1486 = vmatprep.subr.bf16.mxu0 %v1412
    %1487 = vmatpush1.bf16.msra.mxu0 %v1411
    %1488 = vmatprep.subr.bf16.mxu0 0
    %1489 = vmatpush1.bf16.msra.mxu0 0
    %1490 = vmatprep.subr.bf16.mxu0 0
    %1491 = vmatpush1.bf16.msra.mxu0 0
    %1492 = vmatprep.subr.bf16.mxu0 0
    %1493 = vmatpush1.bf16.msra.mxu0 0
    %1494 = vmatprep.subr.bf16.mxu0 0
    %1495 = vmatpush1.bf16.msra.mxu0 0
    %1496 = vmatprep.subr.bf16.mxu0 0
    %1497 = vmatpush1.bf16.msra.mxu0 0
    %1498 = vmatprep.subr.bf16.mxu0 0
    %1499 = vmatpush1.bf16.msra.mxu0 0
    %1500 = vmatprep.subr.bf16.mxu0 0
    %1501 = vmatpush1.bf16.msra.mxu0 0
    %1502 = vmatprep.mubr.bf16.mxu0 %v1425
    %1503 = vmatmul.mubr.bf16.gmra.mrb[0].mxu0 %v1421
    %v1504 = vpop.f32.mrb[0].mxu0
    %v1505 = vadd.f32 0.0, %v1504
    %v1506 = vpop.f32.mrb[0].mxu0
    %v1507 = vadd.f32 0.0, %v1506
    %v1508 = vpop.f32.mrb[0].mxu0
    %v1509 = vadd.f32 0.0, %v1508
    %v1510 = vpop.f32.mrb[0].mxu0
    %v1511 = vadd.f32 0.0, %v1510
    %1512 = vdwg.mxu0
    %1513 = vmatprep.subr.bf16.mxu0 %v1366
    %1514 = vmatpush1.bf16.msra.mxu0 %v1365
    %1515 = vmatprep.subr.bf16.mxu0 %v1372
    %1516 = vmatpush1.bf16.msra.mxu0 %v1371
    %1517 = vmatprep.subr.bf16.mxu0 %v1378
    %1518 = vmatpush1.bf16.msra.mxu0 %v1377
    %1519 = vmatprep.subr.bf16.mxu0 %v1384
    %1520 = vmatpush1.bf16.msra.mxu0 %v1383
    %1521 = vmatprep.subr.bf16.mxu0 %v1390
    %1522 = vmatpush1.bf16.msra.mxu0 %v1389
    %1523 = vmatprep.subr.bf16.mxu0 %v1396
    %1524 = vmatpush1.bf16.msra.mxu0 %v1395
    %1525 = vmatprep.subr.bf16.mxu0 %v1402
    %1526 = vmatpush1.bf16.msra.mxu0 %v1401
    %1527 = vmatprep.subr.bf16.mxu0 %v1408
    %1528 = vmatpush1.bf16.msra.mxu0 %v1407
    %1529 = vmatprep.subr.bf16.mxu0 %v1414
    %1530 = vmatpush1.bf16.msra.mxu0 %v1413
    %1531 = vmatprep.subr.bf16.mxu0 0
    %1532 = vmatpush1.bf16.msra.mxu0 0
    %1533 = vmatprep.subr.bf16.mxu0 0
    %1534 = vmatpush1.bf16.msra.mxu0 0
    %1535 = vmatprep.subr.bf16.mxu0 0
    %1536 = vmatpush1.bf16.msra.mxu0 0
    %1537 = vmatprep.subr.bf16.mxu0 0
    %1538 = vmatpush1.bf16.msra.mxu0 0
    %1539 = vmatprep.subr.bf16.mxu0 0
    %1540 = vmatpush1.bf16.msra.mxu0 0
    %1541 = vmatprep.subr.bf16.mxu0 0
    %1542 = vmatpush1.bf16.msra.mxu0 0
    %1543 = vmatprep.subr.bf16.mxu0 0
    %1544 = vmatpush1.bf16.msra.mxu0 0
    %1545 = vmatprep.mubr.bf16.mxu0 %v1425
    %1546 = vmatmul.mubr.bf16.gmra.mrb[0].mxu0 %v1421
    %v1547 = vpop.f32.mrb[0].mxu0
    %v1548 = vadd.f32 0.0, %v1547
    %v1549 = vpop.f32.mrb[0].mxu0
    %v1550 = vadd.f32 0.0, %v1549
    %v1551 = vpop.f32.mrb[0].mxu0
    %v1552 = vadd.f32 0.0, %v1551
    %v1553 = vpop.f32.mrb[0].mxu0
    %v1554 = vadd.f32 0.0, %v1553
    %1555 = vdwg.mxu0
    %v1556 = vld [vmem:[#allocation10] sm:$0xff]
    %v1557 = vld [vmem:[#allocation10 + $0x8] sm:$0xff]
    %1559 = vset.pattern.permute.xlu0 0
    %1560 = vperm.xlu0 %1559, %v1556
    %v1561 = vpop.permute.xlu0 %1560
    %1564 = vset.pattern.permute.xlu0 0
    %1565 = vperm.xlu0 %1564, %v1557
    %v1566 = vpop.permute.xlu0 %1565
    %v1568 = vadd.f32 %v1462, %v1561
    %v1569 = vadd.f32 %v1464, %v1561
    %v1570 = vadd.f32 %v1505, %v1561
    %v1571 = vadd.f32 %v1466, %v1566
    %v1572 = vadd.f32 %v1468, %v1566
    %v1573 = vadd.f32 %v1509, %v1566
    %v1574 = vld [vmem:[#allocation13 + $0x8] sm:$0xff]
    %v1575 = vld [vmem:[#allocation13 + $0x10] sm:$0xff]
    %v1576 = vld [vmem:[#allocation13 + $0x18] sm:$0xff]
    %v1577 = vld [vmem:[#allocation13 + $0x30] sm:$0xff]
    %v1578 = vld [vmem:[#allocation13 + $0x38] sm:$0xff]
    %v1579 = vld [vmem:[#allocation13 + $0x40] sm:$0xff]
    %v1580 = vadd.f32 %v1568, %v1574
    %v1581 = vadd.f32 %v1569, %v1575
    %v1582 = vadd.f32 %v1570, %v1576
    %v1583 = vadd.f32 %v1571, %v1577
    %v1584 = vadd.f32 %v1572, %v1578
    %v1585 = vadd.f32 %v1573, %v1579
    %v1586 = vmax.f32 %v1580, 0.0
    %v1587 = vmax.f32 %v1581, 0.0
    %v1588 = vmax.f32 %v1582, 0.0
    %v1589 = vmax.f32 %v1583, 0.0
    %v1590 = vmax.f32 %v1584, 0.0
    %v1591 = vmax.f32 %v1585, 0.0
    %1592 = vst [vmem:[#allocation15] sm:$0xff] %v1586
    %1593 = vst [vmem:[#allocation15 + $0x8] sm:$0xff] %v1587
    %1594 = vst [vmem:[#allocation15 + $0x10] sm:$0xff] %v1588
    %1595 = vst [vmem:[#allocation15 + $0x18] sm:$0xff] %v1589
    %1596 = vst [vmem:[#allocation15 + $0x20] sm:$0xff] %v1590
    %1597 = vst [vmem:[#allocation15 + $0x28] sm:$0xff] %v1591
    %v1598 = vadd.f32 %v1507, %v1561
    %v1599 = vadd.f32 %v1548, %v1561
    %v1600 = vadd.f32 %v1550, %v1561
    %v1601 = vadd.f32 %v1511, %v1566
    %v1602 = vadd.f32 %v1552, %v1566
    %v1603 = vadd.f32 %v1554, %v1566
    %v1604 = vld [vmem:[#allocation13 + $0x58] sm:$0xff]
    %v1605 = vld [vmem:[#allocation13 + $0x60] sm:$0xff]
    %v1606 = vld [vmem:[#allocation13 + $0x68] sm:$0xff]
    %v1607 = vld [vmem:[#allocation13 + $0x80] sm:$0xff]
    %v1608 = vld [vmem:[#allocation13 + $0x88] sm:$0xff]
    %v1609 = vld [vmem:[#allocation13 + $0x90] sm:$0xff]
    %v1610 = vadd.f32 %v1598, %v1604
    %v1611 = vadd.f32 %v1599, %v1605
    %v1612 = vadd.f32 %v1600, %v1606
    %v1613 = vadd.f32 %v1601, %v1607
    %v1614 = vadd.f32 %v1602, %v1608
    %v1615 = vadd.f32 %v1603, %v1609
    %v1616 = vmax.f32 %v1610, 0.0
    %v1617 = vmax.f32 %v1611, 0.0
    %v1618 = vmax.f32 %v1612, 0.0
    %v1619 = vmax.f32 %v1613, 0.0
    %v1620 = vmax.f32 %v1614, 0.0
    %v1621 = vmax.f32 %v1615, 0.0
    %1622 = vst [vmem:[#allocation15 + $0x30] sm:$0xff] %v1616
    %1623 = vst [vmem:[#allocation15 + $0x38] sm:$0xff] %v1617
    %1624 = vst [vmem:[#allocation15 + $0x40] sm:$0xff] %v1618
    %1625 = vst [vmem:[#allocation15 + $0x48] sm:$0xff] %v1619
    %1626 = vst [vmem:[#allocation15 + $0x50] sm:$0xff] %v1620
    %1627 = vst [vmem:[#allocation15 + $0x58] sm:$0xff] %v1621
    // Predicated region
    $region50: #{tpu_custom_call.1} parent=1 // pred_check
      _
    $region51: #{tpu_custom_call.1} parent=1 // pred_check_branch
      %1629 = sbr.rel (0) target = $region53
    $region52: #{tpu_custom_call.1} parent=1 // pred_region
      %s1631 = ssub.s32 1536, 1536
      %1632 = vsyncadd [#allocation6], %s1631
      %s1633 = sshll.u32 [#allocation15], 4
      %s1634 = int_to_ptr.vmem [resolvable:$true] %s1633
      %1639 = dma.vmem_to_hbm [thread:$0]  %s1634, 1536, %s6, [#allocation6], 384, 384, 24
    $region53: #{tpu_custom_call.1} parent=1 // pred_fallthru
      _
    // Predicated region
    $region54: #{tpu_custom_call.1} parent=1 // pred_check
      _
    $region55: #{tpu_custom_call.1} parent=1 // pred_check_branch
      %1641 = sbr.rel (0) target = $region57
    $region56: #{tpu_custom_call.1} parent=1 // pred_region
      %1642 = dma.done [#allocation6], 1536
    $region57: #{tpu_custom_call.1} parent=1 // pred_fallthru
      _
    %1643 = vsyncpa [#allocation5], 1
    %1644 = vsyncpa [#allocation8], 1
    %1645 = vsyncpa [#allocation11], 1
    %1646 = vsyncpa [#allocation14], 1
    %1647 = vsyncpa [#allocation6], 1

// kernel: tpu_custom_call.1
$region0: #{tpu_custom_call.1}
  #allocation0 [shape = 'u32[]', space=smem, size = 0x4, offset = 0x4, fixed_abs, tag = 'smem constant byte address 0x4 - core index']
  #allocation1 [shape = 'u32[144,128]{1,0:T(1,128)}', space=vmem, size = 0x12000, scoped, tag = 'internal scratch']
  #allocation2 [shape = 'bf16[144,768]{1,0:T(16,128)(2,1)}', space=vmem, size = 0x36000, scoped, tag = 'scratch operand']
  #allocation3 [shape = 'bf16[16,1280]{1,0:T(16,128)(2,1)}', space=vmem, size = 0xa000, scoped, tag = 'scratch operand']
  %s0 = inlined_call_operand.hbm [shape: bf16[16,144], index: 0, kind: input, shape index: {}]
  %s1 = inlined_call_operand.hbm [shape: f32[16,1], index: 1, kind: input, shape index: {}]
  %s2 = inlined_call_operand.hbm [shape: bf16[16,144], index: 2, kind: input, shape index: {}]
  %s3 = inlined_call_operand.hbm [shape: f32[16,1], index: 3, kind: input, shape index: {}]
  %s4 = inlined_call_operand.hbm [shape: f32[1,768], index: 4, kind: input, shape index: {}]
  %s5 = inlined_call_operand.hbm [shape: f32[32,640], index: 5, kind: input, shape index: {}]
  %s6 = inlined_call_operand.hbm [shape: f32[32,384], index: 6, kind: output, shape index: {}]
  %s7 = sld [smem:[#allocation0]]
  $region58: #{tpu_custom_call.1} parent=0
    _
  %s9 = ssub.s32 1, %s7
  %s10 = scalar_select 0, %s9, %s7
  $region1: #{tpu_custom_call.1} parent=0
    #allocation4 [shape = 'u8[8192]{0}', space=vmem, size = 0x2000, scoped, tag = 'input window, operand 0, single buffered']
    #allocation5 [shape = 's32[1]{0}', space=sflag, size = 0x4, scoped, tag = 'scoped memory for tpu_custom_call.1']
    #allocation6 [shape = 's32[1]{0}', space=sflag, size = 0x4, scoped, tag = 'scoped memory for tpu_custom_call.1']
    #allocation7 [shape = 'u8[8192]{0}', space=vmem, size = 0x2000, scoped, tag = 'input window, operand 1, single buffered']
    #allocation8 [shape = 's32[1]{0}', space=sflag, size = 0x4, scoped, tag = 'scoped memory for tpu_custom_call.1']
    #allocation9 [shape = 'u8[8192]{0}', space=vmem, size = 0x2000, scoped, tag = 'input window, operand 2, single buffered']
    #allocation10 [shape = 'u8[8192]{0}', space=vmem, size = 0x2000, scoped, tag = 'input window, operand 3, single buffered']
    #allocation11 [shape = 's32[1]{0}', space=sflag, size = 0x4, scoped, tag = 'scoped memory for tpu_custom_call.1']
    #allocation12 [shape = 'u8[3072]{0}', space=vmem, size = 0xc00, scoped, tag = 'input window, operand 4, single buffered']
    #allocation13 [shape = 'u8[81920]{0}', space=vmem, size = 0x14000, scoped, tag = 'input window, operand 5, single buffered']
    #allocation14 [shape = 's32[1]{0}', space=sflag, size = 0x4, scoped, tag = 'scoped memory for tpu_custom_call.1']
    #allocation15 [shape = 'u8[49152]{0}', space=vmem, size = 0xc000, scoped, tag = 'output window, operand 0, single buffered']
    %11 = vsyncpa [#allocation5], 0
    %12 = vsyncpa [#allocation8], 0
    %13 = vsyncpa [#allocation11], 0
    %14 = vsyncpa [#allocation14], 0
    %15 = vsyncpa [#allocation6], 0
    // Predicated region
    $region2: #{tpu_custom_call.1} parent=1 // pred_check
      _
    $region3: #{tpu_custom_call.1} parent=1 // pred_check_branch
      %17 = sbr.rel (0) target = $region5
    $region4: #{tpu_custom_call.1} parent=1 // pred_region
      %s19 = ssub.s32 256, 256
      %20 = vsyncadd [#allocation5], %s19
      %s21 = sshll.u32 [#allocation4], 4
      %s22 = int_to_ptr.vmem [resolvable:$true] %s21
      %27 = dma.hbm_to_vmem [thread:$0]  %s0, 256, %s22, [#allocation5], 128, 128, 8
    $region5: #{tpu_custom_call.1} parent=1 // pred_fallthru
      _
    // Predicated region
    $region6: #{tpu_custom_call.1} parent=1 // pred_check
      _
    $region7: #{tpu_custom_call.1} parent=1 // pred_check_branch
      %29 = sbr.rel (0) target = $region9
    $region8: #{tpu_custom_call.1} parent=1 // pred_region
      %s31 = ssub.s32 256, 256
      %32 = vsyncadd [#allocation8], %s31
      %s33 = sshll.u32 [#allocation7], 4
      %s34 = int_to_ptr.vmem [resolvable:$true] %s33
      %39 = dma.hbm_to_vmem [thread:$0]  %s1, 256, %s34, [#allocation8], 128, 128, 8
    $region9: #{tpu_custom_call.1} parent=1 // pred_fallthru
      _
    // Predicated region
    $region10: #{tpu_custom_call.1} parent=1 // pred_check
      _
    $region11: #{tpu_custom_call.1} parent=1 // pred_check_branch
      %41 = sbr.rel (0) target = $region13
    $region12: #{tpu_custom_call.1} parent=1 // pred_region
      %s43 = ssub.s32 256, 256
      %44 = vsyncadd [#allocation8], %s43
      %s45 = sshll.u32 [#allocation9], 4
      %s46 = int_to_ptr.vmem [resolvable:$true] %s45
      %51 = dma.hbm_to_vmem [thread:$0]  %s2, 256, %s46, [#allocation8], 128, 128, 8
    $region13: #{tpu_custom_call.1} parent=1 // pred_fallthru
      _
    // Predicated region
    $region14: #{tpu_custom_call.1} parent=1 // pred_check
      _
    $region15: #{tpu_custom_call.1} parent=1 // pred_check_branch
      %53 = sbr.rel (0) target = $region17
    $region16: #{tpu_custom_call.1} parent=1 // pred_region
      %s55 = ssub.s32 256, 256
      %56 = vsyncadd [#allocation11], %s55
      %s57 = sshll.u32 [#allocation10], 4
      %s58 = int_to_ptr.vmem [resolvable:$true] %s57
      %63 = dma.hbm_to_vmem [thread:$0]  %s3, 256, %s58, [#allocation11], 128, 128, 8
    $region17: #{tpu_custom_call.1} parent=1 // pred_fallthru
      _
    // Predicated region
    $region18: #{tpu_custom_call.1} parent=1 // pred_check
      _
    $region19: #{tpu_custom_call.1} parent=1 // pred_check_branch
      %65 = sbr.rel (0) target = $region21
    $region20: #{tpu_custom_call.1} parent=1 // pred_region
      %s67 = ssub.s32 96, 96
      %68 = vsyncadd [#allocation11], %s67
      %s70 = sshll.u32 [#allocation12], 4
      %s71 = int_to_ptr.vmem [resolvable:$true] %s70
      %73 = dma.hbm_to_vmem [thread:$0]  %s4, 96, %s71, [#allocation11]
    $region21: #{tpu_custom_call.1} parent=1 // pred_fallthru
      _
    // Predicated region
    $region22: #{tpu_custom_call.1} parent=1 // pred_check
      _
    $region23: #{tpu_custom_call.1} parent=1 // pred_check_branch
      %75 = sbr.rel (0) target = $region25
    $region24: #{tpu_custom_call.1} parent=1 // pred_region
      %s77 = ssub.s32 2560, 2560
      %78 = vsyncadd [#allocation14], %s77
      %s79 = sshll.u32 [#allocation13], 4
      %s80 = int_to_ptr.vmem [resolvable:$true] %s79
      %85 = dma.hbm_to_vmem [thread:$0]  %s5, 2560, %s80, [#allocation14], 640, 640, 40
    $region25: #{tpu_custom_call.1} parent=1 // pred_fallthru
      _
    // Predicated region
    $region26: #{tpu_custom_call.1} parent=1 // pred_check
      _
    $region27: #{tpu_custom_call.1} parent=1 // pred_check_branch
      %87 = sbr.rel (0) target = $region29
    $region28: #{tpu_custom_call.1} parent=1 // pred_region
      %88 = dma.done [#allocation5], 256
    $region29: #{tpu_custom_call.1} parent=1 // pred_fallthru
      _
    // Predicated region
    $region30: #{tpu_custom_call.1} parent=1 // pred_check
      _
    $region31: #{tpu_custom_call.1} parent=1 // pred_check_branch
      %90 = sbr.rel (0) target = $region33
    $region32: #{tpu_custom_call.1} parent=1 // pred_region
      %91 = dma.done [#allocation8], 256
    $region33: #{tpu_custom_call.1} parent=1 // pred_fallthru
      _
    // Predicated region
    $region34: #{tpu_custom_call.1} parent=1 // pred_check
      _
    $region35: #{tpu_custom_call.1} parent=1 // pred_check_branch
      %93 = sbr.rel (0) target = $region37
    $region36: #{tpu_custom_call.1} parent=1 // pred_region
      %94 = dma.done [#allocation8], 256
    $region37: #{tpu_custom_call.1} parent=1 // pred_fallthru
      _
    // Predicated region
    $region38: #{tpu_custom_call.1} parent=1 // pred_check
      _
    $region39: #{tpu_custom_call.1} parent=1 // pred_check_branch
      %96 = sbr.rel (0) target = $region41
    $region40: #{tpu_custom_call.1} parent=1 // pred_region
      %97 = dma.done [#allocation11], 256
    $region41: #{tpu_custom_call.1} parent=1 // pred_fallthru
      _
    // Predicated region
    $region42: #{tpu_custom_call.1} parent=1 // pred_check
      _
    $region43: #{tpu_custom_call.1} parent=1 // pred_check_branch
      %99 = sbr.rel (0) target = $region45
    $region44: #{tpu_custom_call.1} parent=1 // pred_region
      %100 = dma.done [#allocation11], 96
    $region45: #{tpu_custom_call.1} parent=1 // pred_fallthru
      _
    // Predicated region
    $region46: #{tpu_custom_call.1} parent=1 // pred_check
      _
    $region47: #{tpu_custom_call.1} parent=1 // pred_check_branch
      %102 = sbr.rel (0) target = $region49
    $region48: #{tpu_custom_call.1} parent=1 // pred_region
      %103 = dma.done [#allocation14], 2560
    $region49: #{tpu_custom_call.1} parent=1 // pred_fallthru
      _
    %v105 = vld [vmem:[#allocation12] sm:$0x3f]
    %v106 = vld [vmem:[#allocation13] sm:$0xff]
    %v107 = vld [vmem:[#allocation13 + $0x8] sm:$0xff]
    %v108 = vld [vmem:[#allocation13 + $0x10] sm:$0xff]
    %v109 = vld [vmem:[#allocation13 + $0x18] sm:$0xff]
    %v110 = vld [vmem:[#allocation13 + $0x28] sm:$0xff]
    %v111 = vld [vmem:[#allocation13 + $0x30] sm:$0xff]
    %v112 = vld [vmem:[#allocation13 + $0x38] sm:$0xff]
    %v113 = vld [vmem:[#allocation13 + $0x40] sm:$0xff]
    %v114 = vpack.c.bf16 %v110, %v106
    %v115 = vpack.c.bf16 %v111, %v107
    %v116 = vpack.c.bf16 %v112, %v108
    %v117 = vpack.c.bf16 %v113, %v109
    %122 = vrot.lane.b32.xlu0 %v114, 19
    %v123 = vpop.permute.xlu0 %122
    %124 = vrot.lane.b32.xlu0 %v115, 19
    %v125 = vpop.permute.xlu0 %124
    %126 = vrot.lane.b32.xlu0 %v116, 19
    %v127 = vpop.permute.xlu0 %126
    %128 = vrot.lane.b32.xlu0 %v117, 19
    %v129 = vpop.permute.xlu0 %128
    %vm130 = vcmask 154624
    %v131 = vsel %vm130, %v123, %v125
    %v132 = vsel %vm130, %v125, %v127
    %v133 = vsel %vm130, %v127, %v129
    %137 = vst [vmem:[#allocation2] sm:$0xff] %v131
    %138 = vst [vmem:[#allocation2 + $0x8] sm:$0xff] %v132
    %139 = vst [vmem:[#allocation2 + $0x10] sm:$0xff] %v133
    %v140 = vld [vmem:[#allocation13] sm:$0xff]
    %v141 = vld [vmem:[#allocation13 + $0x8] sm:$0xff]
    %v142 = vld [vmem:[#allocation13 + $0x10] sm:$0xff]
    %v143 = vld [vmem:[#allocation13 + $0x18] sm:$0xff]
    %v144 = vld [vmem:[#allocation13 + $0x28] sm:$0xff]
    %v145 = vld [vmem:[#allocation13 + $0x30] sm:$0xff]
    %v146 = vld [vmem:[#allocation13 + $0x38] sm:$0xff]
    %v147 = vld [vmem:[#allocation13 + $0x40] sm:$0xff]
    %v148 = vpack.c.bf16 %v144, %v140
    %v149 = vpack.c.bf16 %v145, %v141
    %v150 = vpack.c.bf16 %v146, %v142
    %v151 = vpack.c.bf16 %v147, %v143
    %156 = vrot.lane.b32.xlu0 %v148, 18
    %v157 = vpop.permute.xlu0 %156
    %158 = vrot.lane.b32.xlu0 %v149, 18
    %v159 = vpop.permute.xlu0 %158
    %160 = vrot.lane.b32.xlu0 %v150, 18
    %v161 = vpop.permute.xlu0 %160
    %162 = vrot.lane.b32.xlu0 %v151, 18
    %v163 = vpop.permute.xlu0 %162
    %vm164 = vcmask 146432
    %v165 = vsel %vm164, %v157, %v159
    %v166 = vsel %vm164, %v159, %v161
    %v167 = vsel %vm164, %v161, %v163
    %171 = vst [vmem:[#allocation2 + $0x30] sm:$0xff] %v165
    %172 = vst [vmem:[#allocation2 + $0x38] sm:$0xff] %v166
    %173 = vst [vmem:[#allocation2 + $0x40] sm:$0xff] %v167
    %v174 = vld [vmem:[#allocation13] sm:$0xff]
    %v175 = vld [vmem:[#allocation13 + $0x8] sm:$0xff]
    %v176 = vld [vmem:[#allocation13 + $0x10] sm:$0xff]
    %v177 = vld [vmem:[#allocation13 + $0x18] sm:$0xff]
    %v178 = vld [vmem:[#allocation13 + $0x28] sm:$0xff]
    %v179 = vld [vmem:[#allocation13 + $0x30] sm:$0xff]
    %v180 = vld [vmem:[#allocation13 + $0x38] sm:$0xff]
    %v181 = vld [vmem:[#allocation13 + $0x40] sm:$0xff]
    %v182 = vpack.c.bf16 %v178, %v174
    %v183 = vpack.c.bf16 %v179, %v175
    %v184 = vpack.c.bf16 %v180, %v176
    %v185 = vpack.c.bf16 %v181, %v177
    %190 = vrot.lane.b32.xlu0 %v182, 17
    %v191 = vpop.permute.xlu0 %190
    %192 = vrot.lane.b32.xlu0 %v183, 17
    %v193 = vpop.permute.xlu0 %192
    %194 = vrot.lane.b32.xlu0 %v184, 17
    %v195 = vpop.permute.xlu0 %194
    %196 = vrot.lane.b32.xlu0 %v185, 17
    %v197 = vpop.permute.xlu0 %196
    %vm198 = vcmask 138240
    %v199 = vsel %vm198, %v191, %v193
    %v200 = vsel %vm198, %v193, %v195
    %v201 = vsel %vm198, %v195, %v197
    %205 = vst [vmem:[#allocation2 + $0x60] sm:$0xff] %v199
    %206 = vst [vmem:[#allocation2 + $0x68] sm:$0xff] %v200
    %207 = vst [vmem:[#allocation2 + $0x70] sm:$0xff] %v201
    %v208 = vld [vmem:[#allocation13] sm:$0xff]
    %v209 = vld [vmem:[#allocation13 + $0x8] sm:$0xff]
    %v210 = vld [vmem:[#allocation13 + $0x10] sm:$0xff]
    %v211 = vld [vmem:[#allocation13 + $0x18] sm:$0xff]
    %v212 = vld [vmem:[#allocation13 + $0x28] sm:$0xff]
    %v213 = vld [vmem:[#allocation13 + $0x30] sm:$0xff]
    %v214 = vld [vmem:[#allocation13 + $0x38] sm:$0xff]
    %v215 = vld [vmem:[#allocation13 + $0x40] sm:$0xff]
    %v216 = vpack.c.bf16 %v212, %v208
    %v217 = vpack.c.bf16 %v213, %v209
    %v218 = vpack.c.bf16 %v214, %v210
    %v219 = vpack.c.bf16 %v215, %v211
    %224 = vrot.lane.b32.xlu0 %v216, 1
    %v225 = vpop.permute.xlu0 %224
    %226 = vrot.lane.b32.xlu0 %v217, 1
    %v227 = vpop.permute.xlu0 %226
    %228 = vrot.lane.b32.xlu0 %v218, 1
    %v229 = vpop.permute.xlu0 %228
    %230 = vrot.lane.b32.xlu0 %v219, 1
    %v231 = vpop.permute.xlu0 %230
    %vm232 = vcmask 7168
    %v233 = vsel %vm232, %v225, %v227
    %v234 = vsel %vm232, %v227, %v229
    %v235 = vsel %vm232, %v229, %v231
    %239 = vst [vmem:[#allocation2 + $0x90] sm:$0xff] %v233
    %240 = vst [vmem:[#allocation2 + $0x98] sm:$0xff] %v234
    %241 = vst [vmem:[#allocation2 + $0xa0] sm:$0xff] %v235
    %v242 = vld [vmem:[#allocation13 + $0x8] sm:$0xff]
    %v243 = vld [vmem:[#allocation13 + $0x10] sm:$0xff]
    %v244 = vld [vmem:[#allocation13 + $0x18] sm:$0xff]
    %v245 = vld [vmem:[#allocation13 + $0x30] sm:$0xff]
    %v246 = vld [vmem:[#allocation13 + $0x38] sm:$0xff]
    %v247 = vld [vmem:[#allocation13 + $0x40] sm:$0xff]
    %v248 = vpack.c.bf16 %v245, %v242
    %v249 = vpack.c.bf16 %v246, %v243
    %v250 = vpack.c.bf16 %v247, %v244
    %251 = vst [vmem:[#allocation2 + $0xc0] sm:$0xff] %v248
    %252 = vst [vmem:[#allocation2 + $0xc8] sm:$0xff] %v249
    %253 = vst [vmem:[#allocation2 + $0xd0] sm:$0xff] %v250
    %v254 = vld [vmem:[#allocation13 + $0x8] sm:$0xff]
    %v255 = vld [vmem:[#allocation13 + $0x10] sm:$0xff]
    %v256 = vld [vmem:[#allocation13 + $0x18] sm:$0xff]
    %v257 = vld [vmem:[#allocation13 + $0x20] sm:$0xff]
    %v258 = vld [vmem:[#allocation13 + $0x30] sm:$0xff]
    %v259 = vld [vmem:[#allocation13 + $0x38] sm:$0xff]
    %v260 = vld [vmem:[#allocation13 + $0x40] sm:$0xff]
    %v261 = vld [vmem:[#allocation13 + $0x48] sm:$0xff]
    %v262 = vpack.c.bf16 %v258, %v254
    %v263 = vpack.c.bf16 %v259, %v255
    %v264 = vpack.c.bf16 %v260, %v256
    %v265 = vpack.c.bf16 %v261, %v257
    %270 = vrot.lane.b32.xlu0 %v262, 127
    %v271 = vpop.permute.xlu0 %270
    %272 = vrot.lane.b32.xlu0 %v263, 127
    %v273 = vpop.permute.xlu0 %272
    %274 = vrot.lane.b32.xlu0 %v264, 127
    %v275 = vpop.permute.xlu0 %274
    %276 = vrot.lane.b32.xlu0 %v265, 127
    %v277 = vpop.permute.xlu0 %276
    %vm278 = vcmask 1039360
    %v279 = vsel %vm278, %v271, %v273
    %v280 = vsel %vm278, %v273, %v275
    %v281 = vsel %vm278, %v275, %v277
    %285 = vst [vmem:[#allocation2 + $0xf0] sm:$0xff] %v279
    %286 = vst [vmem:[#allocation2 + $0xf8] sm:$0xff] %v280
    %287 = vst [vmem:[#allocation2 + $0x100] sm:$0xff] %v281
    %v288 = vld [vmem:[#allocation13 + $0x8] sm:$0xff]
    %v289 = vld [vmem:[#allocation13 + $0x10] sm:$0xff]
    %v290 = vld [vmem:[#allocation13 + $0x18] sm:$0xff]
    %v291 = vld [vmem:[#allocation13 + $0x20] sm:$0xff]
    %v292 = vld [vmem:[#allocation13 + $0x30] sm:$0xff]
    %v293 = vld [vmem:[#allocation13 + $0x38] sm:$0xff]
    %v294 = vld [vmem:[#allocation13 + $0x40] sm:$0xff]
    %v295 = vld [vmem:[#allocation13 + $0x48] sm:$0xff]
    %v296 = vpack.c.bf16 %v292, %v288
    %v297 = vpack.c.bf16 %v293, %v289
    %v298 = vpack.c.bf16 %v294, %v290
    %v299 = vpack.c.bf16 %v295, %v291
    %304 = vrot.lane.b32.xlu0 %v296, 111
    %v305 = vpop.permute.xlu0 %304
    %306 = vrot.lane.b32.xlu0 %v297, 111
    %v307 = vpop.permute.xlu0 %306
    %308 = vrot.lane.b32.xlu0 %v298, 111
    %v309 = vpop.permute.xlu0 %308
    %310 = vrot.lane.b32.xlu0 %v299, 111
    %v311 = vpop.permute.xlu0 %310
    %vm312 = vcmask 908288
    %v313 = vsel %vm312, %v305, %v307
    %v314 = vsel %vm312, %v307, %v309
    %v315 = vsel %vm312, %v309, %v311
    %319 = vst [vmem:[#allocation2 + $0x120] sm:$0xff] %v313
    %320 = vst [vmem:[#allocation2 + $0x128] sm:$0xff] %v314
    %321 = vst [vmem:[#allocation2 + $0x130] sm:$0xff] %v315
    %v322 = vld [vmem:[#allocation13 + $0x8] sm:$0xff]
    %v323 = vld [vmem:[#allocation13 + $0x10] sm:$0xff]
    %v324 = vld [vmem:[#allocation13 + $0x18] sm:$0xff]
    %v325 = vld [vmem:[#allocation13 + $0x20] sm:$0xff]
    %v326 = vld [vmem:[#allocation13 + $0x30] sm:$0xff]
    %v327 = vld [vmem:[#allocation13 + $0x38] sm:$0xff]
    %v328 = vld [vmem:[#allocation13 + $0x40] sm:$0xff]
    %v329 = vld [vmem:[#allocation13 + $0x48] sm:$0xff]
    %v330 = vpack.c.bf16 %v326, %v322
    %v331 = vpack.c.bf16 %v327, %v323
    %v332 = vpack.c.bf16 %v328, %v324
    %v333 = vpack.c.bf16 %v329, %v325
    %338 = vrot.lane.b32.xlu0 %v330, 110
    %v339 = vpop.permute.xlu0 %338
    %340 = vrot.lane.b32.xlu0 %v331, 110
    %v341 = vpop.permute.xlu0 %340
    %342 = vrot.lane.b32.xlu0 %v332, 110
    %v343 = vpop.permute.xlu0 %342
    %344 = vrot.lane.b32.xlu0 %v333, 110
    %v345 = vpop.permute.xlu0 %344
    %vm346 = vcmask 900096
    %v347 = vsel %vm346, %v339, %v341
    %v348 = vsel %vm346, %v341, %v343
    %v349 = vsel %vm346, %v343, %v345
    %353 = vst [vmem:[#allocation2 + $0x150] sm:$0xff] %v347
    %354 = vst [vmem:[#allocation2 + $0x158] sm:$0xff] %v348
    %355 = vst [vmem:[#allocation2 + $0x160] sm:$0xff] %v349
    %v356 = vld [vmem:[#allocation13 + $0x8] sm:$0xff]
    %v357 = vld [vmem:[#allocation13 + $0x10] sm:$0xff]
    %v358 = vld [vmem:[#allocation13 + $0x18] sm:$0xff]
    %v359 = vld [vmem:[#allocation13 + $0x20] sm:$0xff]
    %v360 = vld [vmem:[#allocation13 + $0x30] sm:$0xff]
    %v361 = vld [vmem:[#allocation13 + $0x38] sm:$0xff]
    %v362 = vld [vmem:[#allocation13 + $0x40] sm:$0xff]
    %v363 = vld [vmem:[#allocation13 + $0x48] sm:$0xff]
    %v364 = vpack.c.bf16 %v360, %v356
    %v365 = vpack.c.bf16 %v361, %v357
    %v366 = vpack.c.bf16 %v362, %v358
    %v367 = vpack.c.bf16 %v363, %v359
    %372 = vrot.lane.b32.xlu0 %v364, 109
    %v373 = vpop.permute.xlu0 %372
    %374 = vrot.lane.b32.xlu0 %v365, 109
    %v375 = vpop.permute.xlu0 %374
    %376 = vrot.lane.b32.xlu0 %v366, 109
    %v377 = vpop.permute.xlu0 %376
    %378 = vrot.lane.b32.xlu0 %v367, 109
    %v379 = vpop.permute.xlu0 %378
    %vm380 = vcmask 891904
    %v381 = vsel %vm380, %v373, %v375
    %v382 = vsel %vm380, %v375, %v377
    %v383 = vsel %vm380, %v377, %v379
    %387 = vst [vmem:[#allocation2 + $0x180] sm:$0xff] %v381
    %388 = vst [vmem:[#allocation2 + $0x188] sm:$0xff] %v382
    %389 = vst [vmem:[#allocation2 + $0x190] sm:$0xff] %v383
    %v390 = vld [vmem:[#allocation13 + $0x50] sm:$0xff]
    %v391 = vld [vmem:[#allocation13 + $0x58] sm:$0xff]
    %v392 = vld [vmem:[#allocation13 + $0x60] sm:$0xff]
    %v393 = vld [vmem:[#allocation13 + $0x68] sm:$0xff]
    %v394 = vld [vmem:[#allocation13 + $0x78] sm:$0xff]
    %v395 = vld [vmem:[#allocation13 + $0x80] sm:$0xff]
    %v396 = vld [vmem:[#allocation13 + $0x88] sm:$0xff]
    %v397 = vld [vmem:[#allocation13 + $0x90] sm:$0xff]
    %v398 = vpack.c.bf16 %v394, %v390
    %v399 = vpack.c.bf16 %v395, %v391
    %v400 = vpack.c.bf16 %v396, %v392
    %v401 = vpack.c.bf16 %v397, %v393
    %406 = vrot.lane.b32.xlu0 %v398, 19
    %v407 = vpop.permute.xlu0 %406
    %408 = vrot.lane.b32.xlu0 %v399, 19
    %v409 = vpop.permute.xlu0 %408
    %410 = vrot.lane.b32.xlu0 %v400, 19
    %v411 = vpop.permute.xlu0 %410
    %412 = vrot.lane.b32.xlu0 %v401, 19
    %v413 = vpop.permute.xlu0 %412
    %v414 = vsel %vm130, %v407, %v409
    %v415 = vsel %vm130, %v409, %v411
    %v416 = vsel %vm130, %v411, %v413
    %420 = vst [vmem:[#allocation2 + $0x18] sm:$0xff] %v414
    %421 = vst [vmem:[#allocation2 + $0x20] sm:$0xff] %v415
    %422 = vst [vmem:[#allocation2 + $0x28] sm:$0xff] %v416
    %v423 = vld [vmem:[#allocation13 + $0x50] sm:$0xff]
    %v424 = vld [vmem:[#allocation13 + $0x58] sm:$0xff]
    %v425 = vld [vmem:[#allocation13 + $0x60] sm:$0xff]
    %v426 = vld [vmem:[#allocation13 + $0x68] sm:$0xff]
    %v427 = vld [vmem:[#allocation13 + $0x78] sm:$0xff]
    %v428 = vld [vmem:[#allocation13 + $0x80] sm:$0xff]
    %v429 = vld [vmem:[#allocation13 + $0x88] sm:$0xff]
    %v430 = vld [vmem:[#allocation13 + $0x90] sm:$0xff]
    %v431 = vpack.c.bf16 %v427, %v423
    %v432 = vpack.c.bf16 %v428, %v424
    %v433 = vpack.c.bf16 %v429, %v425
    %v434 = vpack.c.bf16 %v430, %v426
    %439 = vrot.lane.b32.xlu0 %v431, 18
    %v440 = vpop.permute.xlu0 %439
    %441 = vrot.lane.b32.xlu0 %v432, 18
    %v442 = vpop.permute.xlu0 %441
    %443 = vrot.lane.b32.xlu0 %v433, 18
    %v444 = vpop.permute.xlu0 %443
    %445 = vrot.lane.b32.xlu0 %v434, 18
    %v446 = vpop.permute.xlu0 %445
    %v447 = vsel %vm164, %v440, %v442
    %v448 = vsel %vm164, %v442, %v444
    %v449 = vsel %vm164, %v444, %v446
    %453 = vst [vmem:[#allocation2 + $0x48] sm:$0xff] %v447
    %454 = vst [vmem:[#allocation2 + $0x50] sm:$0xff] %v448
    %455 = vst [vmem:[#allocation2 + $0x58] sm:$0xff] %v449
    %v456 = vld [vmem:[#allocation13 + $0x50] sm:$0xff]
    %v457 = vld [vmem:[#allocation13 + $0x58] sm:$0xff]
    %v458 = vld [vmem:[#allocation13 + $0x60] sm:$0xff]
    %v459 = vld [vmem:[#allocation13 + $0x68] sm:$0xff]
    %v460 = vld [vmem:[#allocation13 + $0x78] sm:$0xff]
    %v461 = vld [vmem:[#allocation13 + $0x80] sm:$0xff]
    %v462 = vld [vmem:[#allocation13 + $0x88] sm:$0xff]
    %v463 = vld [vmem:[#allocation13 + $0x90] sm:$0xff]
    %v464 = vpack.c.bf16 %v460, %v456
    %v465 = vpack.c.bf16 %v461, %v457
    %v466 = vpack.c.bf16 %v462, %v458
    %v467 = vpack.c.bf16 %v463, %v459
    %472 = vrot.lane.b32.xlu0 %v464, 17
    %v473 = vpop.permute.xlu0 %472
    %474 = vrot.lane.b32.xlu0 %v465, 17
    %v475 = vpop.permute.xlu0 %474
    %476 = vrot.lane.b32.xlu0 %v466, 17
    %v477 = vpop.permute.xlu0 %476
    %478 = vrot.lane.b32.xlu0 %v467, 17
    %v479 = vpop.permute.xlu0 %478
    %v480 = vsel %vm198, %v473, %v475
    %v481 = vsel %vm198, %v475, %v477
    %v482 = vsel %vm198, %v477, %v479
    %486 = vst [vmem:[#allocation2 + $0x78] sm:$0xff] %v480
    %487 = vst [vmem:[#allocation2 + $0x80] sm:$0xff] %v481
    %488 = vst [vmem:[#allocation2 + $0x88] sm:$0xff] %v482
    %v489 = vld [vmem:[#allocation13 + $0x50] sm:$0xff]
    %v490 = vld [vmem:[#allocation13 + $0x58] sm:$0xff]
    %v491 = vld [vmem:[#allocation13 + $0x60] sm:$0xff]
    %v492 = vld [vmem:[#allocation13 + $0x68] sm:$0xff]
    %v493 = vld [vmem:[#allocation13 + $0x78] sm:$0xff]
    %v494 = vld [vmem:[#allocation13 + $0x80] sm:$0xff]
    %v495 = vld [vmem:[#allocation13 + $0x88] sm:$0xff]
    %v496 = vld [vmem:[#allocation13 + $0x90] sm:$0xff]
    %v497 = vpack.c.bf16 %v493, %v489
    %v498 = vpack.c.bf16 %v494, %v490
    %v499 = vpack.c.bf16 %v495, %v491
    %v500 = vpack.c.bf16 %v496, %v492
    %505 = vrot.lane.b32.xlu0 %v497, 1
    %v506 = vpop.permute.xlu0 %505
    %507 = vrot.lane.b32.xlu0 %v498, 1
    %v508 = vpop.permute.xlu0 %507
    %509 = vrot.lane.b32.xlu0 %v499, 1
    %v510 = vpop.permute.xlu0 %509
    %511 = vrot.lane.b32.xlu0 %v500, 1
    %v512 = vpop.permute.xlu0 %511
    %v513 = vsel %vm232, %v506, %v508
    %v514 = vsel %vm232, %v508, %v510
    %v515 = vsel %vm232, %v510, %v512
    %519 = vst [vmem:[#allocation2 + $0xa8] sm:$0xff] %v513
    %520 = vst [vmem:[#allocation2 + $0xb0] sm:$0xff] %v514
    %521 = vst [vmem:[#allocation2 + $0xb8] sm:$0xff] %v515
    %v522 = vld [vmem:[#allocation13 + $0x58] sm:$0xff]
    %v523 = vld [vmem:[#allocation13 + $0x60] sm:$0xff]
    %v524 = vld [vmem:[#allocation13 + $0x68] sm:$0xff]
    %v525 = vld [vmem:[#allocation13 + $0x80] sm:$0xff]
    %v526 = vld [vmem:[#allocation13 + $0x88] sm:$0xff]
    %v527 = vld [vmem:[#allocation13 + $0x90] sm:$0xff]
    %v528 = vpack.c.bf16 %v525, %v522
    %v529 = vpack.c.bf16 %v526, %v523
    %v530 = vpack.c.bf16 %v527, %v524
    %531 = vst [vmem:[#allocation2 + $0xd8] sm:$0xff] %v528
    %532 = vst [vmem:[#allocation2 + $0xe0] sm:$0xff] %v529
    %533 = vst [vmem:[#allocation2 + $0xe8] sm:$0xff] %v530
    %v534 = vld [vmem:[#allocation13 + $0x58] sm:$0xff]
    %v535 = vld [vmem:[#allocation13 + $0x60] sm:$0xff]
    %v536 = vld [vmem:[#allocation13 + $0x68] sm:$0xff]
    %v537 = vld [vmem:[#allocation13 + $0x70] sm:$0xff]
    %v538 = vld [vmem:[#allocation13 + $0x80] sm:$0xff]
    %v539 = vld [vmem:[#allocation13 + $0x88] sm:$0xff]
    %v540 = vld [vmem:[#allocation13 + $0x90] sm:$0xff]
    %v541 = vld [vmem:[#allocation13 + $0x98] sm:$0xff]
    %v542 = vpack.c.bf16 %v538, %v534
    %v543 = vpack.c.bf16 %v539, %v535
    %v544 = vpack.c.bf16 %v540, %v536
    %v545 = vpack.c.bf16 %v541, %v537
    %550 = vrot.lane.b32.xlu0 %v542, 127
    %v551 = vpop.permute.xlu0 %550
    %552 = vrot.lane.b32.xlu0 %v543, 127
    %v553 = vpop.permute.xlu0 %552
    %554 = vrot.lane.b32.xlu0 %v544, 127
    %v555 = vpop.permute.xlu0 %554
    %556 = vrot.lane.b32.xlu0 %v545, 127
    %v557 = vpop.permute.xlu0 %556
    %v558 = vsel %vm278, %v551, %v553
    %v559 = vsel %vm278, %v553, %v555
    %v560 = vsel %vm278, %v555, %v557
    %564 = vst [vmem:[#allocation2 + $0x108] sm:$0xff] %v558
    %565 = vst [vmem:[#allocation2 + $0x110] sm:$0xff] %v559
    %566 = vst [vmem:[#allocation2 + $0x118] sm:$0xff] %v560
    %v567 = vld [vmem:[#allocation13 + $0x58] sm:$0xff]
    %v568 = vld [vmem:[#allocation13 + $0x60] sm:$0xff]
    %v569 = vld [vmem:[#allocation13 + $0x68] sm:$0xff]
    %v570 = vld [vmem:[#allocation13 + $0x70] sm:$0xff]
    %v571 = vld [vmem:[#allocation13 + $0x80] sm:$0xff]
    %v572 = vld [vmem:[#allocation13 + $0x88] sm:$0xff]
    %v573 = vld [vmem:[#allocation13 + $0x90] sm:$0xff]
    %v574 = vld [vmem:[#allocation13 + $0x98] sm:$0xff]
    %v575 = vpack.c.bf16 %v571, %v567
    %v576 = vpack.c.bf16 %v572, %v568
    %v577 = vpack.c.bf16 %v573, %v569
    %v578 = vpack.c.bf16 %v574, %v570
    %583 = vrot.lane.b32.xlu0 %v575, 111
    %v584 = vpop.permute.xlu0 %583
    %585 = vrot.lane.b32.xlu0 %v576, 111
    %v586 = vpop.permute.xlu0 %585
    %587 = vrot.lane.b32.xlu0 %v577, 111
    %v588 = vpop.permute.xlu0 %587
    %589 = vrot.lane.b32.xlu0 %v578, 111
    %v590 = vpop.permute.xlu0 %589
    %v591 = vsel %vm312, %v584, %v586
    %v592 = vsel %vm312, %v586, %v588
    %v593 = vsel %vm312, %v588, %v590
    %597 = vst [vmem:[#allocation2 + $0x138] sm:$0xff] %v591
    %598 = vst [vmem:[#allocation2 + $0x140] sm:$0xff] %v592
    %599 = vst [vmem:[#allocation2 + $0x148] sm:$0xff] %v593
    %v600 = vld [vmem:[#allocation13 + $0x58] sm:$0xff]
    %v601 = vld [vmem:[#allocation13 + $0x60] sm:$0xff]
    %v602 = vld [vmem:[#allocation13 + $0x68] sm:$0xff]
    %v603 = vld [vmem:[#allocation13 + $0x70] sm:$0xff]
    %v604 = vld [vmem:[#allocation13 + $0x80] sm:$0xff]
    %v605 = vld [vmem:[#allocation13 + $0x88] sm:$0xff]
    %v606 = vld [vmem:[#allocation13 + $0x90] sm:$0xff]
    %v607 = vld [vmem:[#allocation13 + $0x98] sm:$0xff]
    %v608 = vpack.c.bf16 %v604, %v600
    %v609 = vpack.c.bf16 %v605, %v601
    %v610 = vpack.c.bf16 %v606, %v602
    %v611 = vpack.c.bf16 %v607, %v603
    %616 = vrot.lane.b32.xlu0 %v608, 110
    %v617 = vpop.permute.xlu0 %616
    %618 = vrot.lane.b32.xlu0 %v609, 110
    %v619 = vpop.permute.xlu0 %618
    %620 = vrot.lane.b32.xlu0 %v610, 110
    %v621 = vpop.permute.xlu0 %620
    %622 = vrot.lane.b32.xlu0 %v611, 110
    %v623 = vpop.permute.xlu0 %622
    %v624 = vsel %vm346, %v617, %v619
    %v625 = vsel %vm346, %v619, %v621
    %v626 = vsel %vm346, %v621, %v623
    %630 = vst [vmem:[#allocation2 + $0x168] sm:$0xff] %v624
    %631 = vst [vmem:[#allocation2 + $0x170] sm:$0xff] %v625
    %632 = vst [vmem:[#allocation2 + $0x178] sm:$0xff] %v626
    %v633 = vld [vmem:[#allocation13 + $0x58] sm:$0xff]
    %v634 = vld [vmem:[#allocation13 + $0x60] sm:$0xff]
    %v635 = vld [vmem:[#allocation13 + $0x68] sm:$0xff]
    %v636 = vld [vmem:[#allocation13 + $0x70] sm:$0xff]
    %v637 = vld [vmem:[#allocation13 + $0x80] sm:$0xff]
    %v638 = vld [vmem:[#allocation13 + $0x88] sm:$0xff]
    %v639 = vld [vmem:[#allocation13 + $0x90] sm:$0xff]
    %v640 = vld [vmem:[#allocation13 + $0x98] sm:$0xff]
    %v641 = vpack.c.bf16 %v637, %v633
    %v642 = vpack.c.bf16 %v638, %v634
    %v643 = vpack.c.bf16 %v639, %v635
    %v644 = vpack.c.bf16 %v640, %v636
    %649 = vrot.lane.b32.xlu0 %v641, 109
    %v650 = vpop.permute.xlu0 %649
    %651 = vrot.lane.b32.xlu0 %v642, 109
    %v652 = vpop.permute.xlu0 %651
    %653 = vrot.lane.b32.xlu0 %v643, 109
    %v654 = vpop.permute.xlu0 %653
    %655 = vrot.lane.b32.xlu0 %v644, 109
    %v656 = vpop.permute.xlu0 %655
    %v657 = vsel %vm380, %v650, %v652
    %v658 = vsel %vm380, %v652, %v654
    %v659 = vsel %vm380, %v654, %v656
    %663 = vst [vmem:[#allocation2 + $0x198] sm:$0xff] %v657
    %664 = vst [vmem:[#allocation2 + $0x1a0] sm:$0xff] %v658
    %665 = vst [vmem:[#allocation2 + $0x1a8] sm:$0xff] %v659
    %v666 = vld [vmem:[#allocation4] sm:$0xff]
    %v667 = vld [vmem:[#allocation4 + $0x8] sm:$0xff]
    %v668 = vld [vmem:[#allocation2] sm:$0xff]
    %v669 = vld [vmem:[#allocation2 + $0x8] sm:$0xff]
    %v670 = vld [vmem:[#allocation2 + $0x10] sm:$0xff]
    %v671 = vld [vmem:[#allocation2 + $0x18] sm:$0xff]
    %v672 = vld [vmem:[#allocation2 + $0x20] sm:$0xff]
    %v673 = vld [vmem:[#allocation2 + $0x28] sm:$0xff]
    %v674 = vld [vmem:[#allocation2 + $0x30] sm:$0xff]
    %v675 = vld [vmem:[#allocation2 + $0x38] sm:$0xff]
    %v676 = vld [vmem:[#allocation2 + $0x40] sm:$0xff]
    %v677 = vld [vmem:[#allocation2 + $0x48] sm:$0xff]
    %v678 = vld [vmem:[#allocation2 + $0x50] sm:$0xff]
    %v679 = vld [vmem:[#allocation2 + $0x58] sm:$0xff]
    %v680 = vld [vmem:[#allocation2 + $0x60] sm:$0xff]
    %v681 = vld [vmem:[#allocation2 + $0x68] sm:$0xff]
    %v682 = vld [vmem:[#allocation2 + $0x70] sm:$0xff]
    %v683 = vld [vmem:[#allocation2 + $0x78] sm:$0xff]
    %v684 = vld [vmem:[#allocation2 + $0x80] sm:$0xff]
    %v685 = vld [vmem:[#allocation2 + $0x88] sm:$0xff]
    %v686 = vld [vmem:[#allocation2 + $0x90] sm:$0xff]
    %v687 = vld [vmem:[#allocation2 + $0x98] sm:$0xff]
    %v688 = vld [vmem:[#allocation2 + $0xa0] sm:$0xff]
    %v689 = vld [vmem:[#allocation2 + $0xa8] sm:$0xff]
    %v690 = vld [vmem:[#allocation2 + $0xb0] sm:$0xff]
    %v691 = vld [vmem:[#allocation2 + $0xb8] sm:$0xff]
    %v692 = vld [vmem:[#allocation2 + $0xc0] sm:$0xff]
    %v693 = vld [vmem:[#allocation2 + $0xc8] sm:$0xff]
    %v694 = vld [vmem:[#allocation2 + $0xd0] sm:$0xff]
    %v695 = vld [vmem:[#allocation2 + $0xd8] sm:$0xff]
    %v696 = vld [vmem:[#allocation2 + $0xe0] sm:$0xff]
    %v697 = vld [vmem:[#allocation2 + $0xe8] sm:$0xff]
    %v698 = vld [vmem:[#allocation2 + $0xf0] sm:$0xff]
    %v699 = vld [vmem:[#allocation2 + $0xf8] sm:$0xff]
    %v700 = vld [vmem:[#allocation2 + $0x100] sm:$0xff]
    %v701 = vld [vmem:[#allocation2 + $0x108] sm:$0xff]
    %v702 = vld [vmem:[#allocation2 + $0x110] sm:$0xff]
    %v703 = vld [vmem:[#allocation2 + $0x118] sm:$0xff]
    %v704 = vld [vmem:[#allocation2 + $0x120] sm:$0xff]
    %v705 = vld [vmem:[#allocation2 + $0x128] sm:$0xff]
    %v706 = vld [vmem:[#allocation2 + $0x130] sm:$0xff]
    %v707 = vld [vmem:[#allocation2 + $0x138] sm:$0xff]
    %v708 = vld [vmem:[#allocation2 + $0x140] sm:$0xff]
    %v709 = vld [vmem:[#allocation2 + $0x148] sm:$0xff]
    %v710 = vld [vmem:[#allocation2 + $0x150] sm:$0xff]
    %v711 = vld [vmem:[#allocation2 + $0x158] sm:$0xff]
    %v712 = vld [vmem:[#allocation2 + $0x160] sm:$0xff]
    %v713 = vld [vmem:[#allocation2 + $0x168] sm:$0xff]
    %v714 = vld [vmem:[#allocation2 + $0x170] sm:$0xff]
    %v715 = vld [vmem:[#allocation2 + $0x178] sm:$0xff]
    %v716 = vld [vmem:[#allocation2 + $0x180] sm:$0xff]
    %v717 = vld [vmem:[#allocation2 + $0x188] sm:$0xff]
    %v718 = vld [vmem:[#allocation2 + $0x190] sm:$0xff]
    %v719 = vld [vmem:[#allocation2 + $0x198] sm:$0xff]
    %v720 = vld [vmem:[#allocation2 + $0x1a0] sm:$0xff]
    %v721 = vld [vmem:[#allocation2 + $0x1a8] sm:$0xff]
    %v722 = vld [vmem:[#allocation7] sm:$0xff]
    %v723 = vld [vmem:[#allocation7 + $0x8] sm:$0xff]
    %725 = vset.pattern.permute.xlu0 0
    %726 = vperm.xlu0 %725, %v722
    %v727 = vpop.permute.xlu0 %726
    %730 = vset.pattern.permute.xlu0 0
    %731 = vperm.xlu0 %730, %v723
    %v732 = vpop.permute.xlu0 %731
    %v736 = vunpack.c.l.b16 %v666
    %v737 = vunpack.c.h.b16 %v666
    %v738 = vunpack.c.l.b16 %v667
    %v739 = vunpack.c.h.b16 %v667
    %v740 = vpack.c.b16 %v738, %v736
    %v741 = vpack.c.b16 %v739, %v737
    %vm743 = vcmask 130048
    %v745 = vsel %vm743, %v741, 0
    %747 = vmatprep.subr.bf16.mxu0 %v669
    %748 = vmatpush1.bf16.msra.mxu0 %v668
    %749 = vmatprep.subr.bf16.mxu0 %v675
    %750 = vmatpush1.bf16.msra.mxu0 %v674
    %751 = vmatprep.subr.bf16.mxu0 %v681
    %752 = vmatpush1.bf16.msra.mxu0 %v680
    %753 = vmatprep.subr.bf16.mxu0 %v687
    %754 = vmatpush1.bf16.msra.mxu0 %v686
    %755 = vmatprep.subr.bf16.mxu0 %v693
    %756 = vmatpush1.bf16.msra.mxu0 %v692
    %757 = vmatprep.subr.bf16.mxu0 %v699
    %758 = vmatpush1.bf16.msra.mxu0 %v698
    %759 = vmatprep.subr.bf16.mxu0 %v705
    %760 = vmatpush1.bf16.msra.mxu0 %v704
    %761 = vmatprep.subr.bf16.mxu0 %v711
    %762 = vmatpush1.bf16.msra.mxu0 %v710
    %763 = vmatprep.subr.bf16.mxu0 %v717
    %764 = vmatpush1.bf16.msra.mxu0 %v716
    %765 = vmatprep.subr.bf16.mxu0 0
    %766 = vmatpush1.bf16.msra.mxu0 0
    %767 = vmatprep.subr.bf16.mxu0 0
    %768 = vmatpush1.bf16.msra.mxu0 0
    %769 = vmatprep.subr.bf16.mxu0 0
    %770 = vmatpush1.bf16.msra.mxu0 0
    %771 = vmatprep.subr.bf16.mxu0 0
    %772 = vmatpush1.bf16.msra.mxu0 0
    %773 = vmatprep.subr.bf16.mxu0 0
    %774 = vmatpush1.bf16.msra.mxu0 0
    %775 = vmatprep.subr.bf16.mxu0 0
    %776 = vmatpush1.bf16.msra.mxu0 0
    %777 = vmatprep.subr.bf16.mxu0 0
    %778 = vmatpush1.bf16.msra.mxu0 0
    %779 = vmatprep.mubr.bf16.mxu0 %v745
    %780 = vmatmul.mubr.bf16.gmra.mrb[0].mxu0 %v740
    %v781 = vpop.f32.mrb[0].mxu0
    %v782 = vadd.f32 %v727, %v781
    %v783 = vpop.f32.mrb[0].mxu0
    %v784 = vadd.f32 %v727, %v783
    %v785 = vpop.f32.mrb[0].mxu0
    %v786 = vadd.f32 %v732, %v785
    %v787 = vpop.f32.mrb[0].mxu0
    %v788 = vadd.f32 %v732, %v787
    %789 = vdwg.mxu0
    %790 = vmatprep.subr.bf16.mxu0 %v671
    %791 = vmatpush1.bf16.msra.mxu0 %v670
    %792 = vmatprep.subr.bf16.mxu0 %v677
    %793 = vmatpush1.bf16.msra.mxu0 %v676
    %794 = vmatprep.subr.bf16.mxu0 %v683
    %795 = vmatpush1.bf16.msra.mxu0 %v682
    %796 = vmatprep.subr.bf16.mxu0 %v689
    %797 = vmatpush1.bf16.msra.mxu0 %v688
    %798 = vmatprep.subr.bf16.mxu0 %v695
    %799 = vmatpush1.bf16.msra.mxu0 %v694
    %800 = vmatprep.subr.bf16.mxu0 %v701
    %801 = vmatpush1.bf16.msra.mxu0 %v700
    %802 = vmatprep.subr.bf16.mxu0 %v707
    %803 = vmatpush1.bf16.msra.mxu0 %v706
    %804 = vmatprep.subr.bf16.mxu0 %v713
    %805 = vmatpush1.bf16.msra.mxu0 %v712
    %806 = vmatprep.subr.bf16.mxu0 %v719
    %807 = vmatpush1.bf16.msra.mxu0 %v718
    %808 = vmatprep.subr.bf16.mxu0 0
    %809 = vmatpush1.bf16.msra.mxu0 0
    %810 = vmatprep.subr.bf16.mxu0 0
    %811 = vmatpush1.bf16.msra.mxu0 0
    %812 = vmatprep.subr.bf16.mxu0 0
    %813 = vmatpush1.bf16.msra.mxu0 0
    %814 = vmatprep.subr.bf16.mxu0 0
    %815 = vmatpush1.bf16.msra.mxu0 0
    %816 = vmatprep.subr.bf16.mxu0 0
    %817 = vmatpush1.bf16.msra.mxu0 0
    %818 = vmatprep.subr.bf16.mxu0 0
    %819 = vmatpush1.bf16.msra.mxu0 0
    %820 = vmatprep.subr.bf16.mxu0 0
    %821 = vmatpush1.bf16.msra.mxu0 0
    %822 = vmatprep.mubr.bf16.mxu0 %v745
    %823 = vmatmul.mubr.bf16.gmra.mrb[0].mxu0 %v740
    %v824 = vpop.f32.mrb[0].mxu0
    %v825 = vadd.f32 %v727, %v824
    %v826 = vpop.f32.mrb[0].mxu0
    %v827 = vadd.f32 %v727, %v826
    %v828 = vpop.f32.mrb[0].mxu0
    %v829 = vadd.f32 %v732, %v828
    %v830 = vpop.f32.mrb[0].mxu0
    %v831 = vadd.f32 %v732, %v830
    %832 = vdwg.mxu0
    %833 = vmatprep.subr.bf16.mxu0 %v673
    %834 = vmatpush1.bf16.msra.mxu0 %v672
    %835 = vmatprep.subr.bf16.mxu0 %v679
    %836 = vmatpush1.bf16.msra.mxu0 %v678
    %837 = vmatprep.subr.bf16.mxu0 %v685
    %838 = vmatpush1.bf16.msra.mxu0 %v684
    %839 = vmatprep.subr.bf16.mxu0 %v691
    %840 = vmatpush1.bf16.msra.mxu0 %v690
    %841 = vmatprep.subr.bf16.mxu0 %v697
    %842 = vmatpush1.bf16.msra.mxu0 %v696
    %843 = vmatprep.subr.bf16.mxu0 %v703
    %844 = vmatpush1.bf16.msra.mxu0 %v702
    %845 = vmatprep.subr.bf16.mxu0 %v709
    %846 = vmatpush1.bf16.msra.mxu0 %v708
    %847 = vmatprep.subr.bf16.mxu0 %v715
    %848 = vmatpush1.bf16.msra.mxu0 %v714
    %849 = vmatprep.subr.bf16.mxu0 %v721
    %850 = vmatpush1.bf16.msra.mxu0 %v720
    %851 = vmatprep.subr.bf16.mxu0 0
    %852 = vmatpush1.bf16.msra.mxu0 0
    %853 = vmatprep.subr.bf16.mxu0 0
    %854 = vmatpush1.bf16.msra.mxu0 0
    %855 = vmatprep.subr.bf16.mxu0 0
    %856 = vmatpush1.bf16.msra.mxu0 0
    %857 = vmatprep.subr.bf16.mxu0 0
    %858 = vmatpush1.bf16.msra.mxu0 0
    %859 = vmatprep.subr.bf16.mxu0 0
    %860 = vmatpush1.bf16.msra.mxu0 0
    %861 = vmatprep.subr.bf16.mxu0 0
    %862 = vmatpush1.bf16.msra.mxu0 0
    %863 = vmatprep.subr.bf16.mxu0 0
    %864 = vmatpush1.bf16.msra.mxu0 0
    %865 = vmatprep.mubr.bf16.mxu0 %v745
    %866 = vmatmul.mubr.bf16.gmra.mrb[0].mxu0 %v740
    %v867 = vpop.f32.mrb[0].mxu0
    %v868 = vadd.f32 %v727, %v867
    %v869 = vpop.f32.mrb[0].mxu0
    %v870 = vadd.f32 %v727, %v869
    %v871 = vpop.f32.mrb[0].mxu0
    %v872 = vadd.f32 %v732, %v871
    %v873 = vpop.f32.mrb[0].mxu0
    %v874 = vadd.f32 %v732, %v873
    %875 = vdwg.mxu0
    %v876 = vmax.f32 %v782, 0.0
    %v877 = vmax.f32 %v784, 0.0
    %v878 = vmax.f32 %v825, 0.0
    %v879 = vmax.f32 %v827, 0.0
    %v880 = vmax.f32 %v868, 0.0
    %v881 = vmax.f32 %v870, 0.0
    %v882 = vmax.f32 %v786, 0.0
    %v883 = vmax.f32 %v788, 0.0
    %v884 = vmax.f32 %v829, 0.0
    %v885 = vmax.f32 %v831, 0.0
    %v886 = vmax.f32 %v872, 0.0
    %v887 = vmax.f32 %v874, 0.0
    %v889 = vlaneseq
    %v890 = vshrl.u32 %v889, 7
    %v891 = vsub.s32 0, %v890
    %v892 = vrot.slane %v105, %v891
    %v893 = vlaneseq
    %v894 = vshrl.u32 %v893, 7
    %v895 = vsub.s32 1, %v894
    %v896 = vrot.slane %v105, %v895
    %v897 = vlaneseq
    %v898 = vshrl.u32 %v897, 7
    %v899 = vsub.s32 2, %v898
    %v900 = vrot.slane %v105, %v899
    %v901 = vlaneseq
    %v902 = vshrl.u32 %v901, 7
    %v903 = vsub.s32 3, %v902
    %v904 = vrot.slane %v105, %v903
    %v905 = vlaneseq
    %v906 = vshrl.u32 %v905, 7
    %v907 = vsub.s32 4, %v906
    %v908 = vrot.slane %v105, %v907
    %v909 = vlaneseq
    %v910 = vshrl.u32 %v909, 7
    %v911 = vsub.s32 5, %v910
    %v912 = vrot.slane %v105, %v911
    %v919 = vmul.f32 %v876, %v892
    %v920 = vmul.f32 %v877, %v896
    %v921 = vmul.f32 %v878, %v900
    %v922 = vmul.f32 %v879, %v904
    %v923 = vmul.f32 %v880, %v908
    %v924 = vmul.f32 %v881, %v912
    %v925 = vmul.f32 %v882, %v892
    %v926 = vmul.f32 %v883, %v896
    %v927 = vmul.f32 %v884, %v900
    %v928 = vmul.f32 %v885, %v904
    %v929 = vmul.f32 %v886, %v908
    %v930 = vmul.f32 %v887, %v912
    %v931 = vpack.c.bf16 %v925, %v919
    %v932 = vpack.c.bf16 %v926, %v920
    %v933 = vpack.c.bf16 %v927, %v921
    %v934 = vpack.c.bf16 %v928, %v922
    %v935 = vpack.c.bf16 %v929, %v923
    %v936 = vpack.c.bf16 %v930, %v924
    %937 = vst [vmem:[#allocation3] sm:$0xff] 0
    %938 = vst [vmem:[#allocation3 + $0x20] sm:$0xff] 0
    %939 = vst [vmem:[#allocation3 + $0x8] sm:$0xff] %v931
    %940 = vst [vmem:[#allocation3 + $0x10] sm:$0xff] %v932
    %941 = vst [vmem:[#allocation3 + $0x18] sm:$0xff] %v933
    %942 = vst [vmem:[#allocation3 + $0x28] sm:$0xff] 0
    %943 = vst [vmem:[#allocation3 + $0x48] sm:$0xff] 0
    %944 = vst [vmem:[#allocation3 + $0x30] sm:$0xff] %v934
    %945 = vst [vmem:[#allocation3 + $0x38] sm:$0xff] %v935
    %946 = vst [vmem:[#allocation3 + $0x40] sm:$0xff] %v936
    %v947 = vld [vmem:[#allocation3] sm:$0xff]
    %v948 = vld [vmem:[#allocation3 + $0x8] sm:$0xff]
    %v949 = vld [vmem:[#allocation3 + $0x10] sm:$0xff]
    %v950 = vld [vmem:[#allocation3 + $0x18] sm:$0xff]
    %955 = vrot.lane.b32.xlu0 %v947, 19
    %v956 = vpop.permute.xlu0 %955
    %957 = vrot.lane.b32.xlu0 %v948, 19
    %v958 = vpop.permute.xlu0 %957
    %959 = vrot.lane.b32.xlu0 %v949, 19
    %v960 = vpop.permute.xlu0 %959
    %961 = vrot.lane.b32.xlu0 %v950, 19
    %v962 = vpop.permute.xlu0 %961
    %v963 = vsel %vm130, %v956, %v958
    %v964 = vsel %vm130, %v958, %v960
    %v965 = vsel %vm130, %v960, %v962
    %969 = vst [vmem:[#allocation2] sm:$0xff] %v963
    %970 = vst [vmem:[#allocation2 + $0x8] sm:$0xff] %v964
    %971 = vst [vmem:[#allocation2 + $0x10] sm:$0xff] %v965
    %v972 = vld [vmem:[#allocation3] sm:$0xff]
    %v973 = vld [vmem:[#allocation3 + $0x8] sm:$0xff]
    %v974 = vld [vmem:[#allocation3 + $0x10] sm:$0xff]
    %v975 = vld [vmem:[#allocation3 + $0x18] sm:$0xff]
    %980 = vrot.lane.b32.xlu0 %v972, 18
    %v981 = vpop.permute.xlu0 %980
    %982 = vrot.lane.b32.xlu0 %v973, 18
    %v983 = vpop.permute.xlu0 %982
    %984 = vrot.lane.b32.xlu0 %v974, 18
    %v985 = vpop.permute.xlu0 %984
    %986 = vrot.lane.b32.xlu0 %v975, 18
    %v987 = vpop.permute.xlu0 %986
    %v988 = vsel %vm164, %v981, %v983
    %v989 = vsel %vm164, %v983, %v985
    %v990 = vsel %vm164, %v985, %v987
    %994 = vst [vmem:[#allocation2 + $0x30] sm:$0xff] %v988
    %995 = vst [vmem:[#allocation2 + $0x38] sm:$0xff] %v989
    %996 = vst [vmem:[#allocation2 + $0x40] sm:$0xff] %v990
    %v997 = vld [vmem:[#allocation3] sm:$0xff]
    %v998 = vld [vmem:[#allocation3 + $0x8] sm:$0xff]
    %v999 = vld [vmem:[#allocation3 + $0x10] sm:$0xff]
    %v1000 = vld [vmem:[#allocation3 + $0x18] sm:$0xff]
    %1005 = vrot.lane.b32.xlu0 %v997, 17
    %v1006 = vpop.permute.xlu0 %1005
    %1007 = vrot.lane.b32.xlu0 %v998, 17
    %v1008 = vpop.permute.xlu0 %1007
    %1009 = vrot.lane.b32.xlu0 %v999, 17
    %v1010 = vpop.permute.xlu0 %1009
    %1011 = vrot.lane.b32.xlu0 %v1000, 17
    %v1012 = vpop.permute.xlu0 %1011
    %v1013 = vsel %vm198, %v1006, %v1008
    %v1014 = vsel %vm198, %v1008, %v1010
    %v1015 = vsel %vm198, %v1010, %v1012
    %1019 = vst [vmem:[#allocation2 + $0x60] sm:$0xff] %v1013
    %1020 = vst [vmem:[#allocation2 + $0x68] sm:$0xff] %v1014
    %1021 = vst [vmem:[#allocation2 + $0x70] sm:$0xff] %v1015
    %v1022 = vld [vmem:[#allocation3] sm:$0xff]
    %v1023 = vld [vmem:[#allocation3 + $0x8] sm:$0xff]
    %v1024 = vld [vmem:[#allocation3 + $0x10] sm:$0xff]
    %v1025 = vld [vmem:[#allocation3 + $0x18] sm:$0xff]
    %1030 = vrot.lane.b32.xlu0 %v1022, 1
    %v1031 = vpop.permute.xlu0 %1030
    %1032 = vrot.lane.b32.xlu0 %v1023, 1
    %v1033 = vpop.permute.xlu0 %1032
    %1034 = vrot.lane.b32.xlu0 %v1024, 1
    %v1035 = vpop.permute.xlu0 %1034
    %1036 = vrot.lane.b32.xlu0 %v1025, 1
    %v1037 = vpop.permute.xlu0 %1036
    %v1038 = vsel %vm232, %v1031, %v1033
    %v1039 = vsel %vm232, %v1033, %v1035
    %v1040 = vsel %vm232, %v1035, %v1037
    %1044 = vst [vmem:[#allocation2 + $0x90] sm:$0xff] %v1038
    %1045 = vst [vmem:[#allocation2 + $0x98] sm:$0xff] %v1039
    %1046 = vst [vmem:[#allocation2 + $0xa0] sm:$0xff] %v1040
    %v1047 = vld [vmem:[#allocation3 + $0x8] sm:$0xff]
    %v1048 = vld [vmem:[#allocation3 + $0x10] sm:$0xff]
    %v1049 = vld [vmem:[#allocation3 + $0x18] sm:$0xff]
    %1050 = vst [vmem:[#allocation2 + $0xc0] sm:$0xff] %v1047
    %1051 = vst [vmem:[#allocation2 + $0xc8] sm:$0xff] %v1048
    %1052 = vst [vmem:[#allocation2 + $0xd0] sm:$0xff] %v1049
    %v1053 = vld [vmem:[#allocation3 + $0x8] sm:$0xff]
    %v1054 = vld [vmem:[#allocation3 + $0x10] sm:$0xff]
    %v1055 = vld [vmem:[#allocation3 + $0x18] sm:$0xff]
    %v1056 = vld [vmem:[#allocation3 + $0x20] sm:$0xff]
    %1061 = vrot.lane.b32.xlu0 %v1053, 127
    %v1062 = vpop.permute.xlu0 %1061
    %1063 = vrot.lane.b32.xlu0 %v1054, 127
    %v1064 = vpop.permute.xlu0 %1063
    %1065 = vrot.lane.b32.xlu0 %v1055, 127
    %v1066 = vpop.permute.xlu0 %1065
    %1067 = vrot.lane.b32.xlu0 %v1056, 127
    %v1068 = vpop.permute.xlu0 %1067
    %v1069 = vsel %vm278, %v1062, %v1064
    %v1070 = vsel %vm278, %v1064, %v1066
    %v1071 = vsel %vm278, %v1066, %v1068
    %1075 = vst [vmem:[#allocation2 + $0xf0] sm:$0xff] %v1069
    %1076 = vst [vmem:[#allocation2 + $0xf8] sm:$0xff] %v1070
    %1077 = vst [vmem:[#allocation2 + $0x100] sm:$0xff] %v1071
    %v1078 = vld [vmem:[#allocation3 + $0x8] sm:$0xff]
    %v1079 = vld [vmem:[#allocation3 + $0x10] sm:$0xff]
    %v1080 = vld [vmem:[#allocation3 + $0x18] sm:$0xff]
    %v1081 = vld [vmem:[#allocation3 + $0x20] sm:$0xff]
    %1086 = vrot.lane.b32.xlu0 %v1078, 111
    %v1087 = vpop.permute.xlu0 %1086
    %1088 = vrot.lane.b32.xlu0 %v1079, 111
    %v1089 = vpop.permute.xlu0 %1088
    %1090 = vrot.lane.b32.xlu0 %v1080, 111
    %v1091 = vpop.permute.xlu0 %1090
    %1092 = vrot.lane.b32.xlu0 %v1081, 111
    %v1093 = vpop.permute.xlu0 %1092
    %v1094 = vsel %vm312, %v1087, %v1089
    %v1095 = vsel %vm312, %v1089, %v1091
    %v1096 = vsel %vm312, %v1091, %v1093
    %1100 = vst [vmem:[#allocation2 + $0x120] sm:$0xff] %v1094
    %1101 = vst [vmem:[#allocation2 + $0x128] sm:$0xff] %v1095
    %1102 = vst [vmem:[#allocation2 + $0x130] sm:$0xff] %v1096
    %v1103 = vld [vmem:[#allocation3 + $0x8] sm:$0xff]
    %v1104 = vld [vmem:[#allocation3 + $0x10] sm:$0xff]
    %v1105 = vld [vmem:[#allocation3 + $0x18] sm:$0xff]
    %v1106 = vld [vmem:[#allocation3 + $0x20] sm:$0xff]
    %1111 = vrot.lane.b32.xlu0 %v1103, 110
    %v1112 = vpop.permute.xlu0 %1111
    %1113 = vrot.lane.b32.xlu0 %v1104, 110
    %v1114 = vpop.permute.xlu0 %1113
    %1115 = vrot.lane.b32.xlu0 %v1105, 110
    %v1116 = vpop.permute.xlu0 %1115
    %1117 = vrot.lane.b32.xlu0 %v1106, 110
    %v1118 = vpop.permute.xlu0 %1117
    %v1119 = vsel %vm346, %v1112, %v1114
    %v1120 = vsel %vm346, %v1114, %v1116
    %v1121 = vsel %vm346, %v1116, %v1118
    %1125 = vst [vmem:[#allocation2 + $0x150] sm:$0xff] %v1119
    %1126 = vst [vmem:[#allocation2 + $0x158] sm:$0xff] %v1120
    %1127 = vst [vmem:[#allocation2 + $0x160] sm:$0xff] %v1121
    %v1128 = vld [vmem:[#allocation3 + $0x8] sm:$0xff]
    %v1129 = vld [vmem:[#allocation3 + $0x10] sm:$0xff]
    %v1130 = vld [vmem:[#allocation3 + $0x18] sm:$0xff]
    %v1131 = vld [vmem:[#allocation3 + $0x20] sm:$0xff]
    %1136 = vrot.lane.b32.xlu0 %v1128, 109
    %v1137 = vpop.permute.xlu0 %1136
    %1138 = vrot.lane.b32.xlu0 %v1129, 109
    %v1139 = vpop.permute.xlu0 %1138
    %1140 = vrot.lane.b32.xlu0 %v1130, 109
    %v1141 = vpop.permute.xlu0 %1140
    %1142 = vrot.lane.b32.xlu0 %v1131, 109
    %v1143 = vpop.permute.xlu0 %1142
    %v1144 = vsel %vm380, %v1137, %v1139
    %v1145 = vsel %vm380, %v1139, %v1141
    %v1146 = vsel %vm380, %v1141, %v1143
    %1150 = vst [vmem:[#allocation2 + $0x180] sm:$0xff] %v1144
    %1151 = vst [vmem:[#allocation2 + $0x188] sm:$0xff] %v1145
    %1152 = vst [vmem:[#allocation2 + $0x190] sm:$0xff] %v1146
    %v1153 = vld [vmem:[#allocation3 + $0x28] sm:$0xff]
    %v1154 = vld [vmem:[#allocation3 + $0x30] sm:$0xff]
    %v1155 = vld [vmem:[#allocation3 + $0x38] sm:$0xff]
    %v1156 = vld [vmem:[#allocation3 + $0x40] sm:$0xff]
    %1161 = vrot.lane.b32.xlu0 %v1153, 19
    %v1162 = vpop.permute.xlu0 %1161
    %1163 = vrot.lane.b32.xlu0 %v1154, 19
    %v1164 = vpop.permute.xlu0 %1163
    %1165 = vrot.lane.b32.xlu0 %v1155, 19
    %v1166 = vpop.permute.xlu0 %1165
    %1167 = vrot.lane.b32.xlu0 %v1156, 19
    %v1168 = vpop.permute.xlu0 %1167
    %v1169 = vsel %vm130, %v1162, %v1164
    %v1170 = vsel %vm130, %v1164, %v1166
    %v1171 = vsel %vm130, %v1166, %v1168
    %1175 = vst [vmem:[#allocation2 + $0x18] sm:$0xff] %v1169
    %1176 = vst [vmem:[#allocation2 + $0x20] sm:$0xff] %v1170
    %1177 = vst [vmem:[#allocation2 + $0x28] sm:$0xff] %v1171
    %v1178 = vld [vmem:[#allocation3 + $0x28] sm:$0xff]
    %v1179 = vld [vmem:[#allocation3 + $0x30] sm:$0xff]
    %v1180 = vld [vmem:[#allocation3 + $0x38] sm:$0xff]
    %v1181 = vld [vmem:[#allocation3 + $0x40] sm:$0xff]
    %1186 = vrot.lane.b32.xlu0 %v1178, 18
    %v1187 = vpop.permute.xlu0 %1186
    %1188 = vrot.lane.b32.xlu0 %v1179, 18
    %v1189 = vpop.permute.xlu0 %1188
    %1190 = vrot.lane.b32.xlu0 %v1180, 18
    %v1191 = vpop.permute.xlu0 %1190
    %1192 = vrot.lane.b32.xlu0 %v1181, 18
    %v1193 = vpop.permute.xlu0 %1192
    %v1194 = vsel %vm164, %v1187, %v1189
    %v1195 = vsel %vm164, %v1189, %v1191
    %v1196 = vsel %vm164, %v1191, %v1193
    %1200 = vst [vmem:[#allocation2 + $0x48] sm:$0xff] %v1194
    %1201 = vst [vmem:[#allocation2 + $0x50] sm:$0xff] %v1195
    %1202 = vst [vmem:[#allocation2 + $0x58] sm:$0xff] %v1196
    %v1203 = vld [vmem:[#allocation3 + $0x28] sm:$0xff]
    %v1204 = vld [vmem:[#allocation3 + $0x30] sm:$0xff]
    %v1205 = vld [vmem:[#allocation3 + $0x38] sm:$0xff]
    %v1206 = vld [vmem:[#allocation3 + $0x40] sm:$0xff]
    %1211 = vrot.lane.b32.xlu0 %v1203, 17
    %v1212 = vpop.permute.xlu0 %1211
    %1213 = vrot.lane.b32.xlu0 %v1204, 17
    %v1214 = vpop.permute.xlu0 %1213
    %1215 = vrot.lane.b32.xlu0 %v1205, 17
    %v1216 = vpop.permute.xlu0 %1215
    %1217 = vrot.lane.b32.xlu0 %v1206, 17
    %v1218 = vpop.permute.xlu0 %1217
    %v1219 = vsel %vm198, %v1212, %v1214
    %v1220 = vsel %vm198, %v1214, %v1216
    %v1221 = vsel %vm198, %v1216, %v1218
    %1225 = vst [vmem:[#allocation2 + $0x78] sm:$0xff] %v1219
    %1226 = vst [vmem:[#allocation2 + $0x80] sm:$0xff] %v1220
    %1227 = vst [vmem:[#allocation2 + $0x88] sm:$0xff] %v1221
    %v1228 = vld [vmem:[#allocation3 + $0x28] sm:$0xff]
    %v1229 = vld [vmem:[#allocation3 + $0x30] sm:$0xff]
    %v1230 = vld [vmem:[#allocation3 + $0x38] sm:$0xff]
    %v1231 = vld [vmem:[#allocation3 + $0x40] sm:$0xff]
    %1236 = vrot.lane.b32.xlu0 %v1228, 1
    %v1237 = vpop.permute.xlu0 %1236
    %1238 = vrot.lane.b32.xlu0 %v1229, 1
    %v1239 = vpop.permute.xlu0 %1238
    %1240 = vrot.lane.b32.xlu0 %v1230, 1
    %v1241 = vpop.permute.xlu0 %1240
    %1242 = vrot.lane.b32.xlu0 %v1231, 1
    %v1243 = vpop.permute.xlu0 %1242
    %v1244 = vsel %vm232, %v1237, %v1239
    %v1245 = vsel %vm232, %v1239, %v1241
    %v1246 = vsel %vm232, %v1241, %v1243
    %1250 = vst [vmem:[#allocation2 + $0xa8] sm:$0xff] %v1244
    %1251 = vst [vmem:[#allocation2 + $0xb0] sm:$0xff] %v1245
    %1252 = vst [vmem:[#allocation2 + $0xb8] sm:$0xff] %v1246
    %v1253 = vld [vmem:[#allocation3 + $0x30] sm:$0xff]
    %v1254 = vld [vmem:[#allocation3 + $0x38] sm:$0xff]
    %v1255 = vld [vmem:[#allocation3 + $0x40] sm:$0xff]
    %1256 = vst [vmem:[#allocation2 + $0xd8] sm:$0xff] %v1253
    %1257 = vst [vmem:[#allocation2 + $0xe0] sm:$0xff] %v1254
    %1258 = vst [vmem:[#allocation2 + $0xe8] sm:$0xff] %v1255
    %v1259 = vld [vmem:[#allocation3 + $0x30] sm:$0xff]
    %v1260 = vld [vmem:[#allocation3 + $0x38] sm:$0xff]
    %v1261 = vld [vmem:[#allocation3 + $0x40] sm:$0xff]
    %v1262 = vld [vmem:[#allocation3 + $0x48] sm:$0xff]
    %1267 = vrot.lane.b32.xlu0 %v1259, 127
    %v1268 = vpop.permute.xlu0 %1267
    %1269 = vrot.lane.b32.xlu0 %v1260, 127
    %v1270 = vpop.permute.xlu0 %1269
    %1271 = vrot.lane.b32.xlu0 %v1261, 127
    %v1272 = vpop.permute.xlu0 %1271
    %1273 = vrot.lane.b32.xlu0 %v1262, 127
    %v1274 = vpop.permute.xlu0 %1273
    %v1275 = vsel %vm278, %v1268, %v1270
    %v1276 = vsel %vm278, %v1270, %v1272
    %v1277 = vsel %vm278, %v1272, %v1274
    %1281 = vst [vmem:[#allocation2 + $0x108] sm:$0xff] %v1275
    %1282 = vst [vmem:[#allocation2 + $0x110] sm:$0xff] %v1276
    %1283 = vst [vmem:[#allocation2 + $0x118] sm:$0xff] %v1277
    %v1284 = vld [vmem:[#allocation3 + $0x30] sm:$0xff]
    %v1285 = vld [vmem:[#allocation3 + $0x38] sm:$0xff]
    %v1286 = vld [vmem:[#allocation3 + $0x40] sm:$0xff]
    %v1287 = vld [vmem:[#allocation3 + $0x48] sm:$0xff]
    %1292 = vrot.lane.b32.xlu0 %v1284, 111
    %v1293 = vpop.permute.xlu0 %1292
    %1294 = vrot.lane.b32.xlu0 %v1285, 111
    %v1295 = vpop.permute.xlu0 %1294
    %1296 = vrot.lane.b32.xlu0 %v1286, 111
    %v1297 = vpop.permute.xlu0 %1296
    %1298 = vrot.lane.b32.xlu0 %v1287, 111
    %v1299 = vpop.permute.xlu0 %1298
    %v1300 = vsel %vm312, %v1293, %v1295
    %v1301 = vsel %vm312, %v1295, %v1297
    %v1302 = vsel %vm312, %v1297, %v1299
    %1306 = vst [vmem:[#allocation2 + $0x138] sm:$0xff] %v1300
    %1307 = vst [vmem:[#allocation2 + $0x140] sm:$0xff] %v1301
    %1308 = vst [vmem:[#allocation2 + $0x148] sm:$0xff] %v1302
    %v1309 = vld [vmem:[#allocation3 + $0x30] sm:$0xff]
    %v1310 = vld [vmem:[#allocation3 + $0x38] sm:$0xff]
    %v1311 = vld [vmem:[#allocation3 + $0x40] sm:$0xff]
    %v1312 = vld [vmem:[#allocation3 + $0x48] sm:$0xff]
    %1317 = vrot.lane.b32.xlu0 %v1309, 110
    %v1318 = vpop.permute.xlu0 %1317
    %1319 = vrot.lane.b32.xlu0 %v1310, 110
    %v1320 = vpop.permute.xlu0 %1319
    %1321 = vrot.lane.b32.xlu0 %v1311, 110
    %v1322 = vpop.permute.xlu0 %1321
    %1323 = vrot.lane.b32.xlu0 %v1312, 110
    %v1324 = vpop.permute.xlu0 %1323
    %v1325 = vsel %vm346, %v1318, %v1320
    %v1326 = vsel %vm346, %v1320, %v1322
    %v1327 = vsel %vm346, %v1322, %v1324
    %1331 = vst [vmem:[#allocation2 + $0x168] sm:$0xff] %v1325
    %1332 = vst [vmem:[#allocation2 + $0x170] sm:$0xff] %v1326
    %1333 = vst [vmem:[#allocation2 + $0x178] sm:$0xff] %v1327
    %v1334 = vld [vmem:[#allocation3 + $0x30] sm:$0xff]
    %v1335 = vld [vmem:[#allocation3 + $0x38] sm:$0xff]
    %v1336 = vld [vmem:[#allocation3 + $0x40] sm:$0xff]
    %v1337 = vld [vmem:[#allocation3 + $0x48] sm:$0xff]
    %1342 = vrot.lane.b32.xlu0 %v1334, 109
    %v1343 = vpop.permute.xlu0 %1342
    %1344 = vrot.lane.b32.xlu0 %v1335, 109
    %v1345 = vpop.permute.xlu0 %1344
    %1346 = vrot.lane.b32.xlu0 %v1336, 109
    %v1347 = vpop.permute.xlu0 %1346
    %1348 = vrot.lane.b32.xlu0 %v1337, 109
    %v1349 = vpop.permute.xlu0 %1348
    %v1350 = vsel %vm380, %v1343, %v1345
    %v1351 = vsel %vm380, %v1345, %v1347
    %v1352 = vsel %vm380, %v1347, %v1349
    %1356 = vst [vmem:[#allocation2 + $0x198] sm:$0xff] %v1350
    %1357 = vst [vmem:[#allocation2 + $0x1a0] sm:$0xff] %v1351
    %1358 = vst [vmem:[#allocation2 + $0x1a8] sm:$0xff] %v1352
    %v1359 = vld [vmem:[#allocation9] sm:$0xff]
    %v1360 = vld [vmem:[#allocation9 + $0x8] sm:$0xff]
    %v1361 = vld [vmem:[#allocation2] sm:$0xff]
    %v1362 = vld [vmem:[#allocation2 + $0x8] sm:$0xff]
    %v1363 = vld [vmem:[#allocation2 + $0x10] sm:$0xff]
    %v1364 = vld [vmem:[#allocation2 + $0x18] sm:$0xff]
    %v1365 = vld [vmem:[#allocation2 + $0x20] sm:$0xff]
    %v1366 = vld [vmem:[#allocation2 + $0x28] sm:$0xff]
    %v1367 = vld [vmem:[#allocation2 + $0x30] sm:$0xff]
    %v1368 = vld [vmem:[#allocation2 + $0x38] sm:$0xff]
    %v1369 = vld [vmem:[#allocation2 + $0x40] sm:$0xff]
    %v1370 = vld [vmem:[#allocation2 + $0x48] sm:$0xff]
    %v1371 = vld [vmem:[#allocation2 + $0x50] sm:$0xff]
    %v1372 = vld [vmem:[#allocation2 + $0x58] sm:$0xff]
    %v1373 = vld [vmem:[#allocation2 + $0x60] sm:$0xff]
    %v1374 = vld [vmem:[#allocation2 + $0x68] sm:$0xff]
    %v1375 = vld [vmem:[#allocation2 + $0x70] sm:$0xff]
    %v1376 = vld [vmem:[#allocation2 + $0x78] sm:$0xff]
    %v1377 = vld [vmem:[#allocation2 + $0x80] sm:$0xff]
    %v1378 = vld [vmem:[#allocation2 + $0x88] sm:$0xff]
    %v1379 = vld [vmem:[#allocation2 + $0x90] sm:$0xff]
    %v1380 = vld [vmem:[#allocation2 + $0x98] sm:$0xff]
    %v1381 = vld [vmem:[#allocation2 + $0xa0] sm:$0xff]
    %v1382 = vld [vmem:[#allocation2 + $0xa8] sm:$0xff]
    %v1383 = vld [vmem:[#allocation2 + $0xb0] sm:$0xff]
    %v1384 = vld [vmem:[#allocation2 + $0xb8] sm:$0xff]
    %v1385 = vld [vmem:[#allocation2 + $0xc0] sm:$0xff]
    %v1386 = vld [vmem:[#allocation2 + $0xc8] sm:$0xff]
    %v1387 = vld [vmem:[#allocation2 + $0xd0] sm:$0xff]
    %v1388 = vld [vmem:[#allocation2 + $0xd8] sm:$0xff]
    %v1389 = vld [vmem:[#allocation2 + $0xe0] sm:$0xff]
    %v1390 = vld [vmem:[#allocation2 + $0xe8] sm:$0xff]
    %v1391 = vld [vmem:[#allocation2 + $0xf0] sm:$0xff]
    %v1392 = vld [vmem:[#allocation2 + $0xf8] sm:$0xff]
    %v1393 = vld [vmem:[#allocation2 + $0x100] sm:$0xff]
    %v1394 = vld [vmem:[#allocation2 + $0x108] sm:$0xff]
    %v1395 = vld [vmem:[#allocation2 + $0x110] sm:$0xff]
    %v1396 = vld [vmem:[#allocation2 + $0x118] sm:$0xff]
    %v1397 = vld [vmem:[#allocation2 + $0x120] sm:$0xff]
    %v1398 = vld [vmem:[#allocation2 + $0x128] sm:$0xff]
    %v1399 = vld [vmem:[#allocation2 + $0x130] sm:$0xff]
    %v1400 = vld [vmem:[#allocation2 + $0x138] sm:$0xff]
    %v1401 = vld [vmem:[#allocation2 + $0x140] sm:$0xff]
    %v1402 = vld [vmem:[#allocation2 + $0x148] sm:$0xff]
    %v1403 = vld [vmem:[#allocation2 + $0x150] sm:$0xff]
    %v1404 = vld [vmem:[#allocation2 + $0x158] sm:$0xff]
    %v1405 = vld [vmem:[#allocation2 + $0x160] sm:$0xff]
    %v1406 = vld [vmem:[#allocation2 + $0x168] sm:$0xff]
    %v1407 = vld [vmem:[#allocation2 + $0x170] sm:$0xff]
    %v1408 = vld [vmem:[#allocation2 + $0x178] sm:$0xff]
    %v1409 = vld [vmem:[#allocation2 + $0x180] sm:$0xff]
    %v1410 = vld [vmem:[#allocation2 + $0x188] sm:$0xff]
    %v1411 = vld [vmem:[#allocation2 + $0x190] sm:$0xff]
    %v1412 = vld [vmem:[#allocation2 + $0x198] sm:$0xff]
    %v1413 = vld [vmem:[#allocation2 + $0x1a0] sm:$0xff]
    %v1414 = vld [vmem:[#allocation2 + $0x1a8] sm:$0xff]
    %v1417 = vunpack.c.l.b16 %v1359
    %v1418 = vunpack.c.h.b16 %v1359
    %v1419 = vunpack.c.l.b16 %v1360
    %v1420 = vunpack.c.h.b16 %v1360
    %v1421 = vpack.c.b16 %v1419, %v1417
    %v1422 = vpack.c.b16 %v1420, %v1418
    %v1425 = vsel %vm743, %v1422, 0
    %1427 = vmatprep.subr.bf16.mxu0 %v1362
    %1428 = vmatpush1.bf16.msra.mxu0 %v1361
    %1429 = vmatprep.subr.bf16.mxu0 %v1368
    %1430 = vmatpush1.bf16.msra.mxu0 %v1367
    %1431 = vmatprep.subr.bf16.mxu0 %v1374
    %1432 = vmatpush1.bf16.msra.mxu0 %v1373
    %1433 = vmatprep.subr.bf16.mxu0 %v1380
    %1434 = vmatpush1.bf16.msra.mxu0 %v1379
    %1435 = vmatprep.subr.bf16.mxu0 %v1386
    %1436 = vmatpush1.bf16.msra.mxu0 %v1385
    %1437 = vmatprep.subr.bf16.mxu0 %v1392
    %1438 = vmatpush1.bf16.msra.mxu0 %v1391
    %1439 = vmatprep.subr.bf16.mxu0 %v1398
    %1440 = vmatpush1.bf16.msra.mxu0 %v1397
    %1441 = vmatprep.subr.bf16.mxu0 %v1404
    %1442 = vmatpush1.bf16.msra.mxu0 %v1403
    %1443 = vmatprep.subr.bf16.mxu0 %v1410
    %1444 = vmatpush1.bf16.msra.mxu0 %v1409
    %1445 = vmatprep.subr.bf16.mxu0 0
    %1446 = vmatpush1.bf16.msra.mxu0 0
    %1447 = vmatprep.subr.bf16.mxu0 0
    %1448 = vmatpush1.bf16.msra.mxu0 0
    %1449 = vmatprep.subr.bf16.mxu0 0
    %1450 = vmatpush1.bf16.msra.mxu0 0
    %1451 = vmatprep.subr.bf16.mxu0 0
    %1452 = vmatpush1.bf16.msra.mxu0 0
    %1453 = vmatprep.subr.bf16.mxu0 0
    %1454 = vmatpush1.bf16.msra.mxu0 0
    %1455 = vmatprep.subr.bf16.mxu0 0
    %1456 = vmatpush1.bf16.msra.mxu0 0
    %1457 = vmatprep.subr.bf16.mxu0 0
    %1458 = vmatpush1.bf16.msra.mxu0 0
    %1459 = vmatprep.mubr.bf16.mxu0 %v1425
    %1460 = vmatmul.mubr.bf16.gmra.mrb[0].mxu0 %v1421
    %v1461 = vpop.f32.mrb[0].mxu0
    %v1462 = vadd.f32 0.0, %v1461
    %v1463 = vpop.f32.mrb[0].mxu0
    %v1464 = vadd.f32 0.0, %v1463
    %v1465 = vpop.f32.mrb[0].mxu0
    %v1466 = vadd.f32 0.0, %v1465
    %v1467 = vpop.f32.mrb[0].mxu0
    %v1468 = vadd.f32 0.0, %v1467
    %1469 = vdwg.mxu0
    %1470 = vmatprep.subr.bf16.mxu0 %v1364
    %1471 = vmatpush1.bf16.msra.mxu0 %v1363
    %1472 = vmatprep.subr.bf16.mxu0 %v1370
    %1473 = vmatpush1.bf16.msra.mxu0 %v1369
    %1474 = vmatprep.subr.bf16.mxu0 %v1376
    %1475 = vmatpush1.bf16.msra.mxu0 %v1375
    %1476 = vmatprep.subr.bf16.mxu0 %v1382
    %1477 = vmatpush1.bf16.msra.mxu0 %v1381
    %1478 = vmatprep.subr.bf16.mxu0 %v1388
    %1479 = vmatpush1.bf16.msra.mxu0 %v1387
    %1480 = vmatprep.subr.bf16.mxu0 %v1394
    %1481 = vmatpush1.bf16.msra.mxu0 %v1393
    %1482 = vmatprep.subr.bf16.mxu0 %v1400
    %1483 = vmatpush1.bf16.msra.mxu0 %v1399
    %1484 = vmatprep.subr.bf16.mxu0 %v1406
    %1485 = vmatpush1.bf16.msra.mxu0 %v1405
    %1486 = vmatprep.subr.bf16.mxu0 %v1412
    %1487 = vmatpush1.bf16.msra.mxu0 %v1411
    %1488 = vmatprep.subr.bf16.mxu0 0
    %1489 = vmatpush1.bf16.msra.mxu0 0
    %1490 = vmatprep.subr.bf16.mxu0 0
    %1491 = vmatpush1.bf16.msra.mxu0 0
    %1492 = vmatprep.subr.bf16.mxu0 0
    %1493 = vmatpush1.bf16.msra.mxu0 0
    %1494 = vmatprep.subr.bf16.mxu0 0
    %1495 = vmatpush1.bf16.msra.mxu0 0
    %1496 = vmatprep.subr.bf16.mxu0 0
    %1497 = vmatpush1.bf16.msra.mxu0 0
    %1498 = vmatprep.subr.bf16.mxu0 0
    %1499 = vmatpush1.bf16.msra.mxu0 0
    %1500 = vmatprep.subr.bf16.mxu0 0
    %1501 = vmatpush1.bf16.msra.mxu0 0
    %1502 = vmatprep.mubr.bf16.mxu0 %v1425
    %1503 = vmatmul.mubr.bf16.gmra.mrb[0].mxu0 %v1421
    %v1504 = vpop.f32.mrb[0].mxu0
    %v1505 = vadd.f32 0.0, %v1504
    %v1506 = vpop.f32.mrb[0].mxu0
    %v1507 = vadd.f32 0.0, %v1506
    %v1508 = vpop.f32.mrb[0].mxu0
    %v1509 = vadd.f32 0.0, %v1508
    %v1510 = vpop.f32.mrb[0].mxu0
    %v1511 = vadd.f32 0.0, %v1510
    %1512 = vdwg.mxu0
    %1513 = vmatprep.subr.bf16.mxu0 %v1366
    %1514 = vmatpush1.bf16.msra.mxu0 %v1365
    %1515 = vmatprep.subr.bf16.mxu0 %v1372
    %1516 = vmatpush1.bf16.msra.mxu0 %v1371
    %1517 = vmatprep.subr.bf16.mxu0 %v1378
    %1518 = vmatpush1.bf16.msra.mxu0 %v1377
    %1519 = vmatprep.subr.bf16.mxu0 %v1384
    %1520 = vmatpush1.bf16.msra.mxu0 %v1383
    %1521 = vmatprep.subr.bf16.mxu0 %v1390
    %1522 = vmatpush1.bf16.msra.mxu0 %v1389
    %1523 = vmatprep.subr.bf16.mxu0 %v1396
    %1524 = vmatpush1.bf16.msra.mxu0 %v1395
    %1525 = vmatprep.subr.bf16.mxu0 %v1402
    %1526 = vmatpush1.bf16.msra.mxu0 %v1401
    %1527 = vmatprep.subr.bf16.mxu0 %v1408
    %1528 = vmatpush1.bf16.msra.mxu0 %v1407
    %1529 = vmatprep.subr.bf16.mxu0 %v1414
    %1530 = vmatpush1.bf16.msra.mxu0 %v1413
    %1531 = vmatprep.subr.bf16.mxu0 0
    %1532 = vmatpush1.bf16.msra.mxu0 0
    %1533 = vmatprep.subr.bf16.mxu0 0
    %1534 = vmatpush1.bf16.msra.mxu0 0
    %1535 = vmatprep.subr.bf16.mxu0 0
    %1536 = vmatpush1.bf16.msra.mxu0 0
    %1537 = vmatprep.subr.bf16.mxu0 0
    %1538 = vmatpush1.bf16.msra.mxu0 0
    %1539 = vmatprep.subr.bf16.mxu0 0
    %1540 = vmatpush1.bf16.msra.mxu0 0
    %1541 = vmatprep.subr.bf16.mxu0 0
    %1542 = vmatpush1.bf16.msra.mxu0 0
    %1543 = vmatprep.subr.bf16.mxu0 0
    %1544 = vmatpush1.bf16.msra.mxu0 0
    %1545 = vmatprep.mubr.bf16.mxu0 %v1425
    %1546 = vmatmul.mubr.bf16.gmra.mrb[0].mxu0 %v1421
    %v1547 = vpop.f32.mrb[0].mxu0
    %v1548 = vadd.f32 0.0, %v1547
    %v1549 = vpop.f32.mrb[0].mxu0
    %v1550 = vadd.f32 0.0, %v1549
    %v1551 = vpop.f32.mrb[0].mxu0
    %v1552 = vadd.f32 0.0, %v1551
    %v1553 = vpop.f32.mrb[0].mxu0
    %v1554 = vadd.f32 0.0, %v1553
    %1555 = vdwg.mxu0
    %v1556 = vld [vmem:[#allocation10] sm:$0xff]
    %v1557 = vld [vmem:[#allocation10 + $0x8] sm:$0xff]
    %1559 = vset.pattern.permute.xlu0 0
    %1560 = vperm.xlu0 %1559, %v1556
    %v1561 = vpop.permute.xlu0 %1560
    %1564 = vset.pattern.permute.xlu0 0
    %1565 = vperm.xlu0 %1564, %v1557
    %v1566 = vpop.permute.xlu0 %1565
    %v1568 = vadd.f32 %v1462, %v1561
    %v1569 = vadd.f32 %v1464, %v1561
    %v1570 = vadd.f32 %v1505, %v1561
    %v1571 = vadd.f32 %v1466, %v1566
    %v1572 = vadd.f32 %v1468, %v1566
    %v1573 = vadd.f32 %v1509, %v1566
    %v1574 = vld [vmem:[#allocation13 + $0x8] sm:$0xff]
    %v1575 = vld [vmem:[#allocation13 + $0x10] sm:$0xff]
    %v1576 = vld [vmem:[#allocation13 + $0x18] sm:$0xff]
    %v1577 = vld [vmem:[#allocation13 + $0x30] sm:$0xff]
    %v1578 = vld [vmem:[#allocation13 + $0x38] sm:$0xff]
    %v1579 = vld [vmem:[#allocation13 + $0x40] sm:$0xff]
    %v1580 = vadd.f32 %v1568, %v1574
    %v1581 = vadd.f32 %v1569, %v1575
    %v1582 = vadd.f32 %v1570, %v1576
    %v1583 = vadd.f32 %v1571, %v1577
    %v1584 = vadd.f32 %v1572, %v1578
    %v1585 = vadd.f32 %v1573, %v1579
    %v1586 = vmax.f32 %v1580, 0.0
    %v1587 = vmax.f32 %v1581, 0.0
    %v1588 = vmax.f32 %v1582, 0.0
    %v1589 = vmax.f32 %v1583, 0.0
    %v1590 = vmax.f32 %v1584, 0.0
    %v1591 = vmax.f32 %v1585, 0.0
    %1592 = vst [vmem:[#allocation15] sm:$0xff] %v1586
    %1593 = vst [vmem:[#allocation15 + $0x8] sm:$0xff] %v1587
    %1594 = vst [vmem:[#allocation15 + $0x10] sm:$0xff] %v1588
    %1595 = vst [vmem:[#allocation15 + $0x18] sm:$0xff] %v1589
    %1596 = vst [vmem:[#allocation15 + $0x20] sm:$0xff] %v1590
    %1597 = vst [vmem:[#allocation15 + $0x28] sm:$0xff] %v1591
    %v1598 = vadd.f32 %v1507, %v1561
    %v1599 = vadd.f32 %v1548, %v1561
    %v1600 = vadd.f32 %v1550, %v1561
    %v1601 = vadd.f32 %v1511, %v1566
    %v1602 = vadd.f32 %v1552, %v1566
    %v1603 = vadd.f32 %v1554, %v1566
    %v1604 = vld [vmem:[#allocation13 + $0x58] sm:$0xff]
    %v1605 = vld [vmem:[#allocation13 + $0x60] sm:$0xff]
    %v1606 = vld [vmem:[#allocation13 + $0x68] sm:$0xff]
    %v1607 = vld [vmem:[#allocation13 + $0x80] sm:$0xff]
    %v1608 = vld [vmem:[#allocation13 + $0x88] sm:$0xff]
    %v1609 = vld [vmem:[#allocation13 + $0x90] sm:$0xff]
    %v1610 = vadd.f32 %v1598, %v1604
    %v1611 = vadd.f32 %v1599, %v1605
    %v1612 = vadd.f32 %v1600, %v1606
    %v1613 = vadd.f32 %v1601, %v1607
    %v1614 = vadd.f32 %v1602, %v1608
    %v1615 = vadd.f32 %v1603, %v1609
    %v1616 = vmax.f32 %v1610, 0.0
    %v1617 = vmax.f32 %v1611, 0.0
    %v1618 = vmax.f32 %v1612, 0.0
    %v1619 = vmax.f32 %v1613, 0.0
    %v1620 = vmax.f32 %v1614, 0.0
    %v1621 = vmax.f32 %v1615, 0.0
    %1622 = vst [vmem:[#allocation15 + $0x30] sm:$0xff] %v1616
    %1623 = vst [vmem:[#allocation15 + $0x38] sm:$0xff] %v1617
    %1624 = vst [vmem:[#allocation15 + $0x40] sm:$0xff] %v1618
    %1625 = vst [vmem:[#allocation15 + $0x48] sm:$0xff] %v1619
    %1626 = vst [vmem:[#allocation15 + $0x50] sm:$0xff] %v1620
    %1627 = vst [vmem:[#allocation15 + $0x58] sm:$0xff] %v1621
    // Predicated region
    $region50: #{tpu_custom_call.1} parent=1 // pred_check
      _
    $region51: #{tpu_custom_call.1} parent=1 // pred_check_branch
      %1629 = sbr.rel (0) target = $region53
    $region52: #{tpu_custom_call.1} parent=1 // pred_region
      %s1631 = ssub.s32 1536, 1536
      %1632 = vsyncadd [#allocation6], %s1631
      %s1633 = sshll.u32 [#allocation15], 4
      %s1634 = int_to_ptr.vmem [resolvable:$true] %s1633
      %1639 = dma.vmem_to_hbm [thread:$0]  %s1634, 1536, %s6, [#allocation6], 384, 384, 24
    $region53: #{tpu_custom_call.1} parent=1 // pred_fallthru
      _
    // Predicated region
    $region54: #{tpu_custom_call.1} parent=1 // pred_check
      _
    $region55: #{tpu_custom_call.1} parent=1 // pred_check_branch
      %1641 = sbr.rel (0) target = $region57
    $region56: #{tpu_custom_call.1} parent=1 // pred_region
      %1642 = dma.done [#allocation6], 1536
    $region57: #{tpu_custom_call.1} parent=1 // pred_fallthru
      _
    %1643 = vsyncpa [#allocation5], 1
    %1644 = vsyncpa [#allocation8], 1
    %1645 = vsyncpa [#allocation11], 1
    %1646 = vsyncpa [#allocation14], 1
    %1647 = vsyncpa [#allocation6], 1

</llo_original>
